<compile_context>
chip_gen: v5e
topology: v5e:2x2
jax: 0.10.0
libtpu: 0.0.40
codegen_flags: <defaults>
</compile_context>

<pallas_src>
import functools

import jax
import jax.numpy as jnp
from jax.experimental import pallas as pl
from jax.experimental.pallas import tpu as pltpu


# ----------------------------------------------------------------------------
# Kernel
# ----------------------------------------------------------------------------
def _conv3x3_kernel(x_ref, w_ref, o_ref, *, n_block, block_h, n_htiles,
                    w_out, cin, coutp):
    """One grid step: `n_block` images x `block_h` output rows of a 3x3 conv.

    x_ref: (n_block, Hc+2, W+2, Cin)   padded NHWC images (VMEM, resident per b)
    w_ref: (9, Cin, Coutp)             folded weights, tap = kh*3 + kw (VMEM)
    o_ref: (n_block, block_h, W, Coutp) lane-dense output tile (VMEM)
    """
    t = pl.program_id(1)

    # Grid-invariant weights: load each tap once per step.
    # TODO(synk): mark the weight BlockSpec pipeline_mode=pl.Buffered(1) once
    #             K*Coutp grows into the MB range (negligible at 9*3*128).
    w_taps = [w_ref[tap] for tap in range(9)]            # each (Cin, Coutp)

    for n in range(n_block):                             # static unroll (small)
        acc = jnp.zeros((block_h * w_out, coutp), jnp.float32)
        for kh in range(3):
            for kw in range(3):
                if n_htiles == 1:
                    h_start = kh                          # fully static slice
                else:
                    h_start = t * block_h + kh
                tap = x_ref[n, pl.ds(h_start, block_h), pl.ds(kw, w_out), :]
                tap = tap.reshape(block_h * w_out, cin)   # merge-major reshape
                acc = acc + jnp.dot(tap, w_taps[kh * 3 + kw],
                                    preferred_element_type=jnp.float32)
        o_ref[n] = acc.reshape(block_h, w_out, coutp).astype(o_ref.dtype)


# ----------------------------------------------------------------------------
# Tiling plan
# ----------------------------------------------------------------------------
def _tile_bytes(shape, itemsize):
    """VMEM footprint of an array (last two dims padded to (8, 128) tiles)."""
    *lead, sub, lane = shape
    n_lead = 1
    for d in lead:
        n_lead *= d
    return n_lead * (-(-sub // 8) * 8) * (-(-lane // 128) * 128) * itemsize


def _vmem_caps():
    """(budget_bytes, vmem_limit_bytes) -- generation aware, conservative."""
    try:
        cap = getattr(pltpu.get_tpu_info(), "vmem_capacity_bytes", 64 << 20)
    except Exception:  # pragma: no cover - be safe on unusual backends
        cap = 64 << 20          # v7x is the smallest (64 MiB / TensorCore)
    budget = min(cap // 4, 24 << 20)
    limit = min(cap // 2, 64 << 20)
    return budget, limit


def _plan(N, H, W, Cin, Coutp, in_itemsize, budget_bytes):
    """Pick (n_block, block_h, n_htiles)."""
    def step_bytes(n_block, block_h, n_htiles):
        hc = n_htiles * block_h
        x_blk = _tile_bytes((n_block, hc + 2, W + 2, Cin), in_itemsize)
        w_blk = _tile_bytes((9, Cin, Coutp), in_itemsize)
        o_blk = _tile_bytes((n_block, block_h, W, Coutp), 4)
        acc = _tile_bytes((block_h * W, Coutp), 4)
        # in / out / weight blocks are double-buffered by the pipeline.
        return 2 * (x_blk + w_blk + o_blk) + acc

    # Single grid step when the whole (small) problem fits comfortably:
    # per-step overhead (~0.35us) would otherwise dominate the tiny matmul.
    if N <= 8 and step_bytes(N, H, 1) <= budget_bytes:
        return N, H, 1

    # Otherwise one image per step along the batch axis; tile output rows if
    # even a single image's output tile is too large.
    block_h = H
    while block_h > 8 and step_bytes(1, block_h, -(-H // block_h)) > budget_bytes:
        block_h = max(8, block_h // 2)
    n_htiles = -(-H // block_h)
    # TODO(synk): if the full padded image itself exceeds the VMEM budget
    #             (very large H*W*Cin), switch the input to pl.ANY + manual
    #             halo DMA instead of keeping the whole image resident.
    return 1, block_h, n_htiles


# ----------------------------------------------------------------------------
# Wrapper
# ----------------------------------------------------------------------------
def layer_forward(x_nchw, w_cell0, w_cell1, *, compute_dtype=jnp.float32):
    """Forward pass of `Layer` (2 InnerCells, channel-concat).

    x_nchw : (N, Cin, H, W)        float32, NCHW like PyTorch
    w_cell0: (Cout//2, Cin, 3, 3)  PyTorch Conv2d weight layout
    w_cell1: (Cout//2, Cin, 3, 3)
    returns: (N, Cout, H, W)       NCHW float32, Cout = 2 * (Cout//2)
    """
    N, Cin, H, W = x_nchw.shape
    Cout_half, Cin_w, KH, KW = w_cell0.shape
    assert w_cell1.shape == w_cell0.shape
    assert Cin_w == Cin and KH == 3 and KW == 3, "assumes a 3x3 conv op"
    Cout = 2 * Cout_half
    Coutp = -(-Cout // 128) * 128            # lane-dense padded output width
    in_itemsize = jnp.dtype(compute_dtype).itemsize

    # --- weights: concat the two cells along Cout, fold the 2x doubling -----
    w = jnp.concatenate([w_cell0, w_cell1], axis=0)            # (Cout, Cin, 3, 3)
    w = jnp.transpose(w, (2, 3, 1, 0)).reshape(9, Cin, Cout)   # (tap, Cin, Cout)
    w = (2.0 * w).astype(compute_dtype)
    w = jnp.pad(w, ((0, 0), (0, 0), (0, Coutp - Cout)))        # (9, Cin, Coutp)

    # --- tiling plan ---------------------------------------------------------
    budget, vmem_limit = _vmem_caps()
    n_block, block_h, n_htiles = _plan(N, H, W, Cin, Coutp, in_itemsize, budget)
    Hc = n_htiles * block_h                  # covered (padded) output rows

    # --- input: NHWC, spatial pad 1, pad H up to the covered rows ------------
    x = jnp.transpose(x_nchw, (0, 2, 3, 1)).astype(compute_dtype)   # NHWC
    xp = jnp.pad(x, ((0, 0), (1, 1 + (Hc - H)), (1, 1), (0, 0)))    # (N,Hc+2,W+2,Cin)

    kernel = functools.partial(
        _conv3x3_kernel, n_block=n_block, block_h=block_h,
        n_htiles=n_htiles, w_out=W, cin=Cin, coutp=Coutp)

    out = pl.pallas_call(
        kernel,
        out_shape=jax.ShapeDtypeStruct((N, Hc, W, Coutp), jnp.float32),
        grid=(N // n_block, n_htiles),
        in_specs=[
            # Whole padded image(s) for this batch block; the block index only
            # depends on b, so it is NOT re-copied across the h-tile axis.
            pl.BlockSpec((n_block, Hc + 2, W + 2, Cin),
                         lambda b, t: (b, 0, 0, 0)),
            # Grid-invariant folded weights (resident).
            pl.BlockSpec((9, Cin, Coutp), lambda b, t: (0, 0, 0)),
        ],
        out_specs=pl.BlockSpec((n_block, block_h, W, Coutp),
                               lambda b, t: (b, t, 0, 0)),
        compiler_params=pltpu.CompilerParams(
            dimension_semantics=("parallel", "parallel"),
            vmem_limit_bytes=vmem_limit),
    )(xp, w)

    # --- glue: strip padding, restore NCHW -----------------------------------
    # TODO(synk): if the downstream consumer accepts NHWC (and/or bf16), return
    #             `out[:, :H, :, :Cout]` directly and skip this transpose to
    #             avoid an extra HBM round trip.
    out = out[:, :H, :, :Cout]
    return jnp.transpose(out, (0, 3, 1, 2))


# ----------------------------------------------------------------------------
# Pure-JAX reference (lax conv) for a correctness sanity check
# ----------------------------------------------------------------------------
def _reference(x_nchw, w_cell0, w_cell1):
    def conv(x, w):
        return jax.lax.conv_general_dilated(
            x, w, window_strides=(1, 1), padding=((1, 1), (1, 1)),
            dimension_numbers=("NCHW", "OIHW", "NCHW"))
    y0 = 2.0 * conv(x_nchw, w_cell0)
    y1 = 2.0 * conv(x_nchw, w_cell1)
    return jnp.concatenate([y0, y1], axis=1)


if __name__ == "__main__":
    # Module defaults: inputChannel=3, outputChannel=96, stride=1, padding=1,
    # numOfInnerCell=2  -> each InnerCell produces 48 channels.
    N, Cin, H, W = 2, 3, 16, 16
    Cout_total = 96
    Cout_half = Cout_total // 2

    key = jax.random.PRNGKey(0)
    kx, k0, k1 = jax.random.split(key, 3)
    x = jax.random.normal(kx, (N, Cin, H, W), jnp.float32)
    w0 = 0.1 * jax.random.normal(k0, (Cout_half, Cin, 3, 3), jnp.float32)
    w1 = 0.1 * jax.random.normal(k1, (Cout_half, Cin, 3, 3), jnp.float32)

    y_ref = _reference(x, w0, w1)

    # f32 path (tight check vs the lax conv reference).
    y = jax.block_until_ready(jax.jit(layer_forward)(x, w0, w1))
    assert y.shape == (N, Cout_total, H, W), y.shape
    assert jnp.allclose(y, y_ref, atol=1e-4, rtol=1e-4), "f32 mismatch vs reference"

    # bf16 input/weight path (v6e/v7x fast path; f32 accumulation in-kernel).
    y_bf16 = jax.block_until_ready(
        jax.jit(functools.partial(layer_forward, compute_dtype=jnp.bfloat16))(
            x, w0, w1))
    assert jnp.allclose(y_bf16, y_ref, atol=1e-1, rtol=1e-1), "bf16 mismatch"

    print("KERNEL_OK")
</pallas_src>

<mosaic_0001>
module attributes {stable_mosaic.version = 11 : i64} {
  func.func @_conv3x3_kernel(%arg0: i32, %arg1: i32, %arg2: memref<2x18x18x3xf32, #tpu.memory_space<vmem>>, %arg3: memref<9x3x128xf32, #tpu.memory_space<vmem>>, %arg4: memref<2x16x16x128xf32, #tpu.memory_space<vmem>>) attributes {dimension_semantics = [#tpu.dimension_semantics<parallel>, #tpu.dimension_semantics<parallel>], iteration_bounds = array<i64: 1, 1>, scalar_prefetch = 0 : i64, scratch_operands = 0 : i64, tpu.core_type = #tpu.core_type<tc>, window_params = [{transform_indices = @transform_0, window_bounds = array<i64: 2, 18, 18, 3>}, {pipeline_mode = #tpu.pipeline_mode<synchronous>, transform_indices = @transform_1, window_bounds = array<i64: 9, 3, 128>}, {transform_indices = @transform_2, window_bounds = array<i64: 2, 16, 16, 128>}]} {
    %c0 = arith.constant 0 : index
    %c0_0 = arith.constant 0 : index
    %c0_1 = arith.constant 0 : index
    %0 = vector.load %arg3[%c0, %c0_0, %c0_1] : memref<9x3x128xf32, #tpu.memory_space<vmem>>, vector<1x3x128xf32>
    %1 = vector.shape_cast %0 : vector<1x3x128xf32> to vector<3x128xf32>
    %c1 = arith.constant 1 : index
    %c0_2 = arith.constant 0 : index
    %c0_3 = arith.constant 0 : index
    %2 = vector.load %arg3[%c1, %c0_2, %c0_3] : memref<9x3x128xf32, #tpu.memory_space<vmem>>, vector<1x3x128xf32>
    %3 = vector.shape_cast %2 : vector<1x3x128xf32> to vector<3x128xf32>
    %c2 = arith.constant 2 : index
    %c0_4 = arith.constant 0 : index
    %c0_5 = arith.constant 0 : index
    %4 = vector.load %arg3[%c2, %c0_4, %c0_5] : memref<9x3x128xf32, #tpu.memory_space<vmem>>, vector<1x3x128xf32>
    %5 = vector.shape_cast %4 : vector<1x3x128xf32> to vector<3x128xf32>
    %c3 = arith.constant 3 : index
    %c0_6 = arith.constant 0 : index
    %c0_7 = arith.constant 0 : index
    %6 = vector.load %arg3[%c3, %c0_6, %c0_7] : memref<9x3x128xf32, #tpu.memory_space<vmem>>, vector<1x3x128xf32>
    %7 = vector.shape_cast %6 : vector<1x3x128xf32> to vector<3x128xf32>
    %c4 = arith.constant 4 : index
    %c0_8 = arith.constant 0 : index
    %c0_9 = arith.constant 0 : index
    %8 = vector.load %arg3[%c4, %c0_8, %c0_9] : memref<9x3x128xf32, #tpu.memory_space<vmem>>, vector<1x3x128xf32>
    %9 = vector.shape_cast %8 : vector<1x3x128xf32> to vector<3x128xf32>
    %c5 = arith.constant 5 : index
    %c0_10 = arith.constant 0 : index
    %c0_11 = arith.constant 0 : index
    %10 = vector.load %arg3[%c5, %c0_10, %c0_11] : memref<9x3x128xf32, #tpu.memory_space<vmem>>, vector<1x3x128xf32>
    %11 = vector.shape_cast %10 : vector<1x3x128xf32> to vector<3x128xf32>
    %c6 = arith.constant 6 : index
    %c0_12 = arith.constant 0 : index
    %c0_13 = arith.constant 0 : index
    %12 = vector.load %arg3[%c6, %c0_12, %c0_13] : memref<9x3x128xf32, #tpu.memory_space<vmem>>, vector<1x3x128xf32>
    %13 = vector.shape_cast %12 : vector<1x3x128xf32> to vector<3x128xf32>
    %c7 = arith.constant 7 : index
    %c0_14 = arith.constant 0 : index
    %c0_15 = arith.constant 0 : index
    %14 = vector.load %arg3[%c7, %c0_14, %c0_15] : memref<9x3x128xf32, #tpu.memory_space<vmem>>, vector<1x3x128xf32>
    %15 = vector.shape_cast %14 : vector<1x3x128xf32> to vector<3x128xf32>
    %c8 = arith.constant 8 : index
    %c0_16 = arith.constant 0 : index
    %c0_17 = arith.constant 0 : index
    %16 = vector.load %arg3[%c8, %c0_16, %c0_17] : memref<9x3x128xf32, #tpu.memory_space<vmem>>, vector<1x3x128xf32>
    %17 = vector.shape_cast %16 : vector<1x3x128xf32> to vector<3x128xf32>
    %cst = arith.constant 0.000000e+00 : f32
    %18 = vector.broadcast %cst : f32 to vector<256x128xf32>
    %c0_18 = arith.constant 0 : index
    %c0_19 = arith.constant 0 : index
    %c0_20 = arith.constant 0 : index
    %c0_21 = arith.constant 0 : index
    %19 = vector.load %arg2[%c0_18, %c0_19, %c0_20, %c0_21] : memref<2x18x18x3xf32, #tpu.memory_space<vmem>>, vector<1x16x16x3xf32>
    %20 = vector.shape_cast %19 : vector<1x16x16x3xf32> to vector<16x16x3xf32>
    %21 = vector.shape_cast %20 : vector<16x16x3xf32> to vector<256x3xf32>
    %cst_22 = arith.constant dense<0.000000e+00> : vector<256x128xf32>
    %22 = tpu.matmul %21, %1, %cst_22 {dimension_numbers = #tpu.dot_dimension_numbers<[1], [0], [0], [1], [0, 0, 1, 1], [], []>} : vector<256x3xf32>, vector<3x128xf32>, vector<256x128xf32> -> vector<256x128xf32>
    %23 = arith.addf %18, %22 : vector<256x128xf32>
    %c0_23 = arith.constant 0 : index
    %c0_24 = arith.constant 0 : index
    %c1_25 = arith.constant 1 : index
    %c0_26 = arith.constant 0 : index
    %24 = vector.load %arg2[%c0_23, %c0_24, %c1_25, %c0_26] : memref<2x18x18x3xf32, #tpu.memory_space<vmem>>, vector<1x16x16x3xf32>
    %25 = vector.shape_cast %24 : vector<1x16x16x3xf32> to vector<16x16x3xf32>
    %26 = vector.shape_cast %25 : vector<16x16x3xf32> to vector<256x3xf32>
    %cst_27 = arith.constant dense<0.000000e+00> : vector<256x128xf32>
    %27 = tpu.matmul %26, %3, %cst_27 {dimension_numbers = #tpu.dot_dimension_numbers<[1], [0], [0], [1], [0, 0, 1, 1], [], []>} : vector<256x3xf32>, vector<3x128xf32>, vector<256x128xf32> -> vector<256x128xf32>
    %28 = arith.addf %23, %27 : vector<256x128xf32>
    %c0_28 = arith.constant 0 : index
    %c0_29 = arith.constant 0 : index
    %c2_30 = arith.constant 2 : index
    %c0_31 = arith.constant 0 : index
    %29 = vector.load %arg2[%c0_28, %c0_29, %c2_30, %c0_31] : memref<2x18x18x3xf32, #tpu.memory_space<vmem>>, vector<1x16x16x3xf32>
    %30 = vector.shape_cast %29 : vector<1x16x16x3xf32> to vector<16x16x3xf32>
    %31 = vector.shape_cast %30 : vector<16x16x3xf32> to vector<256x3xf32>
    %cst_32 = arith.constant dense<0.000000e+00> : vector<256x128xf32>
    %32 = tpu.matmul %31, %5, %cst_32 {dimension_numbers = #tpu.dot_dimension_numbers<[1], [0], [0], [1], [0, 0, 1, 1], [], []>} : vector<256x3xf32>, vector<3x128xf32>, vector<256x128xf32> -> vector<256x128xf32>
    %33 = arith.addf %28, %32 : vector<256x128xf32>
    %c0_33 = arith.constant 0 : index
    %c1_34 = arith.constant 1 : index
    %c0_35 = arith.constant 0 : index
    %c0_36 = arith.constant 0 : index
    %34 = vector.load %arg2[%c0_33, %c1_34, %c0_35, %c0_36] : memref<2x18x18x3xf32, #tpu.memory_space<vmem>>, vector<1x16x16x3xf32>
    %35 = vector.shape_cast %34 : vector<1x16x16x3xf32> to vector<16x16x3xf32>
    %36 = vector.shape_cast %35 : vector<16x16x3xf32> to vector<256x3xf32>
    %cst_37 = arith.constant dense<0.000000e+00> : vector<256x128xf32>
    %37 = tpu.matmul %36, %7, %cst_37 {dimension_numbers = #tpu.dot_dimension_numbers<[1], [0], [0], [1], [0, 0, 1, 1], [], []>} : vector<256x3xf32>, vector<3x128xf32>, vector<256x128xf32> -> vector<256x128xf32>
    %38 = arith.addf %33, %37 : vector<256x128xf32>
    %c0_38 = arith.constant 0 : index
    %c1_39 = arith.constant 1 : index
    %c1_40 = arith.constant 1 : index
    %c0_41 = arith.constant 0 : index
    %39 = vector.load %arg2[%c0_38, %c1_39, %c1_40, %c0_41] : memref<2x18x18x3xf32, #tpu.memory_space<vmem>>, vector<1x16x16x3xf32>
    %40 = vector.shape_cast %39 : vector<1x16x16x3xf32> to vector<16x16x3xf32>
    %41 = vector.shape_cast %40 : vector<16x16x3xf32> to vector<256x3xf32>
    %cst_42 = arith.constant dense<0.000000e+00> : vector<256x128xf32>
    %42 = tpu.matmul %41, %9, %cst_42 {dimension_numbers = #tpu.dot_dimension_numbers<[1], [0], [0], [1], [0, 0, 1, 1], [], []>} : vector<256x3xf32>, vector<3x128xf32>, vector<256x128xf32> -> vector<256x128xf32>
    %43 = arith.addf %38, %42 : vector<256x128xf32>
    %c0_43 = arith.constant 0 : index
    %c1_44 = arith.constant 1 : index
    %c2_45 = arith.constant 2 : index
    %c0_46 = arith.constant 0 : index
    %44 = vector.load %arg2[%c0_43, %c1_44, %c2_45, %c0_46] : memref<2x18x18x3xf32, #tpu.memory_space<vmem>>, vector<1x16x16x3xf32>
    %45 = vector.shape_cast %44 : vector<1x16x16x3xf32> to vector<16x16x3xf32>
    %46 = vector.shape_cast %45 : vector<16x16x3xf32> to vector<256x3xf32>
    %cst_47 = arith.constant dense<0.000000e+00> : vector<256x128xf32>
    %47 = tpu.matmul %46, %11, %cst_47 {dimension_numbers = #tpu.dot_dimension_numbers<[1], [0], [0], [1], [0, 0, 1, 1], [], []>} : vector<256x3xf32>, vector<3x128xf32>, vector<256x128xf32> -> vector<256x128xf32>
    %48 = arith.addf %43, %47 : vector<256x128xf32>
    %c0_48 = arith.constant 0 : index
    %c2_49 = arith.constant 2 : index
    %c0_50 = arith.constant 0 : index
    %c0_51 = arith.constant 0 : index
    %49 = vector.load %arg2[%c0_48, %c2_49, %c0_50, %c0_51] : memref<2x18x18x3xf32, #tpu.memory_space<vmem>>, vector<1x16x16x3xf32>
    %50 = vector.shape_cast %49 : vector<1x16x16x3xf32> to vector<16x16x3xf32>
    %51 = vector.shape_cast %50 : vector<16x16x3xf32> to vector<256x3xf32>
    %cst_52 = arith.constant dense<0.000000e+00> : vector<256x128xf32>
    %52 = tpu.matmul %51, %13, %cst_52 {dimension_numbers = #tpu.dot_dimension_numbers<[1], [0], [0], [1], [0, 0, 1, 1], [], []>} : vector<256x3xf32>, vector<3x128xf32>, vector<256x128xf32> -> vector<256x128xf32>
    %53 = arith.addf %48, %52 : vector<256x128xf32>
    %c0_53 = arith.constant 0 : index
    %c2_54 = arith.constant 2 : index
    %c1_55 = arith.constant 1 : index
    %c0_56 = arith.constant 0 : index
    %54 = vector.load %arg2[%c0_53, %c2_54, %c1_55, %c0_56] : memref<2x18x18x3xf32, #tpu.memory_space<vmem>>, vector<1x16x16x3xf32>
    %55 = vector.shape_cast %54 : vector<1x16x16x3xf32> to vector<16x16x3xf32>
    %56 = vector.shape_cast %55 : vector<16x16x3xf32> to vector<256x3xf32>
    %cst_57 = arith.constant dense<0.000000e+00> : vector<256x128xf32>
    %57 = tpu.matmul %56, %15, %cst_57 {dimension_numbers = #tpu.dot_dimension_numbers<[1], [0], [0], [1], [0, 0, 1, 1], [], []>} : vector<256x3xf32>, vector<3x128xf32>, vector<256x128xf32> -> vector<256x128xf32>
    %58 = arith.addf %53, %57 : vector<256x128xf32>
    %c0_58 = arith.constant 0 : index
    %c2_59 = arith.constant 2 : index
    %c2_60 = arith.constant 2 : index
    %c0_61 = arith.constant 0 : index
    %59 = vector.load %arg2[%c0_58, %c2_59, %c2_60, %c0_61] : memref<2x18x18x3xf32, #tpu.memory_space<vmem>>, vector<1x16x16x3xf32>
    %60 = vector.shape_cast %59 : vector<1x16x16x3xf32> to vector<16x16x3xf32>
    %61 = vector.shape_cast %60 : vector<16x16x3xf32> to vector<256x3xf32>
    %cst_62 = arith.constant dense<0.000000e+00> : vector<256x128xf32>
    %62 = tpu.matmul %61, %17, %cst_62 {dimension_numbers = #tpu.dot_dimension_numbers<[1], [0], [0], [1], [0, 0, 1, 1], [], []>} : vector<256x3xf32>, vector<3x128xf32>, vector<256x128xf32> -> vector<256x128xf32>
    %63 = arith.addf %58, %62 : vector<256x128xf32>
    %64 = vector.shape_cast %63 : vector<256x128xf32> to vector<16x16x128xf32>
    %c0_63 = arith.constant 0 : index
    %c0_64 = arith.constant 0 : index
    %c0_65 = arith.constant 0 : index
    %c0_66 = arith.constant 0 : index
    %65 = vector.load %arg4[%c0_63, %c0_64, %c0_65, %c0_66] : memref<2x16x16x128xf32, #tpu.memory_space<vmem>>, vector<1x16x16x128xf32>
    %66 = vector.shape_cast %65 : vector<1x16x16x128xf32> to vector<16x16x128xf32>
    %67 = vector.shape_cast %64 : vector<16x16x128xf32> to vector<1x16x16x128xf32>
    tpu.vector_store %arg4[%c0_63, %c0_64, %c0_65, %c0_66], %67 {strides = array<i32>} : memref<2x16x16x128xf32, #tpu.memory_space<vmem>>, vector<1x16x16x128xf32>,
    %cst_67 = arith.constant 0.000000e+00 : f32
    %68 = vector.broadcast %cst_67 : f32 to vector<256x128xf32>
    %c1_68 = arith.constant 1 : index
    %c0_69 = arith.constant 0 : index
    %c0_70 = arith.constant 0 : index
    %c0_71 = arith.constant 0 : index
    %69 = vector.load %arg2[%c1_68, %c0_69, %c0_70, %c0_71] : memref<2x18x18x3xf32, #tpu.memory_space<vmem>>, vector<1x16x16x3xf32>
    %70 = vector.shape_cast %69 : vector<1x16x16x3xf32> to vector<16x16x3xf32>
    %71 = vector.shape_cast %70 : vector<16x16x3xf32> to vector<256x3xf32>
    %cst_72 = arith.constant dense<0.000000e+00> : vector<256x128xf32>
    %72 = tpu.matmul %71, %1, %cst_72 {dimension_numbers = #tpu.dot_dimension_numbers<[1], [0], [0], [1], [0, 0, 1, 1], [], []>} : vector<256x3xf32>, vector<3x128xf32>, vector<256x128xf32> -> vector<256x128xf32>
    %73 = arith.addf %68, %72 : vector<256x128xf32>
    %c1_73 = arith.constant 1 : index
    %c0_74 = arith.constant 0 : index
    %c1_75 = arith.constant 1 : index
    %c0_76 = arith.constant 0 : index
    %74 = vector.load %arg2[%c1_73, %c0_74, %c1_75, %c0_76] : memref<2x18x18x3xf32, #tpu.memory_space<vmem>>, vector<1x16x16x3xf32>
    %75 = vector.shape_cast %74 : vector<1x16x16x3xf32> to vector<16x16x3xf32>
    %76 = vector.shape_cast %75 : vector<16x16x3xf32> to vector<256x3xf32>
    %cst_77 = arith.constant dense<0.000000e+00> : vector<256x128xf32>
    %77 = tpu.matmul %76, %3, %cst_77 {dimension_numbers = #tpu.dot_dimension_numbers<[1], [0], [0], [1], [0, 0, 1, 1], [], []>} : vector<256x3xf32>, vector<3x128xf32>, vector<256x128xf32> -> vector<256x128xf32>
    %78 = arith.addf %73, %77 : vector<256x128xf32>
    %c1_78 = arith.constant 1 : index
    %c0_79 = arith.constant 0 : index
    %c2_80 = arith.constant 2 : index
    %c0_81 = arith.constant 0 : index
    %79 = vector.load %arg2[%c1_78, %c0_79, %c2_80, %c0_81] : memref<2x18x18x3xf32, #tpu.memory_space<vmem>>, vector<1x16x16x3xf32>
    %80 = vector.shape_cast %79 : vector<1x16x16x3xf32> to vector<16x16x3xf32>
    %81 = vector.shape_cast %80 : vector<16x16x3xf32> to vector<256x3xf32>
    %cst_82 = arith.constant dense<0.000000e+00> : vector<256x128xf32>
    %82 = tpu.matmul %81, %5, %cst_82 {dimension_numbers = #tpu.dot_dimension_numbers<[1], [0], [0], [1], [0, 0, 1, 1], [], []>} : vector<256x3xf32>, vector<3x128xf32>, vector<256x128xf32> -> vector<256x128xf32>
    %83 = arith.addf %78, %82 : vector<256x128xf32>
    %c1_83 = arith.constant 1 : index
    %c1_84 = arith.constant 1 : index
    %c0_85 = arith.constant 0 : index
    %c0_86 = arith.constant 0 : index
    %84 = vector.load %arg2[%c1_83, %c1_84, %c0_85, %c0_86] : memref<2x18x18x3xf32, #tpu.memory_space<vmem>>, vector<1x16x16x3xf32>
    %85 = vector.shape_cast %84 : vector<1x16x16x3xf32> to vector<16x16x3xf32>
    %86 = vector.shape_cast %85 : vector<16x16x3xf32> to vector<256x3xf32>
    %cst_87 = arith.constant dense<0.000000e+00> : vector<256x128xf32>
    %87 = tpu.matmul %86, %7, %cst_87 {dimension_numbers = #tpu.dot_dimension_numbers<[1], [0], [0], [1], [0, 0, 1, 1], [], []>} : vector<256x3xf32>, vector<3x128xf32>, vector<256x128xf32> -> vector<256x128xf32>
    %88 = arith.addf %83, %87 : vector<256x128xf32>
    %c1_88 = arith.constant 1 : index
    %c1_89 = arith.constant 1 : index
    %c1_90 = arith.constant 1 : index
    %c0_91 = arith.constant 0 : index
    %89 = vector.load %arg2[%c1_88, %c1_89, %c1_90, %c0_91] : memref<2x18x18x3xf32, #tpu.memory_space<vmem>>, vector<1x16x16x3xf32>
    %90 = vector.shape_cast %89 : vector<1x16x16x3xf32> to vector<16x16x3xf32>
    %91 = vector.shape_cast %90 : vector<16x16x3xf32> to vector<256x3xf32>
    %cst_92 = arith.constant dense<0.000000e+00> : vector<256x128xf32>
    %92 = tpu.matmul %91, %9, %cst_92 {dimension_numbers = #tpu.dot_dimension_numbers<[1], [0], [0], [1], [0, 0, 1, 1], [], []>} : vector<256x3xf32>, vector<3x128xf32>, vector<256x128xf32> -> vector<256x128xf32>
    %93 = arith.addf %88, %92 : vector<256x128xf32>
    %c1_93 = arith.constant 1 : index
    %c1_94 = arith.constant 1 : index
    %c2_95 = arith.constant 2 : index
    %c0_96 = arith.constant 0 : index
    %94 = vector.load %arg2[%c1_93, %c1_94, %c2_95, %c0_96] : memref<2x18x18x3xf32, #tpu.memory_space<vmem>>, vector<1x16x16x3xf32>
    %95 = vector.shape_cast %94 : vector<1x16x16x3xf32> to vector<16x16x3xf32>
    %96 = vector.shape_cast %95 : vector<16x16x3xf32> to vector<256x3xf32>
    %cst_97 = arith.constant dense<0.000000e+00> : vector<256x128xf32>
    %97 = tpu.matmul %96, %11, %cst_97 {dimension_numbers = #tpu.dot_dimension_numbers<[1], [0], [0], [1], [0, 0, 1, 1], [], []>} : vector<256x3xf32>, vector<3x128xf32>, vector<256x128xf32> -> vector<256x128xf32>
    %98 = arith.addf %93, %97 : vector<256x128xf32>
    %c1_98 = arith.constant 1 : index
    %c2_99 = arith.constant 2 : index
    %c0_100 = arith.constant 0 : index
    %c0_101 = arith.constant 0 : index
    %99 = vector.load %arg2[%c1_98, %c2_99, %c0_100, %c0_101] : memref<2x18x18x3xf32, #tpu.memory_space<vmem>>, vector<1x16x16x3xf32>
    %100 = vector.shape_cast %99 : vector<1x16x16x3xf32> to vector<16x16x3xf32>
    %101 = vector.shape_cast %100 : vector<16x16x3xf32> to vector<256x3xf32>
    %cst_102 = arith.constant dense<0.000000e+00> : vector<256x128xf32>
    %102 = tpu.matmul %101, %13, %cst_102 {dimension_numbers = #tpu.dot_dimension_numbers<[1], [0], [0], [1], [0, 0, 1, 1], [], []>} : vector<256x3xf32>, vector<3x128xf32>, vector<256x128xf32> -> vector<256x128xf32>
    %103 = arith.addf %98, %102 : vector<256x128xf32>
    %c1_103 = arith.constant 1 : index
    %c2_104 = arith.constant 2 : index
    %c1_105 = arith.constant 1 : index
    %c0_106 = arith.constant 0 : index
    %104 = vector.load %arg2[%c1_103, %c2_104, %c1_105, %c0_106] : memref<2x18x18x3xf32, #tpu.memory_space<vmem>>, vector<1x16x16x3xf32>
    %105 = vector.shape_cast %104 : vector<1x16x16x3xf32> to vector<16x16x3xf32>
    %106 = vector.shape_cast %105 : vector<16x16x3xf32> to vector<256x3xf32>
    %cst_107 = arith.constant dense<0.000000e+00> : vector<256x128xf32>
    %107 = tpu.matmul %106, %15, %cst_107 {dimension_numbers = #tpu.dot_dimension_numbers<[1], [0], [0], [1], [0, 0, 1, 1], [], []>} : vector<256x3xf32>, vector<3x128xf32>, vector<256x128xf32> -> vector<256x128xf32>
    %108 = arith.addf %103, %107 : vector<256x128xf32>
    %c1_108 = arith.constant 1 : index
    %c2_109 = arith.constant 2 : index
    %c2_110 = arith.constant 2 : index
    %c0_111 = arith.constant 0 : index
    %109 = vector.load %arg2[%c1_108, %c2_109, %c2_110, %c0_111] : memref<2x18x18x3xf32, #tpu.memory_space<vmem>>, vector<1x16x16x3xf32>
    %110 = vector.shape_cast %109 : vector<1x16x16x3xf32> to vector<16x16x3xf32>
    %111 = vector.shape_cast %110 : vector<16x16x3xf32> to vector<256x3xf32>
    %cst_112 = arith.constant dense<0.000000e+00> : vector<256x128xf32>
    %112 = tpu.matmul %111, %17, %cst_112 {dimension_numbers = #tpu.dot_dimension_numbers<[1], [0], [0], [1], [0, 0, 1, 1], [], []>} : vector<256x3xf32>, vector<3x128xf32>, vector<256x128xf32> -> vector<256x128xf32>
    %113 = arith.addf %108, %112 : vector<256x128xf32>
    %114 = vector.shape_cast %113 : vector<256x128xf32> to vector<16x16x128xf32>
    %c1_113 = arith.constant 1 : index
    %c0_114 = arith.constant 0 : index
    %c0_115 = arith.constant 0 : index
    %c0_116 = arith.constant 0 : index
    %115 = vector.load %arg4[%c1_113, %c0_114, %c0_115, %c0_116] : memref<2x16x16x128xf32, #tpu.memory_space<vmem>>, vector<1x16x16x128xf32>
    %116 = vector.shape_cast %115 : vector<1x16x16x128xf32> to vector<16x16x128xf32>
    %117 = vector.shape_cast %114 : vector<16x16x128xf32> to vector<1x16x16x128xf32>
    tpu.vector_store %arg4[%c1_113, %c0_114, %c0_115, %c0_116], %117 {strides = array<i32>} : memref<2x16x16x128xf32, #tpu.memory_space<vmem>>, vector<1x16x16x128xf32>,
    return
  }
  func.func @transform_0(%arg0: i32, %arg1: i32) -> (i32, i32, i32, i32) {
    %c0_i32 = arith.constant 0 : i32
    %c0_i32_0 = arith.constant 0 : i32
    %c0_i32_1 = arith.constant 0 : i32
    %c0_i32_2 = arith.constant 0 : i32
    return %arg0, %c0_i32, %c0_i32_0, %c0_i32_1 : i32, i32, i32, i32
  }
  func.func @transform_1(%arg0: i32, %arg1: i32) -> (i32, i32, i32) {
    %c0_i32 = arith.constant 0 : i32
    %c0_i32_0 = arith.constant 0 : i32
    %c0_i32_1 = arith.constant 0 : i32
    %c0_i32_2 = arith.constant 0 : i32
    return %c0_i32, %c0_i32_0, %c0_i32_1 : i32, i32, i32
  }
  func.func @transform_2(%arg0: i32, %arg1: i32) -> (i32, i32, i32, i32) {
    %c0_i32 = arith.constant 0 : i32
    %c0_i32_0 = arith.constant 0 : i32
    %c0_i32_1 = arith.constant 0 : i32
    return %arg0, %arg1, %c0_i32, %c0_i32_0 : i32, i32, i32, i32
  }
}

</mosaic_0001>

<llo_original>
// kernel: layer_forward.1
$region0: #{layer_forward.1}
  #allocation0 [shape = 'u32[]', space=smem, size = 0x4, offset = 0x4, fixed_abs, tag = 'smem constant byte address 0x4 - core index']
  #allocation1 [shape = 'u32[72,128]{1,0:T(1,128)}', space=vmem, size = 0x9000, scoped, tag = 'internal scratch']
  %s0 = inlined_call_operand.vmem [shape: f32[2,18,18,3], index: 0, kind: input, shape index: {}]
  %s1 = inlined_call_operand.vmem [shape: f32[9,3,128], index: 1, kind: input, shape index: {}]
  %s2 = inlined_call_operand.vmem [shape: f32[2,16,16,128], index: 2, kind: output, shape index: {}]
  %s3 = sld [smem:[#allocation0]]
  $region18: #{layer_forward.1} parent=0
    _
  %s5 = ssub.s32 1, %s3
  %s6 = scalar_select 0, %s5, %s3
  // Predicated region
  $region2: #{layer_forward.1} parent=0 // pred_check
    _
  $region3: #{layer_forward.1} parent=0 // pred_check_branch
    %8 = sbr.rel (0) target = $region5
  $region4: #{layer_forward.1} parent=0 // pred_region
    _
  $region5: #{layer_forward.1} parent=0 // pred_fallthru
    _
  // Predicated region
  $region6: #{layer_forward.1} parent=0 // pred_check
    _
  $region7: #{layer_forward.1} parent=0 // pred_check_branch
    %10 = sbr.rel (0) target = $region9
  $region8: #{layer_forward.1} parent=0 // pred_region
    _
  $region9: #{layer_forward.1} parent=0 // pred_fallthru
    _
  %v11 = vld [vmem:[%s1] sm:$0x7]
  %s12 = scalar_lea.vmem %s1, 4
  %v13 = vld [vmem:[%s12] sm:$0x7]
  %s14 = scalar_lea.vmem %s1, 8
  %v15 = vld [vmem:[%s14] sm:$0x7]
  %s16 = scalar_lea.vmem %s1, 12
  %v17 = vld [vmem:[%s16] sm:$0x7]
  %s18 = scalar_lea.vmem %s1, 16
  %v19 = vld [vmem:[%s18] sm:$0x7]
  %s20 = scalar_lea.vmem %s1, 20
  %v21 = vld [vmem:[%s20] sm:$0x7]
  %s22 = scalar_lea.vmem %s1, 24
  %v23 = vld [vmem:[%s22] sm:$0x7]
  %s24 = scalar_lea.vmem %s1, 28
  %v25 = vld [vmem:[%s24] sm:$0x7]
  %s26 = scalar_lea.vmem %s1, 32
  %v27 = vld [vmem:[%s26] sm:$0x7]
  %v28 = vld [vmem:[%s0] sm:$0xff]
  %v29 = vld [vmem:[%s0 + $0x8] sm:$0xff]
  %v30 = vld [vmem:[%s0 + $0x18] sm:$0xff]
  %v31 = vld [vmem:[%s0 + $0x20] sm:$0xff]
  %v32 = vld [vmem:[%s0 + $0x30] sm:$0xff]
  %v33 = vld [vmem:[%s0 + $0x38] sm:$0xff]
  %v34 = vld [vmem:[%s0 + $0x48] sm:$0xff]
  %v35 = vld [vmem:[%s0 + $0x50] sm:$0xff]
  %v36 = vld [vmem:[%s0 + $0x60] sm:$0xff]
  %v37 = vld [vmem:[%s0 + $0x68] sm:$0xff]
  %v38 = vld [vmem:[%s0 + $0x78] sm:$0xff]
  %v39 = vld [vmem:[%s0 + $0x80] sm:$0xff]
  %v40 = vld [vmem:[%s0 + $0x90] sm:$0xff]
  %v41 = vld [vmem:[%s0 + $0x98] sm:$0xff]
  %v42 = vld [vmem:[%s0 + $0xa8] sm:$0xff]
  %v43 = vld [vmem:[%s0 + $0xb0] sm:$0xff]
  %v44 = vld [vmem:[%s0 + $0xc0] sm:$0xff]
  %v45 = vld [vmem:[%s0 + $0xc8] sm:$0xff]
  %v46 = vld [vmem:[%s0 + $0xd8] sm:$0xff]
  %v47 = vld [vmem:[%s0 + $0xe0] sm:$0xff]
  %v48 = vld [vmem:[%s0 + $0xf0] sm:$0xff]
  %v49 = vld [vmem:[%s0 + $0xf8] sm:$0xff]
  %v50 = vld [vmem:[%s0 + $0x108] sm:$0xff]
  %v51 = vld [vmem:[%s0 + $0x110] sm:$0xff]
  %v52 = vld [vmem:[%s0 + $0x120] sm:$0xff]
  %v53 = vld [vmem:[%s0 + $0x128] sm:$0xff]
  %v54 = vld [vmem:[%s0 + $0x138] sm:$0xff]
  %v55 = vld [vmem:[%s0 + $0x140] sm:$0xff]
  %v56 = vld [vmem:[%s0 + $0x150] sm:$0xff]
  %v57 = vld [vmem:[%s0 + $0x158] sm:$0xff]
  %v58 = vld [vmem:[%s0 + $0x168] sm:$0xff]
  %v59 = vld [vmem:[%s0 + $0x170] sm:$0xff]
  %v60 = vld [vmem:[%s0 + $0x1] sm:$0xff]
  %v61 = vld [vmem:[%s0 + $0x9] sm:$0xff]
  %v62 = vld [vmem:[%s0 + $0x19] sm:$0xff]
  %v63 = vld [vmem:[%s0 + $0x21] sm:$0xff]
  %v64 = vld [vmem:[%s0 + $0x31] sm:$0xff]
  %v65 = vld [vmem:[%s0 + $0x39] sm:$0xff]
  %v66 = vld [vmem:[%s0 + $0x49] sm:$0xff]
  %v67 = vld [vmem:[%s0 + $0x51] sm:$0xff]
  %v68 = vld [vmem:[%s0 + $0x61] sm:$0xff]
  %v69 = vld [vmem:[%s0 + $0x69] sm:$0xff]
  %v70 = vld [vmem:[%s0 + $0x79] sm:$0xff]
  %v71 = vld [vmem:[%s0 + $0x81] sm:$0xff]
  %v72 = vld [vmem:[%s0 + $0x91] sm:$0xff]
  %v73 = vld [vmem:[%s0 + $0x99] sm:$0xff]
  %v74 = vld [vmem:[%s0 + $0xa9] sm:$0xff]
  %v75 = vld [vmem:[%s0 + $0xb1] sm:$0xff]
  %v76 = vld [vmem:[%s0 + $0xc1] sm:$0xff]
  %v77 = vld [vmem:[%s0 + $0xc9] sm:$0xff]
  %v78 = vld [vmem:[%s0 + $0xd9] sm:$0xff]
  %v79 = vld [vmem:[%s0 + $0xe1] sm:$0xff]
  %v80 = vld [vmem:[%s0 + $0xf1] sm:$0xff]
  %v81 = vld [vmem:[%s0 + $0xf9] sm:$0xff]
  %v82 = vld [vmem:[%s0 + $0x109] sm:$0xff]
  %v83 = vld [vmem:[%s0 + $0x111] sm:$0xff]
  %v84 = vld [vmem:[%s0 + $0x121] sm:$0xff]
  %v85 = vld [vmem:[%s0 + $0x129] sm:$0xff]
  %v86 = vld [vmem:[%s0 + $0x139] sm:$0xff]
  %v87 = vld [vmem:[%s0 + $0x141] sm:$0xff]
  %v88 = vld [vmem:[%s0 + $0x151] sm:$0xff]
  %v89 = vld [vmem:[%s0 + $0x159] sm:$0xff]
  %v90 = vld [vmem:[%s0 + $0x169] sm:$0xff]
  %v91 = vld [vmem:[%s0 + $0x171] sm:$0xff]
  %vm92 = vcmask 23552
  %v94 = vsel %vm92, %v60, 0
  %v97 = vsel %vm92, %v61, 0
  %v100 = vsel %vm92, %v62, 0
  %v103 = vsel %vm92, %v63, 0
  %v106 = vsel %vm92, %v64, 0
  %v109 = vsel %vm92, %v65, 0
  %v112 = vsel %vm92, %v66, 0
  %v115 = vsel %vm92, %v67, 0
  %v118 = vsel %vm92, %v68, 0
  %v121 = vsel %vm92, %v69, 0
  %v124 = vsel %vm92, %v70, 0
  %v127 = vsel %vm92, %v71, 0
  %v130 = vsel %vm92, %v72, 0
  %v133 = vsel %vm92, %v73, 0
  %v136 = vsel %vm92, %v74, 0
  %v139 = vsel %vm92, %v75, 0
  %v142 = vsel %vm92, %v76, 0
  %v145 = vsel %vm92, %v77, 0
  %v148 = vsel %vm92, %v78, 0
  %v151 = vsel %vm92, %v79, 0
  %v154 = vsel %vm92, %v80, 0
  %v157 = vsel %vm92, %v81, 0
  %v160 = vsel %vm92, %v82, 0
  %v163 = vsel %vm92, %v83, 0
  %v166 = vsel %vm92, %v84, 0
  %v169 = vsel %vm92, %v85, 0
  %v172 = vsel %vm92, %v86, 0
  %v175 = vsel %vm92, %v87, 0
  %v178 = vsel %vm92, %v88, 0
  %v181 = vsel %vm92, %v89, 0
  %v184 = vsel %vm92, %v90, 0
  %v187 = vsel %vm92, %v91, 0
  %vm189 = vcmask 1042432
  %v191 = vsel %vm189, %v13, 0
  %193 = vmatpush.msra.mxu0 0.0
  %194 = vmatpush.msra.mxu0 0.0
  %195 = vmatpush.msra.mxu0 0.0
  %196 = vmatpush.msra.mxu0 0.0
  %197 = vmatpush.msra.mxu0 0.0
  %198 = vmatpush.msra.mxu0 0.0
  %199 = vmatpush.msra.mxu0 0.0
  %200 = vmatpush.msra.mxu0 0.0
  %201 = vmatpush.msra.mxu0 0.0
  %202 = vmatpush.msra.mxu0 0.0
  %203 = vmatpush.msra.mxu0 0.0
  %204 = vmatpush.msra.mxu0 0.0
  %205 = vmatpush.msra.mxu0 0.0
  %206 = vmatpush.msra.mxu0 0.0
  %207 = vmatpush.msra.mxu0 0.0
  %208 = vmatpush.msra.mxu0 %v191
  %209 = vmatmul.f32.gmra.mxu0 %v94
  %v210 = vpop.f32.mrf.mxu0
  %v211 = vadd.f32 0.0, %v210
  %212 = vmatmul.f32.gmra.mxu0 %v97
  %v213 = vpop.f32.mrf.mxu0
  %v214 = vadd.f32 0.0, %v213
  %215 = vmatmul.f32.gmra.mxu0 %v100
  %v216 = vpop.f32.mrf.mxu0
  %v217 = vadd.f32 0.0, %v216
  %218 = vmatmul.f32.gmra.mxu0 %v103
  %v219 = vpop.f32.mrf.mxu0
  %v220 = vadd.f32 0.0, %v219
  %221 = vmatmul.f32.gmra.mxu0 %v106
  %v222 = vpop.f32.mrf.mxu0
  %v223 = vadd.f32 0.0, %v222
  %224 = vmatmul.f32.gmra.mxu0 %v109
  %v225 = vpop.f32.mrf.mxu0
  %v226 = vadd.f32 0.0, %v225
  %227 = vmatmul.f32.gmra.mxu0 %v112
  %v228 = vpop.f32.mrf.mxu0
  %v229 = vadd.f32 0.0, %v228
  %230 = vmatmul.f32.gmra.mxu0 %v115
  %v231 = vpop.f32.mrf.mxu0
  %v232 = vadd.f32 0.0, %v231
  %233 = vmatmul.f32.gmra.mxu0 %v118
  %v234 = vpop.f32.mrf.mxu0
  %v235 = vadd.f32 0.0, %v234
  %236 = vmatmul.f32.gmra.mxu0 %v121
  %v237 = vpop.f32.mrf.mxu0
  %v238 = vadd.f32 0.0, %v237
  %239 = vmatmul.f32.gmra.mxu0 %v124
  %v240 = vpop.f32.mrf.mxu0
  %v241 = vadd.f32 0.0, %v240
  %242 = vmatmul.f32.gmra.mxu0 %v127
  %v243 = vpop.f32.mrf.mxu0
  %v244 = vadd.f32 0.0, %v243
  %245 = vmatmul.f32.gmra.mxu0 %v130
  %v246 = vpop.f32.mrf.mxu0
  %v247 = vadd.f32 0.0, %v246
  %248 = vmatmul.f32.gmra.mxu0 %v133
  %v249 = vpop.f32.mrf.mxu0
  %v250 = vadd.f32 0.0, %v249
  %251 = vmatmul.f32.gmra.mxu0 %v136
  %v252 = vpop.f32.mrf.mxu0
  %v253 = vadd.f32 0.0, %v252
  %254 = vmatmul.f32.gmra.mxu0 %v139
  %v255 = vpop.f32.mrf.mxu0
  %v256 = vadd.f32 0.0, %v255
  %257 = vmatmul.f32.gmra.mxu0 %v142
  %v258 = vpop.f32.mrf.mxu0
  %v259 = vadd.f32 0.0, %v258
  %260 = vmatmul.f32.gmra.mxu0 %v145
  %v261 = vpop.f32.mrf.mxu0
  %v262 = vadd.f32 0.0, %v261
  %263 = vmatmul.f32.gmra.mxu0 %v148
  %v264 = vpop.f32.mrf.mxu0
  %v265 = vadd.f32 0.0, %v264
  %266 = vmatmul.f32.gmra.mxu0 %v151
  %v267 = vpop.f32.mrf.mxu0
  %v268 = vadd.f32 0.0, %v267
  %269 = vmatmul.f32.gmra.mxu0 %v154
  %v270 = vpop.f32.mrf.mxu0
  %v271 = vadd.f32 0.0, %v270
  %272 = vmatmul.f32.gmra.mxu0 %v157
  %v273 = vpop.f32.mrf.mxu0
  %v274 = vadd.f32 0.0, %v273
  %275 = vmatmul.f32.gmra.mxu0 %v160
  %v276 = vpop.f32.mrf.mxu0
  %v277 = vadd.f32 0.0, %v276
  %278 = vmatmul.f32.gmra.mxu0 %v163
  %v279 = vpop.f32.mrf.mxu0
  %v280 = vadd.f32 0.0, %v279
  %281 = vmatmul.f32.gmra.mxu0 %v166
  %v282 = vpop.f32.mrf.mxu0
  %v283 = vadd.f32 0.0, %v282
  %284 = vmatmul.f32.gmra.mxu0 %v169
  %v285 = vpop.f32.mrf.mxu0
  %v286 = vadd.f32 0.0, %v285
  %287 = vmatmul.f32.gmra.mxu0 %v172
  %v288 = vpop.f32.mrf.mxu0
  %v289 = vadd.f32 0.0, %v288
  %290 = vmatmul.f32.gmra.mxu0 %v175
  %v291 = vpop.f32.mrf.mxu0
  %v292 = vadd.f32 0.0, %v291
  %293 = vmatmul.f32.gmra.mxu0 %v178
  %v294 = vpop.f32.mrf.mxu0
  %v295 = vadd.f32 0.0, %v294
  %296 = vmatmul.f32.gmra.mxu0 %v181
  %v297 = vpop.f32.mrf.mxu0
  %v298 = vadd.f32 0.0, %v297
  %299 = vmatmul.f32.gmra.mxu0 %v184
  %v300 = vpop.f32.mrf.mxu0
  %v301 = vadd.f32 0.0, %v300
  %302 = vmatmul.f32.gmra.mxu0 %v187
  %v303 = vpop.f32.mrf.mxu0
  %v304 = vadd.f32 0.0, %v303
  %305 = vdwg.mxu0
  %v307 = vsel %vm92, %v28, 0
  %v310 = vsel %vm92, %v29, 0
  %v313 = vsel %vm92, %v30, 0
  %v316 = vsel %vm92, %v31, 0
  %v319 = vsel %vm92, %v32, 0
  %v322 = vsel %vm92, %v33, 0
  %v325 = vsel %vm92, %v34, 0
  %v328 = vsel %vm92, %v35, 0
  %v331 = vsel %vm92, %v36, 0
  %v334 = vsel %vm92, %v37, 0
  %v337 = vsel %vm92, %v38, 0
  %v340 = vsel %vm92, %v39, 0
  %v343 = vsel %vm92, %v40, 0
  %v346 = vsel %vm92, %v41, 0
  %v349 = vsel %vm92, %v42, 0
  %v352 = vsel %vm92, %v43, 0
  %v355 = vsel %vm92, %v44, 0
  %v358 = vsel %vm92, %v45, 0
  %v361 = vsel %vm92, %v46, 0
  %v364 = vsel %vm92, %v47, 0
  %v367 = vsel %vm92, %v48, 0
  %v370 = vsel %vm92, %v49, 0
  %v373 = vsel %vm92, %v50, 0
  %v376 = vsel %vm92, %v51, 0
  %v379 = vsel %vm92, %v52, 0
  %v382 = vsel %vm92, %v53, 0
  %v385 = vsel %vm92, %v54, 0
  %v388 = vsel %vm92, %v55, 0
  %v391 = vsel %vm92, %v56, 0
  %v394 = vsel %vm92, %v57, 0
  %v397 = vsel %vm92, %v58, 0
  %v400 = vsel %vm92, %v59, 0
  %v403 = vsel %vm189, %v11, 0
  %405 = vmatpush.msra.mxu0 0.0
  %406 = vmatpush.msra.mxu0 0.0
  %407 = vmatpush.msra.mxu0 0.0
  %408 = vmatpush.msra.mxu0 0.0
  %409 = vmatpush.msra.mxu0 0.0
  %410 = vmatpush.msra.mxu0 0.0
  %411 = vmatpush.msra.mxu0 0.0
  %412 = vmatpush.msra.mxu0 0.0
  %413 = vmatpush.msra.mxu0 0.0
  %414 = vmatpush.msra.mxu0 0.0
  %415 = vmatpush.msra.mxu0 0.0
  %416 = vmatpush.msra.mxu0 0.0
  %417 = vmatpush.msra.mxu0 0.0
  %418 = vmatpush.msra.mxu0 0.0
  %419 = vmatpush.msra.mxu0 0.0
  %420 = vmatpush.msra.mxu0 %v403
  %421 = vmatmul.f32.gmra.mxu0 %v307
  %v422 = vpop.f32.mrf.mxu0
  %v423 = vadd.f32 %v211, %v422
  %424 = vmatmul.f32.gmra.mxu0 %v310
  %v425 = vpop.f32.mrf.mxu0
  %v426 = vadd.f32 %v214, %v425
  %427 = vmatmul.f32.gmra.mxu0 %v313
  %v428 = vpop.f32.mrf.mxu0
  %v429 = vadd.f32 %v217, %v428
  %430 = vmatmul.f32.gmra.mxu0 %v316
  %v431 = vpop.f32.mrf.mxu0
  %v432 = vadd.f32 %v220, %v431
  %433 = vmatmul.f32.gmra.mxu0 %v319
  %v434 = vpop.f32.mrf.mxu0
  %v435 = vadd.f32 %v223, %v434
  %436 = vmatmul.f32.gmra.mxu0 %v322
  %v437 = vpop.f32.mrf.mxu0
  %v438 = vadd.f32 %v226, %v437
  %439 = vmatmul.f32.gmra.mxu0 %v325
  %v440 = vpop.f32.mrf.mxu0
  %v441 = vadd.f32 %v229, %v440
  %442 = vmatmul.f32.gmra.mxu0 %v328
  %v443 = vpop.f32.mrf.mxu0
  %v444 = vadd.f32 %v232, %v443
  %445 = vmatmul.f32.gmra.mxu0 %v331
  %v446 = vpop.f32.mrf.mxu0
  %v447 = vadd.f32 %v235, %v446
  %448 = vmatmul.f32.gmra.mxu0 %v334
  %v449 = vpop.f32.mrf.mxu0
  %v450 = vadd.f32 %v238, %v449
  %451 = vmatmul.f32.gmra.mxu0 %v337
  %v452 = vpop.f32.mrf.mxu0
  %v453 = vadd.f32 %v241, %v452
  %454 = vmatmul.f32.gmra.mxu0 %v340
  %v455 = vpop.f32.mrf.mxu0
  %v456 = vadd.f32 %v244, %v455
  %457 = vmatmul.f32.gmra.mxu0 %v343
  %v458 = vpop.f32.mrf.mxu0
  %v459 = vadd.f32 %v247, %v458
  %460 = vmatmul.f32.gmra.mxu0 %v346
  %v461 = vpop.f32.mrf.mxu0
  %v462 = vadd.f32 %v250, %v461
  %463 = vmatmul.f32.gmra.mxu0 %v349
  %v464 = vpop.f32.mrf.mxu0
  %v465 = vadd.f32 %v253, %v464
  %466 = vmatmul.f32.gmra.mxu0 %v352
  %v467 = vpop.f32.mrf.mxu0
  %v468 = vadd.f32 %v256, %v467
  %469 = vmatmul.f32.gmra.mxu0 %v355
  %v470 = vpop.f32.mrf.mxu0
  %v471 = vadd.f32 %v259, %v470
  %472 = vmatmul.f32.gmra.mxu0 %v358
  %v473 = vpop.f32.mrf.mxu0
  %v474 = vadd.f32 %v262, %v473
  %475 = vmatmul.f32.gmra.mxu0 %v361
  %v476 = vpop.f32.mrf.mxu0
  %v477 = vadd.f32 %v265, %v476
  %478 = vmatmul.f32.gmra.mxu0 %v364
  %v479 = vpop.f32.mrf.mxu0
  %v480 = vadd.f32 %v268, %v479
  %481 = vmatmul.f32.gmra.mxu0 %v367
  %v482 = vpop.f32.mrf.mxu0
  %v483 = vadd.f32 %v271, %v482
  %484 = vmatmul.f32.gmra.mxu0 %v370
  %v485 = vpop.f32.mrf.mxu0
  %v486 = vadd.f32 %v274, %v485
  %487 = vmatmul.f32.gmra.mxu0 %v373
  %v488 = vpop.f32.mrf.mxu0
  %v489 = vadd.f32 %v277, %v488
  %490 = vmatmul.f32.gmra.mxu0 %v376
  %v491 = vpop.f32.mrf.mxu0
  %v492 = vadd.f32 %v280, %v491
  %493 = vmatmul.f32.gmra.mxu0 %v379
  %v494 = vpop.f32.mrf.mxu0
  %v495 = vadd.f32 %v283, %v494
  %496 = vmatmul.f32.gmra.mxu0 %v382
  %v497 = vpop.f32.mrf.mxu0
  %v498 = vadd.f32 %v286, %v497
  %499 = vmatmul.f32.gmra.mxu0 %v385
  %v500 = vpop.f32.mrf.mxu0
  %v501 = vadd.f32 %v289, %v500
  %502 = vmatmul.f32.gmra.mxu0 %v388
  %v503 = vpop.f32.mrf.mxu0
  %v504 = vadd.f32 %v292, %v503
  %505 = vmatmul.f32.gmra.mxu0 %v391
  %v506 = vpop.f32.mrf.mxu0
  %v507 = vadd.f32 %v295, %v506
  %508 = vmatmul.f32.gmra.mxu0 %v394
  %v509 = vpop.f32.mrf.mxu0
  %v510 = vadd.f32 %v298, %v509
  %511 = vmatmul.f32.gmra.mxu0 %v397
  %v512 = vpop.f32.mrf.mxu0
  %v513 = vadd.f32 %v301, %v512
  %514 = vmatmul.f32.gmra.mxu0 %v400
  %v515 = vpop.f32.mrf.mxu0
  %v516 = vadd.f32 %v304, %v515
  %517 = vdwg.mxu0
  %v518 = vld [vmem:[%s0 + $0x2] sm:$0xff]
  %v519 = vld [vmem:[%s0 + $0xa] sm:$0xff]
  %v520 = vld [vmem:[%s0 + $0x1a] sm:$0xff]
  %v521 = vld [vmem:[%s0 + $0x22] sm:$0xff]
  %v522 = vld [vmem:[%s0 + $0x32] sm:$0xff]
  %v523 = vld [vmem:[%s0 + $0x3a] sm:$0xff]
  %v524 = vld [vmem:[%s0 + $0x4a] sm:$0xff]
  %v525 = vld [vmem:[%s0 + $0x52] sm:$0xff]
  %v526 = vld [vmem:[%s0 + $0x62] sm:$0xff]
  %v527 = vld [vmem:[%s0 + $0x6a] sm:$0xff]
  %v528 = vld [vmem:[%s0 + $0x7a] sm:$0xff]
  %v529 = vld [vmem:[%s0 + $0x82] sm:$0xff]
  %v530 = vld [vmem:[%s0 + $0x92] sm:$0xff]
  %v531 = vld [vmem:[%s0 + $0x9a] sm:$0xff]
  %v532 = vld [vmem:[%s0 + $0xaa] sm:$0xff]
  %v533 = vld [vmem:[%s0 + $0xb2] sm:$0xff]
  %v534 = vld [vmem:[%s0 + $0xc2] sm:$0xff]
  %v535 = vld [vmem:[%s0 + $0xca] sm:$0xff]
  %v536 = vld [vmem:[%s0 + $0xda] sm:$0xff]
  %v537 = vld [vmem:[%s0 + $0xe2] sm:$0xff]
  %v538 = vld [vmem:[%s0 + $0xf2] sm:$0xff]
  %v539 = vld [vmem:[%s0 + $0xfa] sm:$0xff]
  %v540 = vld [vmem:[%s0 + $0x10a] sm:$0xff]
  %v541 = vld [vmem:[%s0 + $0x112] sm:$0xff]
  %v542 = vld [vmem:[%s0 + $0x122] sm:$0xff]
  %v543 = vld [vmem:[%s0 + $0x12a] sm:$0xff]
  %v544 = vld [vmem:[%s0 + $0x13a] sm:$0xff]
  %v545 = vld [vmem:[%s0 + $0x142] sm:$0xff]
  %v546 = vld [vmem:[%s0 + $0x152] sm:$0xff]
  %v547 = vld [vmem:[%s0 + $0x15a] sm:$0xff]
  %v548 = vld [vmem:[%s0 + $0x16a] sm:$0xff]
  %v549 = vld [vmem:[%s0 + $0x172] sm:$0xff]
  %v551 = vsel %vm92, %v518, 0
  %v554 = vsel %vm92, %v519, 0
  %v557 = vsel %vm92, %v520, 0
  %v560 = vsel %vm92, %v521, 0
  %v563 = vsel %vm92, %v522, 0
  %v566 = vsel %vm92, %v523, 0
  %v569 = vsel %vm92, %v524, 0
  %v572 = vsel %vm92, %v525, 0
  %v575 = vsel %vm92, %v526, 0
  %v578 = vsel %vm92, %v527, 0
  %v581 = vsel %vm92, %v528, 0
  %v584 = vsel %vm92, %v529, 0
  %v587 = vsel %vm92, %v530, 0
  %v590 = vsel %vm92, %v531, 0
  %v593 = vsel %vm92, %v532, 0
  %v596 = vsel %vm92, %v533, 0
  %v599 = vsel %vm92, %v534, 0
  %v602 = vsel %vm92, %v535, 0
  %v605 = vsel %vm92, %v536, 0
  %v608 = vsel %vm92, %v537, 0
  %v611 = vsel %vm92, %v538, 0
  %v614 = vsel %vm92, %v539, 0
  %v617 = vsel %vm92, %v540, 0
  %v620 = vsel %vm92, %v541, 0
  %v623 = vsel %vm92, %v542, 0
  %v626 = vsel %vm92, %v543, 0
  %v629 = vsel %vm92, %v544, 0
  %v632 = vsel %vm92, %v545, 0
  %v635 = vsel %vm92, %v546, 0
  %v638 = vsel %vm92, %v547, 0
  %v641 = vsel %vm92, %v548, 0
  %v644 = vsel %vm92, %v549, 0
  %v647 = vsel %vm189, %v15, 0
  %649 = vmatpush.msra.mxu0 0.0
  %650 = vmatpush.msra.mxu0 0.0
  %651 = vmatpush.msra.mxu0 0.0
  %652 = vmatpush.msra.mxu0 0.0
  %653 = vmatpush.msra.mxu0 0.0
  %654 = vmatpush.msra.mxu0 0.0
  %655 = vmatpush.msra.mxu0 0.0
  %656 = vmatpush.msra.mxu0 0.0
  %657 = vmatpush.msra.mxu0 0.0
  %658 = vmatpush.msra.mxu0 0.0
  %659 = vmatpush.msra.mxu0 0.0
  %660 = vmatpush.msra.mxu0 0.0
  %661 = vmatpush.msra.mxu0 0.0
  %662 = vmatpush.msra.mxu0 0.0
  %663 = vmatpush.msra.mxu0 0.0
  %664 = vmatpush.msra.mxu0 %v647
  %665 = vmatmul.f32.gmra.mxu0 %v551
  %v666 = vpop.f32.mrf.mxu0
  %v667 = vadd.f32 0.0, %v666
  %668 = vmatmul.f32.gmra.mxu0 %v554
  %v669 = vpop.f32.mrf.mxu0
  %v670 = vadd.f32 0.0, %v669
  %671 = vmatmul.f32.gmra.mxu0 %v557
  %v672 = vpop.f32.mrf.mxu0
  %v673 = vadd.f32 0.0, %v672
  %674 = vmatmul.f32.gmra.mxu0 %v560
  %v675 = vpop.f32.mrf.mxu0
  %v676 = vadd.f32 0.0, %v675
  %677 = vmatmul.f32.gmra.mxu0 %v563
  %v678 = vpop.f32.mrf.mxu0
  %v679 = vadd.f32 0.0, %v678
  %680 = vmatmul.f32.gmra.mxu0 %v566
  %v681 = vpop.f32.mrf.mxu0
  %v682 = vadd.f32 0.0, %v681
  %683 = vmatmul.f32.gmra.mxu0 %v569
  %v684 = vpop.f32.mrf.mxu0
  %v685 = vadd.f32 0.0, %v684
  %686 = vmatmul.f32.gmra.mxu0 %v572
  %v687 = vpop.f32.mrf.mxu0
  %v688 = vadd.f32 0.0, %v687
  %689 = vmatmul.f32.gmra.mxu0 %v575
  %v690 = vpop.f32.mrf.mxu0
  %v691 = vadd.f32 0.0, %v690
  %692 = vmatmul.f32.gmra.mxu0 %v578
  %v693 = vpop.f32.mrf.mxu0
  %v694 = vadd.f32 0.0, %v693
  %695 = vmatmul.f32.gmra.mxu0 %v581
  %v696 = vpop.f32.mrf.mxu0
  %v697 = vadd.f32 0.0, %v696
  %698 = vmatmul.f32.gmra.mxu0 %v584
  %v699 = vpop.f32.mrf.mxu0
  %v700 = vadd.f32 0.0, %v699
  %701 = vmatmul.f32.gmra.mxu0 %v587
  %v702 = vpop.f32.mrf.mxu0
  %v703 = vadd.f32 0.0, %v702
  %704 = vmatmul.f32.gmra.mxu0 %v590
  %v705 = vpop.f32.mrf.mxu0
  %v706 = vadd.f32 0.0, %v705
  %707 = vmatmul.f32.gmra.mxu0 %v593
  %v708 = vpop.f32.mrf.mxu0
  %v709 = vadd.f32 0.0, %v708
  %710 = vmatmul.f32.gmra.mxu0 %v596
  %v711 = vpop.f32.mrf.mxu0
  %v712 = vadd.f32 0.0, %v711
  %713 = vmatmul.f32.gmra.mxu0 %v599
  %v714 = vpop.f32.mrf.mxu0
  %v715 = vadd.f32 0.0, %v714
  %716 = vmatmul.f32.gmra.mxu0 %v602
  %v717 = vpop.f32.mrf.mxu0
  %v718 = vadd.f32 0.0, %v717
  %719 = vmatmul.f32.gmra.mxu0 %v605
  %v720 = vpop.f32.mrf.mxu0
  %v721 = vadd.f32 0.0, %v720
  %722 = vmatmul.f32.gmra.mxu0 %v608
  %v723 = vpop.f32.mrf.mxu0
  %v724 = vadd.f32 0.0, %v723
  %725 = vmatmul.f32.gmra.mxu0 %v611
  %v726 = vpop.f32.mrf.mxu0
  %v727 = vadd.f32 0.0, %v726
  %728 = vmatmul.f32.gmra.mxu0 %v614
  %v729 = vpop.f32.mrf.mxu0
  %v730 = vadd.f32 0.0, %v729
  %731 = vmatmul.f32.gmra.mxu0 %v617
  %v732 = vpop.f32.mrf.mxu0
  %v733 = vadd.f32 0.0, %v732
  %734 = vmatmul.f32.gmra.mxu0 %v620
  %v735 = vpop.f32.mrf.mxu0
  %v736 = vadd.f32 0.0, %v735
  %737 = vmatmul.f32.gmra.mxu0 %v623
  %v738 = vpop.f32.mrf.mxu0
  %v739 = vadd.f32 0.0, %v738
  %740 = vmatmul.f32.gmra.mxu0 %v626
  %v741 = vpop.f32.mrf.mxu0
  %v742 = vadd.f32 0.0, %v741
  %743 = vmatmul.f32.gmra.mxu0 %v629
  %v744 = vpop.f32.mrf.mxu0
  %v745 = vadd.f32 0.0, %v744
  %746 = vmatmul.f32.gmra.mxu0 %v632
  %v747 = vpop.f32.mrf.mxu0
  %v748 = vadd.f32 0.0, %v747
  %749 = vmatmul.f32.gmra.mxu0 %v635
  %v750 = vpop.f32.mrf.mxu0
  %v751 = vadd.f32 0.0, %v750
  %752 = vmatmul.f32.gmra.mxu0 %v638
  %v753 = vpop.f32.mrf.mxu0
  %v754 = vadd.f32 0.0, %v753
  %755 = vmatmul.f32.gmra.mxu0 %v641
  %v756 = vpop.f32.mrf.mxu0
  %v757 = vadd.f32 0.0, %v756
  %758 = vmatmul.f32.gmra.mxu0 %v644
  %v759 = vpop.f32.mrf.mxu0
  %v760 = vadd.f32 0.0, %v759
  %761 = vdwg.mxu0
  %v762 = vadd.f32 %v423, %v667
  %v763 = vadd.f32 %v426, %v670
  %v764 = vadd.f32 %v429, %v673
  %v765 = vadd.f32 %v432, %v676
  %v766 = vadd.f32 %v435, %v679
  %v767 = vadd.f32 %v438, %v682
  %v768 = vadd.f32 %v441, %v685
  %v769 = vadd.f32 %v444, %v688
  %v770 = vadd.f32 %v447, %v691
  %v771 = vadd.f32 %v450, %v694
  %v772 = vadd.f32 %v453, %v697
  %v773 = vadd.f32 %v456, %v700
  %v774 = vadd.f32 %v459, %v703
  %v775 = vadd.f32 %v462, %v706
  %v776 = vadd.f32 %v465, %v709
  %v777 = vadd.f32 %v468, %v712
  %v778 = vadd.f32 %v471, %v715
  %v779 = vadd.f32 %v474, %v718
  %v780 = vadd.f32 %v477, %v721
  %v781 = vadd.f32 %v480, %v724
  %v782 = vadd.f32 %v483, %v727
  %v783 = vadd.f32 %v486, %v730
  %v784 = vadd.f32 %v489, %v733
  %v785 = vadd.f32 %v492, %v736
  %v786 = vadd.f32 %v495, %v739
  %v787 = vadd.f32 %v498, %v742
  %v788 = vadd.f32 %v501, %v745
  %v789 = vadd.f32 %v504, %v748
  %v790 = vadd.f32 %v507, %v751
  %v791 = vadd.f32 %v510, %v754
  %v792 = vadd.f32 %v513, %v757
  %v793 = vadd.f32 %v516, %v760
  %s794 = scalar_lea.vmem %s0, 24
  %v795 = vld [vmem:[%s794] sm:$0xff]
  %v796 = vld [vmem:[%s794 + $0x8] sm:$0xff]
  %v797 = vld [vmem:[%s794 + $0x18] sm:$0xff]
  %v798 = vld [vmem:[%s794 + $0x20] sm:$0xff]
  %v799 = vld [vmem:[%s794 + $0x30] sm:$0xff]
  %v800 = vld [vmem:[%s794 + $0x38] sm:$0xff]
  %v801 = vld [vmem:[%s794 + $0x48] sm:$0xff]
  %v802 = vld [vmem:[%s794 + $0x50] sm:$0xff]
  %v803 = vld [vmem:[%s794 + $0x60] sm:$0xff]
  %v804 = vld [vmem:[%s794 + $0x68] sm:$0xff]
  %v805 = vld [vmem:[%s794 + $0x78] sm:$0xff]
  %v806 = vld [vmem:[%s794 + $0x80] sm:$0xff]
  %v807 = vld [vmem:[%s794 + $0x90] sm:$0xff]
  %v808 = vld [vmem:[%s794 + $0x98] sm:$0xff]
  %v809 = vld [vmem:[%s794 + $0xa8] sm:$0xff]
  %v810 = vld [vmem:[%s794 + $0xb0] sm:$0xff]
  %v811 = vld [vmem:[%s794 + $0xc0] sm:$0xff]
  %v812 = vld [vmem:[%s794 + $0xc8] sm:$0xff]
  %v813 = vld [vmem:[%s794 + $0xd8] sm:$0xff]
  %v814 = vld [vmem:[%s794 + $0xe0] sm:$0xff]
  %v815 = vld [vmem:[%s794 + $0xf0] sm:$0xff]
  %v816 = vld [vmem:[%s794 + $0xf8] sm:$0xff]
  %v817 = vld [vmem:[%s794 + $0x108] sm:$0xff]
  %v818 = vld [vmem:[%s794 + $0x110] sm:$0xff]
  %v819 = vld [vmem:[%s794 + $0x120] sm:$0xff]
  %v820 = vld [vmem:[%s794 + $0x128] sm:$0xff]
  %v821 = vld [vmem:[%s794 + $0x138] sm:$0xff]
  %v822 = vld [vmem:[%s794 + $0x140] sm:$0xff]
  %v823 = vld [vmem:[%s794 + $0x150] sm:$0xff]
  %v824 = vld [vmem:[%s794 + $0x158] sm:$0xff]
  %v825 = vld [vmem:[%s794 + $0x168] sm:$0xff]
  %v826 = vld [vmem:[%s794 + $0x170] sm:$0xff]
  %v828 = vsel %vm92, %v795, 0
  %v831 = vsel %vm92, %v796, 0
  %v834 = vsel %vm92, %v797, 0
  %v837 = vsel %vm92, %v798, 0
  %v840 = vsel %vm92, %v799, 0
  %v843 = vsel %vm92, %v800, 0
  %v846 = vsel %vm92, %v801, 0
  %v849 = vsel %vm92, %v802, 0
  %v852 = vsel %vm92, %v803, 0
  %v855 = vsel %vm92, %v804, 0
  %v858 = vsel %vm92, %v805, 0
  %v861 = vsel %vm92, %v806, 0
  %v864 = vsel %vm92, %v807, 0
  %v867 = vsel %vm92, %v808, 0
  %v870 = vsel %vm92, %v809, 0
  %v873 = vsel %vm92, %v810, 0
  %v876 = vsel %vm92, %v811, 0
  %v879 = vsel %vm92, %v812, 0
  %v882 = vsel %vm92, %v813, 0
  %v885 = vsel %vm92, %v814, 0
  %v888 = vsel %vm92, %v815, 0
  %v891 = vsel %vm92, %v816, 0
  %v894 = vsel %vm92, %v817, 0
  %v897 = vsel %vm92, %v818, 0
  %v900 = vsel %vm92, %v819, 0
  %v903 = vsel %vm92, %v820, 0
  %v906 = vsel %vm92, %v821, 0
  %v909 = vsel %vm92, %v822, 0
  %v912 = vsel %vm92, %v823, 0
  %v915 = vsel %vm92, %v824, 0
  %v918 = vsel %vm92, %v825, 0
  %v921 = vsel %vm92, %v826, 0
  %v924 = vsel %vm189, %v17, 0
  %926 = vmatpush.msra.mxu0 0.0
  %927 = vmatpush.msra.mxu0 0.0
  %928 = vmatpush.msra.mxu0 0.0
  %929 = vmatpush.msra.mxu0 0.0
  %930 = vmatpush.msra.mxu0 0.0
  %931 = vmatpush.msra.mxu0 0.0
  %932 = vmatpush.msra.mxu0 0.0
  %933 = vmatpush.msra.mxu0 0.0
  %934 = vmatpush.msra.mxu0 0.0
  %935 = vmatpush.msra.mxu0 0.0
  %936 = vmatpush.msra.mxu0 0.0
  %937 = vmatpush.msra.mxu0 0.0
  %938 = vmatpush.msra.mxu0 0.0
  %939 = vmatpush.msra.mxu0 0.0
  %940 = vmatpush.msra.mxu0 0.0
  %941 = vmatpush.msra.mxu0 %v924
  %942 = vmatmul.f32.gmra.mxu0 %v828
  %v943 = vpop.f32.mrf.mxu0
  %v944 = vadd.f32 0.0, %v943
  %945 = vmatmul.f32.gmra.mxu0 %v831
  %v946 = vpop.f32.mrf.mxu0
  %v947 = vadd.f32 0.0, %v946
  %948 = vmatmul.f32.gmra.mxu0 %v834
  %v949 = vpop.f32.mrf.mxu0
  %v950 = vadd.f32 0.0, %v949
  %951 = vmatmul.f32.gmra.mxu0 %v837
  %v952 = vpop.f32.mrf.mxu0
  %v953 = vadd.f32 0.0, %v952
  %954 = vmatmul.f32.gmra.mxu0 %v840
  %v955 = vpop.f32.mrf.mxu0
  %v956 = vadd.f32 0.0, %v955
  %957 = vmatmul.f32.gmra.mxu0 %v843
  %v958 = vpop.f32.mrf.mxu0
  %v959 = vadd.f32 0.0, %v958
  %960 = vmatmul.f32.gmra.mxu0 %v846
  %v961 = vpop.f32.mrf.mxu0
  %v962 = vadd.f32 0.0, %v961
  %963 = vmatmul.f32.gmra.mxu0 %v849
  %v964 = vpop.f32.mrf.mxu0
  %v965 = vadd.f32 0.0, %v964
  %966 = vmatmul.f32.gmra.mxu0 %v852
  %v967 = vpop.f32.mrf.mxu0
  %v968 = vadd.f32 0.0, %v967
  %969 = vmatmul.f32.gmra.mxu0 %v855
  %v970 = vpop.f32.mrf.mxu0
  %v971 = vadd.f32 0.0, %v970
  %972 = vmatmul.f32.gmra.mxu0 %v858
  %v973 = vpop.f32.mrf.mxu0
  %v974 = vadd.f32 0.0, %v973
  %975 = vmatmul.f32.gmra.mxu0 %v861
  %v976 = vpop.f32.mrf.mxu0
  %v977 = vadd.f32 0.0, %v976
  %978 = vmatmul.f32.gmra.mxu0 %v864
  %v979 = vpop.f32.mrf.mxu0
  %v980 = vadd.f32 0.0, %v979
  %981 = vmatmul.f32.gmra.mxu0 %v867
  %v982 = vpop.f32.mrf.mxu0
  %v983 = vadd.f32 0.0, %v982
  %984 = vmatmul.f32.gmra.mxu0 %v870
  %v985 = vpop.f32.mrf.mxu0
  %v986 = vadd.f32 0.0, %v985
  %987 = vmatmul.f32.gmra.mxu0 %v873
  %v988 = vpop.f32.mrf.mxu0
  %v989 = vadd.f32 0.0, %v988
  %990 = vmatmul.f32.gmra.mxu0 %v876
  %v991 = vpop.f32.mrf.mxu0
  %v992 = vadd.f32 0.0, %v991
  %993 = vmatmul.f32.gmra.mxu0 %v879
  %v994 = vpop.f32.mrf.mxu0
  %v995 = vadd.f32 0.0, %v994
  %996 = vmatmul.f32.gmra.mxu0 %v882
  %v997 = vpop.f32.mrf.mxu0
  %v998 = vadd.f32 0.0, %v997
  %999 = vmatmul.f32.gmra.mxu0 %v885
  %v1000 = vpop.f32.mrf.mxu0
  %v1001 = vadd.f32 0.0, %v1000
  %1002 = vmatmul.f32.gmra.mxu0 %v888
  %v1003 = vpop.f32.mrf.mxu0
  %v1004 = vadd.f32 0.0, %v1003
  %1005 = vmatmul.f32.gmra.mxu0 %v891
  %v1006 = vpop.f32.mrf.mxu0
  %v1007 = vadd.f32 0.0, %v1006
  %1008 = vmatmul.f32.gmra.mxu0 %v894
  %v1009 = vpop.f32.mrf.mxu0
  %v1010 = vadd.f32 0.0, %v1009
  %1011 = vmatmul.f32.gmra.mxu0 %v897
  %v1012 = vpop.f32.mrf.mxu0
  %v1013 = vadd.f32 0.0, %v1012
  %1014 = vmatmul.f32.gmra.mxu0 %v900
  %v1015 = vpop.f32.mrf.mxu0
  %v1016 = vadd.f32 0.0, %v1015
  %1017 = vmatmul.f32.gmra.mxu0 %v903
  %v1018 = vpop.f32.mrf.mxu0
  %v1019 = vadd.f32 0.0, %v1018
  %1020 = vmatmul.f32.gmra.mxu0 %v906
  %v1021 = vpop.f32.mrf.mxu0
  %v1022 = vadd.f32 0.0, %v1021
  %1023 = vmatmul.f32.gmra.mxu0 %v909
  %v1024 = vpop.f32.mrf.mxu0
  %v1025 = vadd.f32 0.0, %v1024
  %1026 = vmatmul.f32.gmra.mxu0 %v912
  %v1027 = vpop.f32.mrf.mxu0
  %v1028 = vadd.f32 0.0, %v1027
  %1029 = vmatmul.f32.gmra.mxu0 %v915
  %v1030 = vpop.f32.mrf.mxu0
  %v1031 = vadd.f32 0.0, %v1030
  %1032 = vmatmul.f32.gmra.mxu0 %v918
  %v1033 = vpop.f32.mrf.mxu0
  %v1034 = vadd.f32 0.0, %v1033
  %1035 = vmatmul.f32.gmra.mxu0 %v921
  %v1036 = vpop.f32.mrf.mxu0
  %v1037 = vadd.f32 0.0, %v1036
  %1038 = vdwg.mxu0
  %v1039 = vadd.f32 %v762, %v944
  %v1040 = vadd.f32 %v763, %v947
  %v1041 = vadd.f32 %v764, %v950
  %v1042 = vadd.f32 %v765, %v953
  %v1043 = vadd.f32 %v766, %v956
  %v1044 = vadd.f32 %v767, %v959
  %v1045 = vadd.f32 %v768, %v962
  %v1046 = vadd.f32 %v769, %v965
  %v1047 = vadd.f32 %v770, %v968
  %v1048 = vadd.f32 %v771, %v971
  %v1049 = vadd.f32 %v772, %v974
  %v1050 = vadd.f32 %v773, %v977
  %v1051 = vadd.f32 %v774, %v980
  %v1052 = vadd.f32 %v775, %v983
  %v1053 = vadd.f32 %v776, %v986
  %v1054 = vadd.f32 %v777, %v989
  %v1055 = vadd.f32 %v778, %v992
  %v1056 = vadd.f32 %v779, %v995
  %v1057 = vadd.f32 %v780, %v998
  %v1058 = vadd.f32 %v781, %v1001
  %v1059 = vadd.f32 %v782, %v1004
  %v1060 = vadd.f32 %v783, %v1007
  %v1061 = vadd.f32 %v784, %v1010
  %v1062 = vadd.f32 %v785, %v1013
  %v1063 = vadd.f32 %v786, %v1016
  %v1064 = vadd.f32 %v787, %v1019
  %v1065 = vadd.f32 %v788, %v1022
  %v1066 = vadd.f32 %v789, %v1025
  %v1067 = vadd.f32 %v790, %v1028
  %v1068 = vadd.f32 %v791, %v1031
  %v1069 = vadd.f32 %v792, %v1034
  %v1070 = vadd.f32 %v793, %v1037
  %v1071 = vld [vmem:[%s794 + $0x1] sm:$0xff]
  %v1072 = vld [vmem:[%s794 + $0x9] sm:$0xff]
  %v1073 = vld [vmem:[%s794 + $0x19] sm:$0xff]
  %v1074 = vld [vmem:[%s794 + $0x21] sm:$0xff]
  %v1075 = vld [vmem:[%s794 + $0x31] sm:$0xff]
  %v1076 = vld [vmem:[%s794 + $0x39] sm:$0xff]
  %v1077 = vld [vmem:[%s794 + $0x49] sm:$0xff]
  %v1078 = vld [vmem:[%s794 + $0x51] sm:$0xff]
  %v1079 = vld [vmem:[%s794 + $0x61] sm:$0xff]
  %v1080 = vld [vmem:[%s794 + $0x69] sm:$0xff]
  %v1081 = vld [vmem:[%s794 + $0x79] sm:$0xff]
  %v1082 = vld [vmem:[%s794 + $0x81] sm:$0xff]
  %v1083 = vld [vmem:[%s794 + $0x91] sm:$0xff]
  %v1084 = vld [vmem:[%s794 + $0x99] sm:$0xff]
  %v1085 = vld [vmem:[%s794 + $0xa9] sm:$0xff]
  %v1086 = vld [vmem:[%s794 + $0xb1] sm:$0xff]
  %v1087 = vld [vmem:[%s794 + $0xc1] sm:$0xff]
  %v1088 = vld [vmem:[%s794 + $0xc9] sm:$0xff]
  %v1089 = vld [vmem:[%s794 + $0xd9] sm:$0xff]
  %v1090 = vld [vmem:[%s794 + $0xe1] sm:$0xff]
  %v1091 = vld [vmem:[%s794 + $0xf1] sm:$0xff]
  %v1092 = vld [vmem:[%s794 + $0xf9] sm:$0xff]
  %v1093 = vld [vmem:[%s794 + $0x109] sm:$0xff]
  %v1094 = vld [vmem:[%s794 + $0x111] sm:$0xff]
  %v1095 = vld [vmem:[%s794 + $0x121] sm:$0xff]
  %v1096 = vld [vmem:[%s794 + $0x129] sm:$0xff]
  %v1097 = vld [vmem:[%s794 + $0x139] sm:$0xff]
  %v1098 = vld [vmem:[%s794 + $0x141] sm:$0xff]
  %v1099 = vld [vmem:[%s794 + $0x151] sm:$0xff]
  %v1100 = vld [vmem:[%s794 + $0x159] sm:$0xff]
  %v1101 = vld [vmem:[%s794 + $0x169] sm:$0xff]
  %v1102 = vld [vmem:[%s794 + $0x171] sm:$0xff]
  %v1104 = vsel %vm92, %v1071, 0
  %v1107 = vsel %vm92, %v1072, 0
  %v1110 = vsel %vm92, %v1073, 0
  %v1113 = vsel %vm92, %v1074, 0
  %v1116 = vsel %vm92, %v1075, 0
  %v1119 = vsel %vm92, %v1076, 0
  %v1122 = vsel %vm92, %v1077, 0
  %v1125 = vsel %vm92, %v1078, 0
  %v1128 = vsel %vm92, %v1079, 0
  %v1131 = vsel %vm92, %v1080, 0
  %v1134 = vsel %vm92, %v1081, 0
  %v1137 = vsel %vm92, %v1082, 0
  %v1140 = vsel %vm92, %v1083, 0
  %v1143 = vsel %vm92, %v1084, 0
  %v1146 = vsel %vm92, %v1085, 0
  %v1149 = vsel %vm92, %v1086, 0
  %v1152 = vsel %vm92, %v1087, 0
  %v1155 = vsel %vm92, %v1088, 0
  %v1158 = vsel %vm92, %v1089, 0
  %v1161 = vsel %vm92, %v1090, 0
  %v1164 = vsel %vm92, %v1091, 0
  %v1167 = vsel %vm92, %v1092, 0
  %v1170 = vsel %vm92, %v1093, 0
  %v1173 = vsel %vm92, %v1094, 0
  %v1176 = vsel %vm92, %v1095, 0
  %v1179 = vsel %vm92, %v1096, 0
  %v1182 = vsel %vm92, %v1097, 0
  %v1185 = vsel %vm92, %v1098, 0
  %v1188 = vsel %vm92, %v1099, 0
  %v1191 = vsel %vm92, %v1100, 0
  %v1194 = vsel %vm92, %v1101, 0
  %v1197 = vsel %vm92, %v1102, 0
  %v1200 = vsel %vm189, %v19, 0
  %1202 = vmatpush.msra.mxu0 0.0
  %1203 = vmatpush.msra.mxu0 0.0
  %1204 = vmatpush.msra.mxu0 0.0
  %1205 = vmatpush.msra.mxu0 0.0
  %1206 = vmatpush.msra.mxu0 0.0
  %1207 = vmatpush.msra.mxu0 0.0
  %1208 = vmatpush.msra.mxu0 0.0
  %1209 = vmatpush.msra.mxu0 0.0
  %1210 = vmatpush.msra.mxu0 0.0
  %1211 = vmatpush.msra.mxu0 0.0
  %1212 = vmatpush.msra.mxu0 0.0
  %1213 = vmatpush.msra.mxu0 0.0
  %1214 = vmatpush.msra.mxu0 0.0
  %1215 = vmatpush.msra.mxu0 0.0
  %1216 = vmatpush.msra.mxu0 0.0
  %1217 = vmatpush.msra.mxu0 %v1200
  %1218 = vmatmul.f32.gmra.mxu0 %v1104
  %v1219 = vpop.f32.mrf.mxu0
  %v1220 = vadd.f32 0.0, %v1219
  %1221 = vmatmul.f32.gmra.mxu0 %v1107
  %v1222 = vpop.f32.mrf.mxu0
  %v1223 = vadd.f32 0.0, %v1222
  %1224 = vmatmul.f32.gmra.mxu0 %v1110
  %v1225 = vpop.f32.mrf.mxu0
  %v1226 = vadd.f32 0.0, %v1225
  %1227 = vmatmul.f32.gmra.mxu0 %v1113
  %v1228 = vpop.f32.mrf.mxu0
  %v1229 = vadd.f32 0.0, %v1228
  %1230 = vmatmul.f32.gmra.mxu0 %v1116
  %v1231 = vpop.f32.mrf.mxu0
  %v1232 = vadd.f32 0.0, %v1231
  %1233 = vmatmul.f32.gmra.mxu0 %v1119
  %v1234 = vpop.f32.mrf.mxu0
  %v1235 = vadd.f32 0.0, %v1234
  %1236 = vmatmul.f32.gmra.mxu0 %v1122
  %v1237 = vpop.f32.mrf.mxu0
  %v1238 = vadd.f32 0.0, %v1237
  %1239 = vmatmul.f32.gmra.mxu0 %v1125
  %v1240 = vpop.f32.mrf.mxu0
  %v1241 = vadd.f32 0.0, %v1240
  %1242 = vmatmul.f32.gmra.mxu0 %v1128
  %v1243 = vpop.f32.mrf.mxu0
  %v1244 = vadd.f32 0.0, %v1243
  %1245 = vmatmul.f32.gmra.mxu0 %v1131
  %v1246 = vpop.f32.mrf.mxu0
  %v1247 = vadd.f32 0.0, %v1246
  %1248 = vmatmul.f32.gmra.mxu0 %v1134
  %v1249 = vpop.f32.mrf.mxu0
  %v1250 = vadd.f32 0.0, %v1249
  %1251 = vmatmul.f32.gmra.mxu0 %v1137
  %v1252 = vpop.f32.mrf.mxu0
  %v1253 = vadd.f32 0.0, %v1252
  %1254 = vmatmul.f32.gmra.mxu0 %v1140
  %v1255 = vpop.f32.mrf.mxu0
  %v1256 = vadd.f32 0.0, %v1255
  %1257 = vmatmul.f32.gmra.mxu0 %v1143
  %v1258 = vpop.f32.mrf.mxu0
  %v1259 = vadd.f32 0.0, %v1258
  %1260 = vmatmul.f32.gmra.mxu0 %v1146
  %v1261 = vpop.f32.mrf.mxu0
  %v1262 = vadd.f32 0.0, %v1261
  %1263 = vmatmul.f32.gmra.mxu0 %v1149
  %v1264 = vpop.f32.mrf.mxu0
  %v1265 = vadd.f32 0.0, %v1264
  %1266 = vmatmul.f32.gmra.mxu0 %v1152
  %v1267 = vpop.f32.mrf.mxu0
  %v1268 = vadd.f32 0.0, %v1267
  %1269 = vmatmul.f32.gmra.mxu0 %v1155
  %v1270 = vpop.f32.mrf.mxu0
  %v1271 = vadd.f32 0.0, %v1270
  %1272 = vmatmul.f32.gmra.mxu0 %v1158
  %v1273 = vpop.f32.mrf.mxu0
  %v1274 = vadd.f32 0.0, %v1273
  %1275 = vmatmul.f32.gmra.mxu0 %v1161
  %v1276 = vpop.f32.mrf.mxu0
  %v1277 = vadd.f32 0.0, %v1276
  %1278 = vmatmul.f32.gmra.mxu0 %v1164
  %v1279 = vpop.f32.mrf.mxu0
  %v1280 = vadd.f32 0.0, %v1279
  %1281 = vmatmul.f32.gmra.mxu0 %v1167
  %v1282 = vpop.f32.mrf.mxu0
  %v1283 = vadd.f32 0.0, %v1282
  %1284 = vmatmul.f32.gmra.mxu0 %v1170
  %v1285 = vpop.f32.mrf.mxu0
  %v1286 = vadd.f32 0.0, %v1285
  %1287 = vmatmul.f32.gmra.mxu0 %v1173
  %v1288 = vpop.f32.mrf.mxu0
  %v1289 = vadd.f32 0.0, %v1288
  %1290 = vmatmul.f32.gmra.mxu0 %v1176
  %v1291 = vpop.f32.mrf.mxu0
  %v1292 = vadd.f32 0.0, %v1291
  %1293 = vmatmul.f32.gmra.mxu0 %v1179
  %v1294 = vpop.f32.mrf.mxu0
  %v1295 = vadd.f32 0.0, %v1294
  %1296 = vmatmul.f32.gmra.mxu0 %v1182
  %v1297 = vpop.f32.mrf.mxu0
  %v1298 = vadd.f32 0.0, %v1297
  %1299 = vmatmul.f32.gmra.mxu0 %v1185
  %v1300 = vpop.f32.mrf.mxu0
  %v1301 = vadd.f32 0.0, %v1300
  %1302 = vmatmul.f32.gmra.mxu0 %v1188
  %v1303 = vpop.f32.mrf.mxu0
  %v1304 = vadd.f32 0.0, %v1303
  %1305 = vmatmul.f32.gmra.mxu0 %v1191
  %v1306 = vpop.f32.mrf.mxu0
  %v1307 = vadd.f32 0.0, %v1306
  %1308 = vmatmul.f32.gmra.mxu0 %v1194
  %v1309 = vpop.f32.mrf.mxu0
  %v1310 = vadd.f32 0.0, %v1309
  %1311 = vmatmul.f32.gmra.mxu0 %v1197
  %v1312 = vpop.f32.mrf.mxu0
  %v1313 = vadd.f32 0.0, %v1312
  %1314 = vdwg.mxu0
  %v1315 = vadd.f32 %v1039, %v1220
  %v1316 = vadd.f32 %v1040, %v1223
  %v1317 = vadd.f32 %v1041, %v1226
  %v1318 = vadd.f32 %v1042, %v1229
  %v1319 = vadd.f32 %v1043, %v1232
  %v1320 = vadd.f32 %v1044, %v1235
  %v1321 = vadd.f32 %v1045, %v1238
  %v1322 = vadd.f32 %v1046, %v1241
  %v1323 = vadd.f32 %v1047, %v1244
  %v1324 = vadd.f32 %v1048, %v1247
  %v1325 = vadd.f32 %v1049, %v1250
  %v1326 = vadd.f32 %v1050, %v1253
  %v1327 = vadd.f32 %v1051, %v1256
  %v1328 = vadd.f32 %v1052, %v1259
  %v1329 = vadd.f32 %v1053, %v1262
  %v1330 = vadd.f32 %v1054, %v1265
  %v1331 = vadd.f32 %v1055, %v1268
  %v1332 = vadd.f32 %v1056, %v1271
  %v1333 = vadd.f32 %v1057, %v1274
  %v1334 = vadd.f32 %v1058, %v1277
  %v1335 = vadd.f32 %v1059, %v1280
  %v1336 = vadd.f32 %v1060, %v1283
  %v1337 = vadd.f32 %v1061, %v1286
  %v1338 = vadd.f32 %v1062, %v1289
  %v1339 = vadd.f32 %v1063, %v1292
  %v1340 = vadd.f32 %v1064, %v1295
  %v1341 = vadd.f32 %v1065, %v1298
  %v1342 = vadd.f32 %v1066, %v1301
  %v1343 = vadd.f32 %v1067, %v1304
  %v1344 = vadd.f32 %v1068, %v1307
  %v1345 = vadd.f32 %v1069, %v1310
  %v1346 = vadd.f32 %v1070, %v1313
  %v1347 = vld [vmem:[%s794 + $0x2] sm:$0xff]
  %v1348 = vld [vmem:[%s794 + $0xa] sm:$0xff]
  %v1349 = vld [vmem:[%s794 + $0x1a] sm:$0xff]
  %v1350 = vld [vmem:[%s794 + $0x22] sm:$0xff]
  %v1351 = vld [vmem:[%s794 + $0x32] sm:$0xff]
  %v1352 = vld [vmem:[%s794 + $0x3a] sm:$0xff]
  %v1353 = vld [vmem:[%s794 + $0x4a] sm:$0xff]
  %v1354 = vld [vmem:[%s794 + $0x52] sm:$0xff]
  %v1355 = vld [vmem:[%s794 + $0x62] sm:$0xff]
  %v1356 = vld [vmem:[%s794 + $0x6a] sm:$0xff]
  %v1357 = vld [vmem:[%s794 + $0x7a] sm:$0xff]
  %v1358 = vld [vmem:[%s794 + $0x82] sm:$0xff]
  %v1359 = vld [vmem:[%s794 + $0x92] sm:$0xff]
  %v1360 = vld [vmem:[%s794 + $0x9a] sm:$0xff]
  %v1361 = vld [vmem:[%s794 + $0xaa] sm:$0xff]
  %v1362 = vld [vmem:[%s794 + $0xb2] sm:$0xff]
  %v1363 = vld [vmem:[%s794 + $0xc2] sm:$0xff]
  %v1364 = vld [vmem:[%s794 + $0xca] sm:$0xff]
  %v1365 = vld [vmem:[%s794 + $0xda] sm:$0xff]
  %v1366 = vld [vmem:[%s794 + $0xe2] sm:$0xff]
  %v1367 = vld [vmem:[%s794 + $0xf2] sm:$0xff]
  %v1368 = vld [vmem:[%s794 + $0xfa] sm:$0xff]
  %v1369 = vld [vmem:[%s794 + $0x10a] sm:$0xff]
  %v1370 = vld [vmem:[%s794 + $0x112] sm:$0xff]
  %v1371 = vld [vmem:[%s794 + $0x122] sm:$0xff]
  %v1372 = vld [vmem:[%s794 + $0x12a] sm:$0xff]
  %v1373 = vld [vmem:[%s794 + $0x13a] sm:$0xff]
  %v1374 = vld [vmem:[%s794 + $0x142] sm:$0xff]
  %v1375 = vld [vmem:[%s794 + $0x152] sm:$0xff]
  %v1376 = vld [vmem:[%s794 + $0x15a] sm:$0xff]
  %v1377 = vld [vmem:[%s794 + $0x16a] sm:$0xff]
  %v1378 = vld [vmem:[%s794 + $0x172] sm:$0xff]
  %v1380 = vsel %vm92, %v1347, 0
  %v1383 = vsel %vm92, %v1348, 0
  %v1386 = vsel %vm92, %v1349, 0
  %v1389 = vsel %vm92, %v1350, 0
  %v1392 = vsel %vm92, %v1351, 0
  %v1395 = vsel %vm92, %v1352, 0
  %v1398 = vsel %vm92, %v1353, 0
  %v1401 = vsel %vm92, %v1354, 0
  %v1404 = vsel %vm92, %v1355, 0
  %v1407 = vsel %vm92, %v1356, 0
  %v1410 = vsel %vm92, %v1357, 0
  %v1413 = vsel %vm92, %v1358, 0
  %v1416 = vsel %vm92, %v1359, 0
  %v1419 = vsel %vm92, %v1360, 0
  %v1422 = vsel %vm92, %v1361, 0
  %v1425 = vsel %vm92, %v1362, 0
  %v1428 = vsel %vm92, %v1363, 0
  %v1431 = vsel %vm92, %v1364, 0
  %v1434 = vsel %vm92, %v1365, 0
  %v1437 = vsel %vm92, %v1366, 0
  %v1440 = vsel %vm92, %v1367, 0
  %v1443 = vsel %vm92, %v1368, 0
  %v1446 = vsel %vm92, %v1369, 0
  %v1449 = vsel %vm92, %v1370, 0
  %v1452 = vsel %vm92, %v1371, 0
  %v1455 = vsel %vm92, %v1372, 0
  %v1458 = vsel %vm92, %v1373, 0
  %v1461 = vsel %vm92, %v1374, 0
  %v1464 = vsel %vm92, %v1375, 0
  %v1467 = vsel %vm92, %v1376, 0
  %v1470 = vsel %vm92, %v1377, 0
  %v1473 = vsel %vm92, %v1378, 0
  %v1476 = vsel %vm189, %v21, 0
  %1478 = vmatpush.msra.mxu0 0.0
  %1479 = vmatpush.msra.mxu0 0.0
  %1480 = vmatpush.msra.mxu0 0.0
  %1481 = vmatpush.msra.mxu0 0.0
  %1482 = vmatpush.msra.mxu0 0.0
  %1483 = vmatpush.msra.mxu0 0.0
  %1484 = vmatpush.msra.mxu0 0.0
  %1485 = vmatpush.msra.mxu0 0.0
  %1486 = vmatpush.msra.mxu0 0.0
  %1487 = vmatpush.msra.mxu0 0.0
  %1488 = vmatpush.msra.mxu0 0.0
  %1489 = vmatpush.msra.mxu0 0.0
  %1490 = vmatpush.msra.mxu0 0.0
  %1491 = vmatpush.msra.mxu0 0.0
  %1492 = vmatpush.msra.mxu0 0.0
  %1493 = vmatpush.msra.mxu0 %v1476
  %1494 = vmatmul.f32.gmra.mxu0 %v1380
  %v1495 = vpop.f32.mrf.mxu0
  %v1496 = vadd.f32 0.0, %v1495
  %1497 = vmatmul.f32.gmra.mxu0 %v1383
  %v1498 = vpop.f32.mrf.mxu0
  %v1499 = vadd.f32 0.0, %v1498
  %1500 = vmatmul.f32.gmra.mxu0 %v1386
  %v1501 = vpop.f32.mrf.mxu0
  %v1502 = vadd.f32 0.0, %v1501
  %1503 = vmatmul.f32.gmra.mxu0 %v1389
  %v1504 = vpop.f32.mrf.mxu0
  %v1505 = vadd.f32 0.0, %v1504
  %1506 = vmatmul.f32.gmra.mxu0 %v1392
  %v1507 = vpop.f32.mrf.mxu0
  %v1508 = vadd.f32 0.0, %v1507
  %1509 = vmatmul.f32.gmra.mxu0 %v1395
  %v1510 = vpop.f32.mrf.mxu0
  %v1511 = vadd.f32 0.0, %v1510
  %1512 = vmatmul.f32.gmra.mxu0 %v1398
  %v1513 = vpop.f32.mrf.mxu0
  %v1514 = vadd.f32 0.0, %v1513
  %1515 = vmatmul.f32.gmra.mxu0 %v1401
  %v1516 = vpop.f32.mrf.mxu0
  %v1517 = vadd.f32 0.0, %v1516
  %1518 = vmatmul.f32.gmra.mxu0 %v1404
  %v1519 = vpop.f32.mrf.mxu0
  %v1520 = vadd.f32 0.0, %v1519
  %1521 = vmatmul.f32.gmra.mxu0 %v1407
  %v1522 = vpop.f32.mrf.mxu0
  %v1523 = vadd.f32 0.0, %v1522
  %1524 = vmatmul.f32.gmra.mxu0 %v1410
  %v1525 = vpop.f32.mrf.mxu0
  %v1526 = vadd.f32 0.0, %v1525
  %1527 = vmatmul.f32.gmra.mxu0 %v1413
  %v1528 = vpop.f32.mrf.mxu0
  %v1529 = vadd.f32 0.0, %v1528
  %1530 = vmatmul.f32.gmra.mxu0 %v1416
  %v1531 = vpop.f32.mrf.mxu0
  %v1532 = vadd.f32 0.0, %v1531
  %1533 = vmatmul.f32.gmra.mxu0 %v1419
  %v1534 = vpop.f32.mrf.mxu0
  %v1535 = vadd.f32 0.0, %v1534
  %1536 = vmatmul.f32.gmra.mxu0 %v1422
  %v1537 = vpop.f32.mrf.mxu0
  %v1538 = vadd.f32 0.0, %v1537
  %1539 = vmatmul.f32.gmra.mxu0 %v1425
  %v1540 = vpop.f32.mrf.mxu0
  %v1541 = vadd.f32 0.0, %v1540
  %1542 = vmatmul.f32.gmra.mxu0 %v1428
  %v1543 = vpop.f32.mrf.mxu0
  %v1544 = vadd.f32 0.0, %v1543
  %1545 = vmatmul.f32.gmra.mxu0 %v1431
  %v1546 = vpop.f32.mrf.mxu0
  %v1547 = vadd.f32 0.0, %v1546
  %1548 = vmatmul.f32.gmra.mxu0 %v1434
  %v1549 = vpop.f32.mrf.mxu0
  %v1550 = vadd.f32 0.0, %v1549
  %1551 = vmatmul.f32.gmra.mxu0 %v1437
  %v1552 = vpop.f32.mrf.mxu0
  %v1553 = vadd.f32 0.0, %v1552
  %1554 = vmatmul.f32.gmra.mxu0 %v1440
  %v1555 = vpop.f32.mrf.mxu0
  %v1556 = vadd.f32 0.0, %v1555
  %1557 = vmatmul.f32.gmra.mxu0 %v1443
  %v1558 = vpop.f32.mrf.mxu0
  %v1559 = vadd.f32 0.0, %v1558
  %1560 = vmatmul.f32.gmra.mxu0 %v1446
  %v1561 = vpop.f32.mrf.mxu0
  %v1562 = vadd.f32 0.0, %v1561
  %1563 = vmatmul.f32.gmra.mxu0 %v1449
  %v1564 = vpop.f32.mrf.mxu0
  %v1565 = vadd.f32 0.0, %v1564
  %1566 = vmatmul.f32.gmra.mxu0 %v1452
  %v1567 = vpop.f32.mrf.mxu0
  %v1568 = vadd.f32 0.0, %v1567
  %1569 = vmatmul.f32.gmra.mxu0 %v1455
  %v1570 = vpop.f32.mrf.mxu0
  %v1571 = vadd.f32 0.0, %v1570
  %1572 = vmatmul.f32.gmra.mxu0 %v1458
  %v1573 = vpop.f32.mrf.mxu0
  %v1574 = vadd.f32 0.0, %v1573
  %1575 = vmatmul.f32.gmra.mxu0 %v1461
  %v1576 = vpop.f32.mrf.mxu0
  %v1577 = vadd.f32 0.0, %v1576
  %1578 = vmatmul.f32.gmra.mxu0 %v1464
  %v1579 = vpop.f32.mrf.mxu0
  %v1580 = vadd.f32 0.0, %v1579
  %1581 = vmatmul.f32.gmra.mxu0 %v1467
  %v1582 = vpop.f32.mrf.mxu0
  %v1583 = vadd.f32 0.0, %v1582
  %1584 = vmatmul.f32.gmra.mxu0 %v1470
  %v1585 = vpop.f32.mrf.mxu0
  %v1586 = vadd.f32 0.0, %v1585
  %1587 = vmatmul.f32.gmra.mxu0 %v1473
  %v1588 = vpop.f32.mrf.mxu0
  %v1589 = vadd.f32 0.0, %v1588
  %1590 = vdwg.mxu0
  %v1591 = vadd.f32 %v1315, %v1496
  %v1592 = vadd.f32 %v1316, %v1499
  %v1593 = vadd.f32 %v1317, %v1502
  %v1594 = vadd.f32 %v1318, %v1505
  %v1595 = vadd.f32 %v1319, %v1508
  %v1596 = vadd.f32 %v1320, %v1511
  %v1597 = vadd.f32 %v1321, %v1514
  %v1598 = vadd.f32 %v1322, %v1517
  %v1599 = vadd.f32 %v1323, %v1520
  %v1600 = vadd.f32 %v1324, %v1523
  %v1601 = vadd.f32 %v1325, %v1526
  %v1602 = vadd.f32 %v1326, %v1529
  %v1603 = vadd.f32 %v1327, %v1532
  %v1604 = vadd.f32 %v1328, %v1535
  %v1605 = vadd.f32 %v1329, %v1538
  %v1606 = vadd.f32 %v1330, %v1541
  %v1607 = vadd.f32 %v1331, %v1544
  %v1608 = vadd.f32 %v1332, %v1547
  %v1609 = vadd.f32 %v1333, %v1550
  %v1610 = vadd.f32 %v1334, %v1553
  %v1611 = vadd.f32 %v1335, %v1556
  %v1612 = vadd.f32 %v1336, %v1559
  %v1613 = vadd.f32 %v1337, %v1562
  %v1614 = vadd.f32 %v1338, %v1565
  %v1615 = vadd.f32 %v1339, %v1568
  %v1616 = vadd.f32 %v1340, %v1571
  %v1617 = vadd.f32 %v1341, %v1574
  %v1618 = vadd.f32 %v1342, %v1577
  %v1619 = vadd.f32 %v1343, %v1580
  %v1620 = vadd.f32 %v1344, %v1583
  %v1621 = vadd.f32 %v1345, %v1586
  %v1622 = vadd.f32 %v1346, %v1589
  %s1623 = scalar_lea.vmem %s0, 48
  %v1624 = vld [vmem:[%s1623] sm:$0xff]
  %v1625 = vld [vmem:[%s1623 + $0x8] sm:$0xff]
  %v1626 = vld [vmem:[%s1623 + $0x18] sm:$0xff]
  %v1627 = vld [vmem:[%s1623 + $0x20] sm:$0xff]
  %v1628 = vld [vmem:[%s1623 + $0x30] sm:$0xff]
  %v1629 = vld [vmem:[%s1623 + $0x38] sm:$0xff]
  %v1630 = vld [vmem:[%s1623 + $0x48] sm:$0xff]
  %v1631 = vld [vmem:[%s1623 + $0x50] sm:$0xff]
  %v1632 = vld [vmem:[%s1623 + $0x60] sm:$0xff]
  %v1633 = vld [vmem:[%s1623 + $0x68] sm:$0xff]
  %v1634 = vld [vmem:[%s1623 + $0x78] sm:$0xff]
  %v1635 = vld [vmem:[%s1623 + $0x80] sm:$0xff]
  %v1636 = vld [vmem:[%s1623 + $0x90] sm:$0xff]
  %v1637 = vld [vmem:[%s1623 + $0x98] sm:$0xff]
  %v1638 = vld [vmem:[%s1623 + $0xa8] sm:$0xff]
  %v1639 = vld [vmem:[%s1623 + $0xb0] sm:$0xff]
  %v1640 = vld [vmem:[%s1623 + $0xc0] sm:$0xff]
  %v1641 = vld [vmem:[%s1623 + $0xc8] sm:$0xff]
  %v1642 = vld [vmem:[%s1623 + $0xd8] sm:$0xff]
  %v1643 = vld [vmem:[%s1623 + $0xe0] sm:$0xff]
  %v1644 = vld [vmem:[%s1623 + $0xf0] sm:$0xff]
  %v1645 = vld [vmem:[%s1623 + $0xf8] sm:$0xff]
  %v1646 = vld [vmem:[%s1623 + $0x108] sm:$0xff]
  %v1647 = vld [vmem:[%s1623 + $0x110] sm:$0xff]
  %v1648 = vld [vmem:[%s1623 + $0x120] sm:$0xff]
  %v1649 = vld [vmem:[%s1623 + $0x128] sm:$0xff]
  %v1650 = vld [vmem:[%s1623 + $0x138] sm:$0xff]
  %v1651 = vld [vmem:[%s1623 + $0x140] sm:$0xff]
  %v1652 = vld [vmem:[%s1623 + $0x150] sm:$0xff]
  %v1653 = vld [vmem:[%s1623 + $0x158] sm:$0xff]
  %v1654 = vld [vmem:[%s1623 + $0x168] sm:$0xff]
  %v1655 = vld [vmem:[%s1623 + $0x170] sm:$0xff]
  %v1657 = vsel %vm92, %v1624, 0
  %v1660 = vsel %vm92, %v1625, 0
  %v1663 = vsel %vm92, %v1626, 0
  %v1666 = vsel %vm92, %v1627, 0
  %v1669 = vsel %vm92, %v1628, 0
  %v1672 = vsel %vm92, %v1629, 0
  %v1675 = vsel %vm92, %v1630, 0
  %v1678 = vsel %vm92, %v1631, 0
  %v1681 = vsel %vm92, %v1632, 0
  %v1684 = vsel %vm92, %v1633, 0
  %v1687 = vsel %vm92, %v1634, 0
  %v1690 = vsel %vm92, %v1635, 0
  %v1693 = vsel %vm92, %v1636, 0
  %v1696 = vsel %vm92, %v1637, 0
  %v1699 = vsel %vm92, %v1638, 0
  %v1702 = vsel %vm92, %v1639, 0
  %v1705 = vsel %vm92, %v1640, 0
  %v1708 = vsel %vm92, %v1641, 0
  %v1711 = vsel %vm92, %v1642, 0
  %v1714 = vsel %vm92, %v1643, 0
  %v1717 = vsel %vm92, %v1644, 0
  %v1720 = vsel %vm92, %v1645, 0
  %v1723 = vsel %vm92, %v1646, 0
  %v1726 = vsel %vm92, %v1647, 0
  %v1729 = vsel %vm92, %v1648, 0
  %v1732 = vsel %vm92, %v1649, 0
  %v1735 = vsel %vm92, %v1650, 0
  %v1738 = vsel %vm92, %v1651, 0
  %v1741 = vsel %vm92, %v1652, 0
  %v1744 = vsel %vm92, %v1653, 0
  %v1747 = vsel %vm92, %v1654, 0
  %v1750 = vsel %vm92, %v1655, 0
  %v1753 = vsel %vm189, %v23, 0
  %1755 = vmatpush.msra.mxu0 0.0
  %1756 = vmatpush.msra.mxu0 0.0
  %1757 = vmatpush.msra.mxu0 0.0
  %1758 = vmatpush.msra.mxu0 0.0
  %1759 = vmatpush.msra.mxu0 0.0
  %1760 = vmatpush.msra.mxu0 0.0
  %1761 = vmatpush.msra.mxu0 0.0
  %1762 = vmatpush.msra.mxu0 0.0
  %1763 = vmatpush.msra.mxu0 0.0
  %1764 = vmatpush.msra.mxu0 0.0
  %1765 = vmatpush.msra.mxu0 0.0
  %1766 = vmatpush.msra.mxu0 0.0
  %1767 = vmatpush.msra.mxu0 0.0
  %1768 = vmatpush.msra.mxu0 0.0
  %1769 = vmatpush.msra.mxu0 0.0
  %1770 = vmatpush.msra.mxu0 %v1753
  %1771 = vmatmul.f32.gmra.mxu0 %v1657
  %v1772 = vpop.f32.mrf.mxu0
  %v1773 = vadd.f32 0.0, %v1772
  %1774 = vmatmul.f32.gmra.mxu0 %v1660
  %v1775 = vpop.f32.mrf.mxu0
  %v1776 = vadd.f32 0.0, %v1775
  %1777 = vmatmul.f32.gmra.mxu0 %v1663
  %v1778 = vpop.f32.mrf.mxu0
  %v1779 = vadd.f32 0.0, %v1778
  %1780 = vmatmul.f32.gmra.mxu0 %v1666
  %v1781 = vpop.f32.mrf.mxu0
  %v1782 = vadd.f32 0.0, %v1781
  %1783 = vmatmul.f32.gmra.mxu0 %v1669
  %v1784 = vpop.f32.mrf.mxu0
  %v1785 = vadd.f32 0.0, %v1784
  %1786 = vmatmul.f32.gmra.mxu0 %v1672
  %v1787 = vpop.f32.mrf.mxu0
  %v1788 = vadd.f32 0.0, %v1787
  %1789 = vmatmul.f32.gmra.mxu0 %v1675
  %v1790 = vpop.f32.mrf.mxu0
  %v1791 = vadd.f32 0.0, %v1790
  %1792 = vmatmul.f32.gmra.mxu0 %v1678
  %v1793 = vpop.f32.mrf.mxu0
  %v1794 = vadd.f32 0.0, %v1793
  %1795 = vmatmul.f32.gmra.mxu0 %v1681
  %v1796 = vpop.f32.mrf.mxu0
  %v1797 = vadd.f32 0.0, %v1796
  %1798 = vmatmul.f32.gmra.mxu0 %v1684
  %v1799 = vpop.f32.mrf.mxu0
  %v1800 = vadd.f32 0.0, %v1799
  %1801 = vmatmul.f32.gmra.mxu0 %v1687
  %v1802 = vpop.f32.mrf.mxu0
  %v1803 = vadd.f32 0.0, %v1802
  %1804 = vmatmul.f32.gmra.mxu0 %v1690
  %v1805 = vpop.f32.mrf.mxu0
  %v1806 = vadd.f32 0.0, %v1805
  %1807 = vmatmul.f32.gmra.mxu0 %v1693
  %v1808 = vpop.f32.mrf.mxu0
  %v1809 = vadd.f32 0.0, %v1808
  %1810 = vmatmul.f32.gmra.mxu0 %v1696
  %v1811 = vpop.f32.mrf.mxu0
  %v1812 = vadd.f32 0.0, %v1811
  %1813 = vmatmul.f32.gmra.mxu0 %v1699
  %v1814 = vpop.f32.mrf.mxu0
  %v1815 = vadd.f32 0.0, %v1814
  %1816 = vmatmul.f32.gmra.mxu0 %v1702
  %v1817 = vpop.f32.mrf.mxu0
  %v1818 = vadd.f32 0.0, %v1817
  %1819 = vmatmul.f32.gmra.mxu0 %v1705
  %v1820 = vpop.f32.mrf.mxu0
  %v1821 = vadd.f32 0.0, %v1820
  %1822 = vmatmul.f32.gmra.mxu0 %v1708
  %v1823 = vpop.f32.mrf.mxu0
  %v1824 = vadd.f32 0.0, %v1823
  %1825 = vmatmul.f32.gmra.mxu0 %v1711
  %v1826 = vpop.f32.mrf.mxu0
  %v1827 = vadd.f32 0.0, %v1826
  %1828 = vmatmul.f32.gmra.mxu0 %v1714
  %v1829 = vpop.f32.mrf.mxu0
  %v1830 = vadd.f32 0.0, %v1829
  %1831 = vmatmul.f32.gmra.mxu0 %v1717
  %v1832 = vpop.f32.mrf.mxu0
  %v1833 = vadd.f32 0.0, %v1832
  %1834 = vmatmul.f32.gmra.mxu0 %v1720
  %v1835 = vpop.f32.mrf.mxu0
  %v1836 = vadd.f32 0.0, %v1835
  %1837 = vmatmul.f32.gmra.mxu0 %v1723
  %v1838 = vpop.f32.mrf.mxu0
  %v1839 = vadd.f32 0.0, %v1838
  %1840 = vmatmul.f32.gmra.mxu0 %v1726
  %v1841 = vpop.f32.mrf.mxu0
  %v1842 = vadd.f32 0.0, %v1841
  %1843 = vmatmul.f32.gmra.mxu0 %v1729
  %v1844 = vpop.f32.mrf.mxu0
  %v1845 = vadd.f32 0.0, %v1844
  %1846 = vmatmul.f32.gmra.mxu0 %v1732
  %v1847 = vpop.f32.mrf.mxu0
  %v1848 = vadd.f32 0.0, %v1847
  %1849 = vmatmul.f32.gmra.mxu0 %v1735
  %v1850 = vpop.f32.mrf.mxu0
  %v1851 = vadd.f32 0.0, %v1850
  %1852 = vmatmul.f32.gmra.mxu0 %v1738
  %v1853 = vpop.f32.mrf.mxu0
  %v1854 = vadd.f32 0.0, %v1853
  %1855 = vmatmul.f32.gmra.mxu0 %v1741
  %v1856 = vpop.f32.mrf.mxu0
  %v1857 = vadd.f32 0.0, %v1856
  %1858 = vmatmul.f32.gmra.mxu0 %v1744
  %v1859 = vpop.f32.mrf.mxu0
  %v1860 = vadd.f32 0.0, %v1859
  %1861 = vmatmul.f32.gmra.mxu0 %v1747
  %v1862 = vpop.f32.mrf.mxu0
  %v1863 = vadd.f32 0.0, %v1862
  %1864 = vmatmul.f32.gmra.mxu0 %v1750
  %v1865 = vpop.f32.mrf.mxu0
  %v1866 = vadd.f32 0.0, %v1865
  %1867 = vdwg.mxu0
  %v1868 = vadd.f32 %v1591, %v1773
  %v1869 = vadd.f32 %v1592, %v1776
  %v1870 = vadd.f32 %v1593, %v1779
  %v1871 = vadd.f32 %v1594, %v1782
  %v1872 = vadd.f32 %v1595, %v1785
  %v1873 = vadd.f32 %v1596, %v1788
  %v1874 = vadd.f32 %v1597, %v1791
  %v1875 = vadd.f32 %v1598, %v1794
  %v1876 = vadd.f32 %v1599, %v1797
  %v1877 = vadd.f32 %v1600, %v1800
  %v1878 = vadd.f32 %v1601, %v1803
  %v1879 = vadd.f32 %v1602, %v1806
  %v1880 = vadd.f32 %v1603, %v1809
  %v1881 = vadd.f32 %v1604, %v1812
  %v1882 = vadd.f32 %v1605, %v1815
  %v1883 = vadd.f32 %v1606, %v1818
  %v1884 = vadd.f32 %v1607, %v1821
  %v1885 = vadd.f32 %v1608, %v1824
  %v1886 = vadd.f32 %v1609, %v1827
  %v1887 = vadd.f32 %v1610, %v1830
  %v1888 = vadd.f32 %v1611, %v1833
  %v1889 = vadd.f32 %v1612, %v1836
  %v1890 = vadd.f32 %v1613, %v1839
  %v1891 = vadd.f32 %v1614, %v1842
  %v1892 = vadd.f32 %v1615, %v1845
  %v1893 = vadd.f32 %v1616, %v1848
  %v1894 = vadd.f32 %v1617, %v1851
  %v1895 = vadd.f32 %v1618, %v1854
  %v1896 = vadd.f32 %v1619, %v1857
  %v1897 = vadd.f32 %v1620, %v1860
  %v1898 = vadd.f32 %v1621, %v1863
  %v1899 = vadd.f32 %v1622, %v1866
  %v1900 = vld [vmem:[%s1623 + $0x1] sm:$0xff]
  %v1901 = vld [vmem:[%s1623 + $0x9] sm:$0xff]
  %v1902 = vld [vmem:[%s1623 + $0x19] sm:$0xff]
  %v1903 = vld [vmem:[%s1623 + $0x21] sm:$0xff]
  %v1904 = vld [vmem:[%s1623 + $0x31] sm:$0xff]
  %v1905 = vld [vmem:[%s1623 + $0x39] sm:$0xff]
  %v1906 = vld [vmem:[%s1623 + $0x49] sm:$0xff]
  %v1907 = vld [vmem:[%s1623 + $0x51] sm:$0xff]
  %v1908 = vld [vmem:[%s1623 + $0x61] sm:$0xff]
  %v1909 = vld [vmem:[%s1623 + $0x69] sm:$0xff]
  %v1910 = vld [vmem:[%s1623 + $0x79] sm:$0xff]
  %v1911 = vld [vmem:[%s1623 + $0x81] sm:$0xff]
  %v1912 = vld [vmem:[%s1623 + $0x91] sm:$0xff]
  %v1913 = vld [vmem:[%s1623 + $0x99] sm:$0xff]
  %v1914 = vld [vmem:[%s1623 + $0xa9] sm:$0xff]
  %v1915 = vld [vmem:[%s1623 + $0xb1] sm:$0xff]
  %v1916 = vld [vmem:[%s1623 + $0xc1] sm:$0xff]
  %v1917 = vld [vmem:[%s1623 + $0xc9] sm:$0xff]
  %v1918 = vld [vmem:[%s1623 + $0xd9] sm:$0xff]
  %v1919 = vld [vmem:[%s1623 + $0xe1] sm:$0xff]
  %v1920 = vld [vmem:[%s1623 + $0xf1] sm:$0xff]
  %v1921 = vld [vmem:[%s1623 + $0xf9] sm:$0xff]
  %v1922 = vld [vmem:[%s1623 + $0x109] sm:$0xff]
  %v1923 = vld [vmem:[%s1623 + $0x111] sm:$0xff]
  %v1924 = vld [vmem:[%s1623 + $0x121] sm:$0xff]
  %v1925 = vld [vmem:[%s1623 + $0x129] sm:$0xff]
  %v1926 = vld [vmem:[%s1623 + $0x139] sm:$0xff]
  %v1927 = vld [vmem:[%s1623 + $0x141] sm:$0xff]
  %v1928 = vld [vmem:[%s1623 + $0x151] sm:$0xff]
  %v1929 = vld [vmem:[%s1623 + $0x159] sm:$0xff]
  %v1930 = vld [vmem:[%s1623 + $0x169] sm:$0xff]
  %v1931 = vld [vmem:[%s1623 + $0x171] sm:$0xff]
  %v1933 = vsel %vm92, %v1900, 0
  %v1936 = vsel %vm92, %v1901, 0
  %v1939 = vsel %vm92, %v1902, 0
  %v1942 = vsel %vm92, %v1903, 0
  %v1945 = vsel %vm92, %v1904, 0
  %v1948 = vsel %vm92, %v1905, 0
  %v1951 = vsel %vm92, %v1906, 0
  %v1954 = vsel %vm92, %v1907, 0
  %v1957 = vsel %vm92, %v1908, 0
  %v1960 = vsel %vm92, %v1909, 0
  %v1963 = vsel %vm92, %v1910, 0
  %v1966 = vsel %vm92, %v1911, 0
  %v1969 = vsel %vm92, %v1912, 0
  %v1972 = vsel %vm92, %v1913, 0
  %v1975 = vsel %vm92, %v1914, 0
  %v1978 = vsel %vm92, %v1915, 0
  %v1981 = vsel %vm92, %v1916, 0
  %v1984 = vsel %vm92, %v1917, 0
  %v1987 = vsel %vm92, %v1918, 0
  %v1990 = vsel %vm92, %v1919, 0
  %v1993 = vsel %vm92, %v1920, 0
  %v1996 = vsel %vm92, %v1921, 0
  %v1999 = vsel %vm92, %v1922, 0
  %v2002 = vsel %vm92, %v1923, 0
  %v2005 = vsel %vm92, %v1924, 0
  %v2008 = vsel %vm92, %v1925, 0
  %v2011 = vsel %vm92, %v1926, 0
  %v2014 = vsel %vm92, %v1927, 0
  %v2017 = vsel %vm92, %v1928, 0
  %v2020 = vsel %vm92, %v1929, 0
  %v2023 = vsel %vm92, %v1930, 0
  %v2026 = vsel %vm92, %v1931, 0
  %v2029 = vsel %vm189, %v25, 0
  %2031 = vmatpush.msra.mxu0 0.0
  %2032 = vmatpush.msra.mxu0 0.0
  %2033 = vmatpush.msra.mxu0 0.0
  %2034 = vmatpush.msra.mxu0 0.0
  %2035 = vmatpush.msra.mxu0 0.0
  %2036 = vmatpush.msra.mxu0 0.0
  %2037 = vmatpush.msra.mxu0 0.0
  %2038 = vmatpush.msra.mxu0 0.0
  %2039 = vmatpush.msra.mxu0 0.0
  %2040 = vmatpush.msra.mxu0 0.0
  %2041 = vmatpush.msra.mxu0 0.0
  %2042 = vmatpush.msra.mxu0 0.0
  %2043 = vmatpush.msra.mxu0 0.0
  %2044 = vmatpush.msra.mxu0 0.0
  %2045 = vmatpush.msra.mxu0 0.0
  %2046 = vmatpush.msra.mxu0 %v2029
  %2047 = vmatmul.f32.gmra.mxu0 %v1933
  %v2048 = vpop.f32.mrf.mxu0
  %v2049 = vadd.f32 0.0, %v2048
  %2050 = vmatmul.f32.gmra.mxu0 %v1936
  %v2051 = vpop.f32.mrf.mxu0
  %v2052 = vadd.f32 0.0, %v2051
  %2053 = vmatmul.f32.gmra.mxu0 %v1939
  %v2054 = vpop.f32.mrf.mxu0
  %v2055 = vadd.f32 0.0, %v2054
  %2056 = vmatmul.f32.gmra.mxu0 %v1942
  %v2057 = vpop.f32.mrf.mxu0
  %v2058 = vadd.f32 0.0, %v2057
  %2059 = vmatmul.f32.gmra.mxu0 %v1945
  %v2060 = vpop.f32.mrf.mxu0
  %v2061 = vadd.f32 0.0, %v2060
  %2062 = vmatmul.f32.gmra.mxu0 %v1948
  %v2063 = vpop.f32.mrf.mxu0
  %v2064 = vadd.f32 0.0, %v2063
  %2065 = vmatmul.f32.gmra.mxu0 %v1951
  %v2066 = vpop.f32.mrf.mxu0
  %v2067 = vadd.f32 0.0, %v2066
  %2068 = vmatmul.f32.gmra.mxu0 %v1954
  %v2069 = vpop.f32.mrf.mxu0
  %v2070 = vadd.f32 0.0, %v2069
  %2071 = vmatmul.f32.gmra.mxu0 %v1957
  %v2072 = vpop.f32.mrf.mxu0
  %v2073 = vadd.f32 0.0, %v2072
  %2074 = vmatmul.f32.gmra.mxu0 %v1960
  %v2075 = vpop.f32.mrf.mxu0
  %v2076 = vadd.f32 0.0, %v2075
  %2077 = vmatmul.f32.gmra.mxu0 %v1963
  %v2078 = vpop.f32.mrf.mxu0
  %v2079 = vadd.f32 0.0, %v2078
  %2080 = vmatmul.f32.gmra.mxu0 %v1966
  %v2081 = vpop.f32.mrf.mxu0
  %v2082 = vadd.f32 0.0, %v2081
  %2083 = vmatmul.f32.gmra.mxu0 %v1969
  %v2084 = vpop.f32.mrf.mxu0
  %v2085 = vadd.f32 0.0, %v2084
  %2086 = vmatmul.f32.gmra.mxu0 %v1972
  %v2087 = vpop.f32.mrf.mxu0
  %v2088 = vadd.f32 0.0, %v2087
  %2089 = vmatmul.f32.gmra.mxu0 %v1975
  %v2090 = vpop.f32.mrf.mxu0
  %v2091 = vadd.f32 0.0, %v2090
  %2092 = vmatmul.f32.gmra.mxu0 %v1978
  %v2093 = vpop.f32.mrf.mxu0
  %v2094 = vadd.f32 0.0, %v2093
  %2095 = vmatmul.f32.gmra.mxu0 %v1981
  %v2096 = vpop.f32.mrf.mxu0
  %v2097 = vadd.f32 0.0, %v2096
  %2098 = vmatmul.f32.gmra.mxu0 %v1984
  %v2099 = vpop.f32.mrf.mxu0
  %v2100 = vadd.f32 0.0, %v2099
  %2101 = vmatmul.f32.gmra.mxu0 %v1987
  %v2102 = vpop.f32.mrf.mxu0
  %v2103 = vadd.f32 0.0, %v2102
  %2104 = vmatmul.f32.gmra.mxu0 %v1990
  %v2105 = vpop.f32.mrf.mxu0
  %v2106 = vadd.f32 0.0, %v2105
  %2107 = vmatmul.f32.gmra.mxu0 %v1993
  %v2108 = vpop.f32.mrf.mxu0
  %v2109 = vadd.f32 0.0, %v2108
  %2110 = vmatmul.f32.gmra.mxu0 %v1996
  %v2111 = vpop.f32.mrf.mxu0
  %v2112 = vadd.f32 0.0, %v2111
  %2113 = vmatmul.f32.gmra.mxu0 %v1999
  %v2114 = vpop.f32.mrf.mxu0
  %v2115 = vadd.f32 0.0, %v2114
  %2116 = vmatmul.f32.gmra.mxu0 %v2002
  %v2117 = vpop.f32.mrf.mxu0
  %v2118 = vadd.f32 0.0, %v2117
  %2119 = vmatmul.f32.gmra.mxu0 %v2005
  %v2120 = vpop.f32.mrf.mxu0
  %v2121 = vadd.f32 0.0, %v2120
  %2122 = vmatmul.f32.gmra.mxu0 %v2008
  %v2123 = vpop.f32.mrf.mxu0
  %v2124 = vadd.f32 0.0, %v2123
  %2125 = vmatmul.f32.gmra.mxu0 %v2011
  %v2126 = vpop.f32.mrf.mxu0
  %v2127 = vadd.f32 0.0, %v2126
  %2128 = vmatmul.f32.gmra.mxu0 %v2014
  %v2129 = vpop.f32.mrf.mxu0
  %v2130 = vadd.f32 0.0, %v2129
  %2131 = vmatmul.f32.gmra.mxu0 %v2017
  %v2132 = vpop.f32.mrf.mxu0
  %v2133 = vadd.f32 0.0, %v2132
  %2134 = vmatmul.f32.gmra.mxu0 %v2020
  %v2135 = vpop.f32.mrf.mxu0
  %v2136 = vadd.f32 0.0, %v2135
  %2137 = vmatmul.f32.gmra.mxu0 %v2023
  %v2138 = vpop.f32.mrf.mxu0
  %v2139 = vadd.f32 0.0, %v2138
  %2140 = vmatmul.f32.gmra.mxu0 %v2026
  %v2141 = vpop.f32.mrf.mxu0
  %v2142 = vadd.f32 0.0, %v2141
  %2143 = vdwg.mxu0
  %v2144 = vadd.f32 %v1868, %v2049
  %v2145 = vadd.f32 %v1869, %v2052
  %v2146 = vadd.f32 %v1870, %v2055
  %v2147 = vadd.f32 %v1871, %v2058
  %v2148 = vadd.f32 %v1872, %v2061
  %v2149 = vadd.f32 %v1873, %v2064
  %v2150 = vadd.f32 %v1874, %v2067
  %v2151 = vadd.f32 %v1875, %v2070
  %v2152 = vadd.f32 %v1876, %v2073
  %v2153 = vadd.f32 %v1877, %v2076
  %v2154 = vadd.f32 %v1878, %v2079
  %v2155 = vadd.f32 %v1879, %v2082
  %v2156 = vadd.f32 %v1880, %v2085
  %v2157 = vadd.f32 %v1881, %v2088
  %v2158 = vadd.f32 %v1882, %v2091
  %v2159 = vadd.f32 %v1883, %v2094
  %v2160 = vadd.f32 %v1884, %v2097
  %v2161 = vadd.f32 %v1885, %v2100
  %v2162 = vadd.f32 %v1886, %v2103
  %v2163 = vadd.f32 %v1887, %v2106
  %v2164 = vadd.f32 %v1888, %v2109
  %v2165 = vadd.f32 %v1889, %v2112
  %v2166 = vadd.f32 %v1890, %v2115
  %v2167 = vadd.f32 %v1891, %v2118
  %v2168 = vadd.f32 %v1892, %v2121
  %v2169 = vadd.f32 %v1893, %v2124
  %v2170 = vadd.f32 %v1894, %v2127
  %v2171 = vadd.f32 %v1895, %v2130
  %v2172 = vadd.f32 %v1896, %v2133
  %v2173 = vadd.f32 %v1897, %v2136
  %v2174 = vadd.f32 %v1898, %v2139
  %v2175 = vadd.f32 %v1899, %v2142
  %v2176 = vld [vmem:[%s1623 + $0x2] sm:$0xff]
  %v2177 = vld [vmem:[%s1623 + $0xa] sm:$0xff]
  %v2178 = vld [vmem:[%s1623 + $0x1a] sm:$0xff]
  %v2179 = vld [vmem:[%s1623 + $0x22] sm:$0xff]
  %v2180 = vld [vmem:[%s1623 + $0x32] sm:$0xff]
  %v2181 = vld [vmem:[%s1623 + $0x3a] sm:$0xff]
  %v2182 = vld [vmem:[%s1623 + $0x4a] sm:$0xff]
  %v2183 = vld [vmem:[%s1623 + $0x52] sm:$0xff]
  %v2184 = vld [vmem:[%s1623 + $0x62] sm:$0xff]
  %v2185 = vld [vmem:[%s1623 + $0x6a] sm:$0xff]
  %v2186 = vld [vmem:[%s1623 + $0x7a] sm:$0xff]
  %v2187 = vld [vmem:[%s1623 + $0x82] sm:$0xff]
  %v2188 = vld [vmem:[%s1623 + $0x92] sm:$0xff]
  %v2189 = vld [vmem:[%s1623 + $0x9a] sm:$0xff]
  %v2190 = vld [vmem:[%s1623 + $0xaa] sm:$0xff]
  %v2191 = vld [vmem:[%s1623 + $0xb2] sm:$0xff]
  %v2192 = vld [vmem:[%s1623 + $0xc2] sm:$0xff]
  %v2193 = vld [vmem:[%s1623 + $0xca] sm:$0xff]
  %v2194 = vld [vmem:[%s1623 + $0xda] sm:$0xff]
  %v2195 = vld [vmem:[%s1623 + $0xe2] sm:$0xff]
  %v2196 = vld [vmem:[%s1623 + $0xf2] sm:$0xff]
  %v2197 = vld [vmem:[%s1623 + $0xfa] sm:$0xff]
  %v2198 = vld [vmem:[%s1623 + $0x10a] sm:$0xff]
  %v2199 = vld [vmem:[%s1623 + $0x112] sm:$0xff]
  %v2200 = vld [vmem:[%s1623 + $0x122] sm:$0xff]
  %v2201 = vld [vmem:[%s1623 + $0x12a] sm:$0xff]
  %v2202 = vld [vmem:[%s1623 + $0x13a] sm:$0xff]
  %v2203 = vld [vmem:[%s1623 + $0x142] sm:$0xff]
  %v2204 = vld [vmem:[%s1623 + $0x152] sm:$0xff]
  %v2205 = vld [vmem:[%s1623 + $0x15a] sm:$0xff]
  %v2206 = vld [vmem:[%s1623 + $0x16a] sm:$0xff]
  %v2207 = vld [vmem:[%s1623 + $0x172] sm:$0xff]
  %v2209 = vsel %vm92, %v2176, 0
  %v2212 = vsel %vm92, %v2177, 0
  %v2215 = vsel %vm92, %v2178, 0
  %v2218 = vsel %vm92, %v2179, 0
  %v2221 = vsel %vm92, %v2180, 0
  %v2224 = vsel %vm92, %v2181, 0
  %v2227 = vsel %vm92, %v2182, 0
  %v2230 = vsel %vm92, %v2183, 0
  %v2233 = vsel %vm92, %v2184, 0
  %v2236 = vsel %vm92, %v2185, 0
  %v2239 = vsel %vm92, %v2186, 0
  %v2242 = vsel %vm92, %v2187, 0
  %v2245 = vsel %vm92, %v2188, 0
  %v2248 = vsel %vm92, %v2189, 0
  %v2251 = vsel %vm92, %v2190, 0
  %v2254 = vsel %vm92, %v2191, 0
  %v2257 = vsel %vm92, %v2192, 0
  %v2260 = vsel %vm92, %v2193, 0
  %v2263 = vsel %vm92, %v2194, 0
  %v2266 = vsel %vm92, %v2195, 0
  %v2269 = vsel %vm92, %v2196, 0
  %v2272 = vsel %vm92, %v2197, 0
  %v2275 = vsel %vm92, %v2198, 0
  %v2278 = vsel %vm92, %v2199, 0
  %v2281 = vsel %vm92, %v2200, 0
  %v2284 = vsel %vm92, %v2201, 0
  %v2287 = vsel %vm92, %v2202, 0
  %v2290 = vsel %vm92, %v2203, 0
  %v2293 = vsel %vm92, %v2204, 0
  %v2296 = vsel %vm92, %v2205, 0
  %v2299 = vsel %vm92, %v2206, 0
  %v2302 = vsel %vm92, %v2207, 0
  %v2305 = vsel %vm189, %v27, 0
  %2307 = vmatpush.msra.mxu0 0.0
  %2308 = vmatpush.msra.mxu0 0.0
  %2309 = vmatpush.msra.mxu0 0.0
  %2310 = vmatpush.msra.mxu0 0.0
  %2311 = vmatpush.msra.mxu0 0.0
  %2312 = vmatpush.msra.mxu0 0.0
  %2313 = vmatpush.msra.mxu0 0.0
  %2314 = vmatpush.msra.mxu0 0.0
  %2315 = vmatpush.msra.mxu0 0.0
  %2316 = vmatpush.msra.mxu0 0.0
  %2317 = vmatpush.msra.mxu0 0.0
  %2318 = vmatpush.msra.mxu0 0.0
  %2319 = vmatpush.msra.mxu0 0.0
  %2320 = vmatpush.msra.mxu0 0.0
  %2321 = vmatpush.msra.mxu0 0.0
  %2322 = vmatpush.msra.mxu0 %v2305
  %2323 = vmatmul.f32.gmra.mxu0 %v2209
  %v2324 = vpop.f32.mrf.mxu0
  %v2325 = vadd.f32 0.0, %v2324
  %2326 = vmatmul.f32.gmra.mxu0 %v2212
  %v2327 = vpop.f32.mrf.mxu0
  %v2328 = vadd.f32 0.0, %v2327
  %2329 = vmatmul.f32.gmra.mxu0 %v2215
  %v2330 = vpop.f32.mrf.mxu0
  %v2331 = vadd.f32 0.0, %v2330
  %2332 = vmatmul.f32.gmra.mxu0 %v2218
  %v2333 = vpop.f32.mrf.mxu0
  %v2334 = vadd.f32 0.0, %v2333
  %2335 = vmatmul.f32.gmra.mxu0 %v2221
  %v2336 = vpop.f32.mrf.mxu0
  %v2337 = vadd.f32 0.0, %v2336
  %2338 = vmatmul.f32.gmra.mxu0 %v2224
  %v2339 = vpop.f32.mrf.mxu0
  %v2340 = vadd.f32 0.0, %v2339
  %2341 = vmatmul.f32.gmra.mxu0 %v2227
  %v2342 = vpop.f32.mrf.mxu0
  %v2343 = vadd.f32 0.0, %v2342
  %2344 = vmatmul.f32.gmra.mxu0 %v2230
  %v2345 = vpop.f32.mrf.mxu0
  %v2346 = vadd.f32 0.0, %v2345
  %2347 = vmatmul.f32.gmra.mxu0 %v2233
  %v2348 = vpop.f32.mrf.mxu0
  %v2349 = vadd.f32 0.0, %v2348
  %2350 = vmatmul.f32.gmra.mxu0 %v2236
  %v2351 = vpop.f32.mrf.mxu0
  %v2352 = vadd.f32 0.0, %v2351
  %2353 = vmatmul.f32.gmra.mxu0 %v2239
  %v2354 = vpop.f32.mrf.mxu0
  %v2355 = vadd.f32 0.0, %v2354
  %2356 = vmatmul.f32.gmra.mxu0 %v2242
  %v2357 = vpop.f32.mrf.mxu0
  %v2358 = vadd.f32 0.0, %v2357
  %2359 = vmatmul.f32.gmra.mxu0 %v2245
  %v2360 = vpop.f32.mrf.mxu0
  %v2361 = vadd.f32 0.0, %v2360
  %2362 = vmatmul.f32.gmra.mxu0 %v2248
  %v2363 = vpop.f32.mrf.mxu0
  %v2364 = vadd.f32 0.0, %v2363
  %2365 = vmatmul.f32.gmra.mxu0 %v2251
  %v2366 = vpop.f32.mrf.mxu0
  %v2367 = vadd.f32 0.0, %v2366
  %2368 = vmatmul.f32.gmra.mxu0 %v2254
  %v2369 = vpop.f32.mrf.mxu0
  %v2370 = vadd.f32 0.0, %v2369
  %2371 = vmatmul.f32.gmra.mxu0 %v2257
  %v2372 = vpop.f32.mrf.mxu0
  %v2373 = vadd.f32 0.0, %v2372
  %2374 = vmatmul.f32.gmra.mxu0 %v2260
  %v2375 = vpop.f32.mrf.mxu0
  %v2376 = vadd.f32 0.0, %v2375
  %2377 = vmatmul.f32.gmra.mxu0 %v2263
  %v2378 = vpop.f32.mrf.mxu0
  %v2379 = vadd.f32 0.0, %v2378
  %2380 = vmatmul.f32.gmra.mxu0 %v2266
  %v2381 = vpop.f32.mrf.mxu0
  %v2382 = vadd.f32 0.0, %v2381
  %2383 = vmatmul.f32.gmra.mxu0 %v2269
  %v2384 = vpop.f32.mrf.mxu0
  %v2385 = vadd.f32 0.0, %v2384
  %2386 = vmatmul.f32.gmra.mxu0 %v2272
  %v2387 = vpop.f32.mrf.mxu0
  %v2388 = vadd.f32 0.0, %v2387
  %2389 = vmatmul.f32.gmra.mxu0 %v2275
  %v2390 = vpop.f32.mrf.mxu0
  %v2391 = vadd.f32 0.0, %v2390
  %2392 = vmatmul.f32.gmra.mxu0 %v2278
  %v2393 = vpop.f32.mrf.mxu0
  %v2394 = vadd.f32 0.0, %v2393
  %2395 = vmatmul.f32.gmra.mxu0 %v2281
  %v2396 = vpop.f32.mrf.mxu0
  %v2397 = vadd.f32 0.0, %v2396
  %2398 = vmatmul.f32.gmra.mxu0 %v2284
  %v2399 = vpop.f32.mrf.mxu0
  %v2400 = vadd.f32 0.0, %v2399
  %2401 = vmatmul.f32.gmra.mxu0 %v2287
  %v2402 = vpop.f32.mrf.mxu0
  %v2403 = vadd.f32 0.0, %v2402
  %2404 = vmatmul.f32.gmra.mxu0 %v2290
  %v2405 = vpop.f32.mrf.mxu0
  %v2406 = vadd.f32 0.0, %v2405
  %2407 = vmatmul.f32.gmra.mxu0 %v2293
  %v2408 = vpop.f32.mrf.mxu0
  %v2409 = vadd.f32 0.0, %v2408
  %2410 = vmatmul.f32.gmra.mxu0 %v2296
  %v2411 = vpop.f32.mrf.mxu0
  %v2412 = vadd.f32 0.0, %v2411
  %2413 = vmatmul.f32.gmra.mxu0 %v2299
  %v2414 = vpop.f32.mrf.mxu0
  %v2415 = vadd.f32 0.0, %v2414
  %2416 = vmatmul.f32.gmra.mxu0 %v2302
  %v2417 = vpop.f32.mrf.mxu0
  %v2418 = vadd.f32 0.0, %v2417
  %2419 = vdwg.mxu0
  %v2420 = vadd.f32 %v2144, %v2325
  %v2421 = vadd.f32 %v2145, %v2328
  %v2422 = vadd.f32 %v2146, %v2331
  %v2423 = vadd.f32 %v2147, %v2334
  %v2424 = vadd.f32 %v2148, %v2337
  %v2425 = vadd.f32 %v2149, %v2340
  %v2426 = vadd.f32 %v2150, %v2343
  %v2427 = vadd.f32 %v2151, %v2346
  %v2428 = vadd.f32 %v2152, %v2349
  %v2429 = vadd.f32 %v2153, %v2352
  %v2430 = vadd.f32 %v2154, %v2355
  %v2431 = vadd.f32 %v2155, %v2358
  %v2432 = vadd.f32 %v2156, %v2361
  %v2433 = vadd.f32 %v2157, %v2364
  %v2434 = vadd.f32 %v2158, %v2367
  %v2435 = vadd.f32 %v2159, %v2370
  %v2436 = vadd.f32 %v2160, %v2373
  %v2437 = vadd.f32 %v2161, %v2376
  %v2438 = vadd.f32 %v2162, %v2379
  %v2439 = vadd.f32 %v2163, %v2382
  %v2440 = vadd.f32 %v2164, %v2385
  %v2441 = vadd.f32 %v2165, %v2388
  %v2442 = vadd.f32 %v2166, %v2391
  %v2443 = vadd.f32 %v2167, %v2394
  %v2444 = vadd.f32 %v2168, %v2397
  %v2445 = vadd.f32 %v2169, %v2400
  %v2446 = vadd.f32 %v2170, %v2403
  %v2447 = vadd.f32 %v2171, %v2406
  %v2448 = vadd.f32 %v2172, %v2409
  %v2449 = vadd.f32 %v2173, %v2412
  %v2450 = vadd.f32 %v2174, %v2415
  %v2451 = vadd.f32 %v2175, %v2418
  %2452 = vst [vmem:[%s2] sm:$0xff] %v2420
  %2453 = vst [vmem:[%s2 + $0x8] sm:$0xff] %v2421
  %2454 = vst [vmem:[%s2 + $0x10] sm:$0xff] %v2422
  %2455 = vst [vmem:[%s2 + $0x18] sm:$0xff] %v2423
  %2456 = vst [vmem:[%s2 + $0x20] sm:$0xff] %v2424
  %2457 = vst [vmem:[%s2 + $0x28] sm:$0xff] %v2425
  %2458 = vst [vmem:[%s2 + $0x30] sm:$0xff] %v2426
  %2459 = vst [vmem:[%s2 + $0x38] sm:$0xff] %v2427
  %2460 = vst [vmem:[%s2 + $0x40] sm:$0xff] %v2428
  %2461 = vst [vmem:[%s2 + $0x48] sm:$0xff] %v2429
  %2462 = vst [vmem:[%s2 + $0x50] sm:$0xff] %v2430
  %2463 = vst [vmem:[%s2 + $0x58] sm:$0xff] %v2431
  %2464 = vst [vmem:[%s2 + $0x60] sm:$0xff] %v2432
  %2465 = vst [vmem:[%s2 + $0x68] sm:$0xff] %v2433
  %2466 = vst [vmem:[%s2 + $0x70] sm:$0xff] %v2434
  %2467 = vst [vmem:[%s2 + $0x78] sm:$0xff] %v2435
  %2468 = vst [vmem:[%s2 + $0x80] sm:$0xff] %v2436
  %2469 = vst [vmem:[%s2 + $0x88] sm:$0xff] %v2437
  %2470 = vst [vmem:[%s2 + $0x90] sm:$0xff] %v2438
  %2471 = vst [vmem:[%s2 + $0x98] sm:$0xff] %v2439
  %2472 = vst [vmem:[%s2 + $0xa0] sm:$0xff] %v2440
  %2473 = vst [vmem:[%s2 + $0xa8] sm:$0xff] %v2441
  %2474 = vst [vmem:[%s2 + $0xb0] sm:$0xff] %v2442
  %2475 = vst [vmem:[%s2 + $0xb8] sm:$0xff] %v2443
  %2476 = vst [vmem:[%s2 + $0xc0] sm:$0xff] %v2444
  %2477 = vst [vmem:[%s2 + $0xc8] sm:$0xff] %v2445
  %2478 = vst [vmem:[%s2 + $0xd0] sm:$0xff] %v2446
  %2479 = vst [vmem:[%s2 + $0xd8] sm:$0xff] %v2447
  %2480 = vst [vmem:[%s2 + $0xe0] sm:$0xff] %v2448
  %2481 = vst [vmem:[%s2 + $0xe8] sm:$0xff] %v2449
  %2482 = vst [vmem:[%s2 + $0xf0] sm:$0xff] %v2450
  %2483 = vst [vmem:[%s2 + $0xf8] sm:$0xff] %v2451
  %s2484 = scalar_lea.vmem %s0, 432
  %v2485 = vld [vmem:[%s2484] sm:$0xff]
  %v2486 = vld [vmem:[%s2484 + $0x8] sm:$0xff]
  %v2487 = vld [vmem:[%s2484 + $0x18] sm:$0xff]
  %v2488 = vld [vmem:[%s2484 + $0x20] sm:$0xff]
  %v2489 = vld [vmem:[%s2484 + $0x30] sm:$0xff]
  %v2490 = vld [vmem:[%s2484 + $0x38] sm:$0xff]
  %v2491 = vld [vmem:[%s2484 + $0x48] sm:$0xff]
  %v2492 = vld [vmem:[%s2484 + $0x50] sm:$0xff]
  %v2493 = vld [vmem:[%s2484 + $0x60] sm:$0xff]
  %v2494 = vld [vmem:[%s2484 + $0x68] sm:$0xff]
  %v2495 = vld [vmem:[%s2484 + $0x78] sm:$0xff]
  %v2496 = vld [vmem:[%s2484 + $0x80] sm:$0xff]
  %v2497 = vld [vmem:[%s2484 + $0x90] sm:$0xff]
  %v2498 = vld [vmem:[%s2484 + $0x98] sm:$0xff]
  %v2499 = vld [vmem:[%s2484 + $0xa8] sm:$0xff]
  %v2500 = vld [vmem:[%s2484 + $0xb0] sm:$0xff]
  %v2501 = vld [vmem:[%s2484 + $0xc0] sm:$0xff]
  %v2502 = vld [vmem:[%s2484 + $0xc8] sm:$0xff]
  %v2503 = vld [vmem:[%s2484 + $0xd8] sm:$0xff]
  %v2504 = vld [vmem:[%s2484 + $0xe0] sm:$0xff]
  %v2505 = vld [vmem:[%s2484 + $0xf0] sm:$0xff]
  %v2506 = vld [vmem:[%s2484 + $0xf8] sm:$0xff]
  %v2507 = vld [vmem:[%s2484 + $0x108] sm:$0xff]
  %v2508 = vld [vmem:[%s2484 + $0x110] sm:$0xff]
  %v2509 = vld [vmem:[%s2484 + $0x120] sm:$0xff]
  %v2510 = vld [vmem:[%s2484 + $0x128] sm:$0xff]
  %v2511 = vld [vmem:[%s2484 + $0x138] sm:$0xff]
  %v2512 = vld [vmem:[%s2484 + $0x140] sm:$0xff]
  %v2513 = vld [vmem:[%s2484 + $0x150] sm:$0xff]
  %v2514 = vld [vmem:[%s2484 + $0x158] sm:$0xff]
  %v2515 = vld [vmem:[%s2484 + $0x168] sm:$0xff]
  %v2516 = vld [vmem:[%s2484 + $0x170] sm:$0xff]
  %v2517 = vld [vmem:[%s2484 + $0x1] sm:$0xff]
  %v2518 = vld [vmem:[%s2484 + $0x9] sm:$0xff]
  %v2519 = vld [vmem:[%s2484 + $0x19] sm:$0xff]
  %v2520 = vld [vmem:[%s2484 + $0x21] sm:$0xff]
  %v2521 = vld [vmem:[%s2484 + $0x31] sm:$0xff]
  %v2522 = vld [vmem:[%s2484 + $0x39] sm:$0xff]
  %v2523 = vld [vmem:[%s2484 + $0x49] sm:$0xff]
  %v2524 = vld [vmem:[%s2484 + $0x51] sm:$0xff]
  %v2525 = vld [vmem:[%s2484 + $0x61] sm:$0xff]
  %v2526 = vld [vmem:[%s2484 + $0x69] sm:$0xff]
  %v2527 = vld [vmem:[%s2484 + $0x79] sm:$0xff]
  %v2528 = vld [vmem:[%s2484 + $0x81] sm:$0xff]
  %v2529 = vld [vmem:[%s2484 + $0x91] sm:$0xff]
  %v2530 = vld [vmem:[%s2484 + $0x99] sm:$0xff]
  %v2531 = vld [vmem:[%s2484 + $0xa9] sm:$0xff]
  %v2532 = vld [vmem:[%s2484 + $0xb1] sm:$0xff]
  %v2533 = vld [vmem:[%s2484 + $0xc1] sm:$0xff]
  %v2534 = vld [vmem:[%s2484 + $0xc9] sm:$0xff]
  %v2535 = vld [vmem:[%s2484 + $0xd9] sm:$0xff]
  %v2536 = vld [vmem:[%s2484 + $0xe1] sm:$0xff]
  %v2537 = vld [vmem:[%s2484 + $0xf1] sm:$0xff]
  %v2538 = vld [vmem:[%s2484 + $0xf9] sm:$0xff]
  %v2539 = vld [vmem:[%s2484 + $0x109] sm:$0xff]
  %v2540 = vld [vmem:[%s2484 + $0x111] sm:$0xff]
  %v2541 = vld [vmem:[%s2484 + $0x121] sm:$0xff]
  %v2542 = vld [vmem:[%s2484 + $0x129] sm:$0xff]
  %v2543 = vld [vmem:[%s2484 + $0x139] sm:$0xff]
  %v2544 = vld [vmem:[%s2484 + $0x141] sm:$0xff]
  %v2545 = vld [vmem:[%s2484 + $0x151] sm:$0xff]
  %v2546 = vld [vmem:[%s2484 + $0x159] sm:$0xff]
  %v2547 = vld [vmem:[%s2484 + $0x169] sm:$0xff]
  %v2548 = vld [vmem:[%s2484 + $0x171] sm:$0xff]
  %v2550 = vsel %vm92, %v2517, 0
  %v2553 = vsel %vm92, %v2518, 0
  %v2556 = vsel %vm92, %v2519, 0
  %v2559 = vsel %vm92, %v2520, 0
  %v2562 = vsel %vm92, %v2521, 0
  %v2565 = vsel %vm92, %v2522, 0
  %v2568 = vsel %vm92, %v2523, 0
  %v2571 = vsel %vm92, %v2524, 0
  %v2574 = vsel %vm92, %v2525, 0
  %v2577 = vsel %vm92, %v2526, 0
  %v2580 = vsel %vm92, %v2527, 0
  %v2583 = vsel %vm92, %v2528, 0
  %v2586 = vsel %vm92, %v2529, 0
  %v2589 = vsel %vm92, %v2530, 0
  %v2592 = vsel %vm92, %v2531, 0
  %v2595 = vsel %vm92, %v2532, 0
  %v2598 = vsel %vm92, %v2533, 0
  %v2601 = vsel %vm92, %v2534, 0
  %v2604 = vsel %vm92, %v2535, 0
  %v2607 = vsel %vm92, %v2536, 0
  %v2610 = vsel %vm92, %v2537, 0
  %v2613 = vsel %vm92, %v2538, 0
  %v2616 = vsel %vm92, %v2539, 0
  %v2619 = vsel %vm92, %v2540, 0
  %v2622 = vsel %vm92, %v2541, 0
  %v2625 = vsel %vm92, %v2542, 0
  %v2628 = vsel %vm92, %v2543, 0
  %v2631 = vsel %vm92, %v2544, 0
  %v2634 = vsel %vm92, %v2545, 0
  %v2637 = vsel %vm92, %v2546, 0
  %v2640 = vsel %vm92, %v2547, 0
  %v2643 = vsel %vm92, %v2548, 0
  %2645 = vmatpush.msra.mxu0 0.0
  %2646 = vmatpush.msra.mxu0 0.0
  %2647 = vmatpush.msra.mxu0 0.0
  %2648 = vmatpush.msra.mxu0 0.0
  %2649 = vmatpush.msra.mxu0 0.0
  %2650 = vmatpush.msra.mxu0 0.0
  %2651 = vmatpush.msra.mxu0 0.0
  %2652 = vmatpush.msra.mxu0 0.0
  %2653 = vmatpush.msra.mxu0 0.0
  %2654 = vmatpush.msra.mxu0 0.0
  %2655 = vmatpush.msra.mxu0 0.0
  %2656 = vmatpush.msra.mxu0 0.0
  %2657 = vmatpush.msra.mxu0 0.0
  %2658 = vmatpush.msra.mxu0 0.0
  %2659 = vmatpush.msra.mxu0 0.0
  %2660 = vmatpush.msra.mxu0 %v191
  %2661 = vmatmul.f32.gmra.mxu0 %v2550
  %v2662 = vpop.f32.mrf.mxu0
  %v2663 = vadd.f32 0.0, %v2662
  %2664 = vmatmul.f32.gmra.mxu0 %v2553
  %v2665 = vpop.f32.mrf.mxu0
  %v2666 = vadd.f32 0.0, %v2665
  %2667 = vmatmul.f32.gmra.mxu0 %v2556
  %v2668 = vpop.f32.mrf.mxu0
  %v2669 = vadd.f32 0.0, %v2668
  %2670 = vmatmul.f32.gmra.mxu0 %v2559
  %v2671 = vpop.f32.mrf.mxu0
  %v2672 = vadd.f32 0.0, %v2671
  %2673 = vmatmul.f32.gmra.mxu0 %v2562
  %v2674 = vpop.f32.mrf.mxu0
  %v2675 = vadd.f32 0.0, %v2674
  %2676 = vmatmul.f32.gmra.mxu0 %v2565
  %v2677 = vpop.f32.mrf.mxu0
  %v2678 = vadd.f32 0.0, %v2677
  %2679 = vmatmul.f32.gmra.mxu0 %v2568
  %v2680 = vpop.f32.mrf.mxu0
  %v2681 = vadd.f32 0.0, %v2680
  %2682 = vmatmul.f32.gmra.mxu0 %v2571
  %v2683 = vpop.f32.mrf.mxu0
  %v2684 = vadd.f32 0.0, %v2683
  %2685 = vmatmul.f32.gmra.mxu0 %v2574
  %v2686 = vpop.f32.mrf.mxu0
  %v2687 = vadd.f32 0.0, %v2686
  %2688 = vmatmul.f32.gmra.mxu0 %v2577
  %v2689 = vpop.f32.mrf.mxu0
  %v2690 = vadd.f32 0.0, %v2689
  %2691 = vmatmul.f32.gmra.mxu0 %v2580
  %v2692 = vpop.f32.mrf.mxu0
  %v2693 = vadd.f32 0.0, %v2692
  %2694 = vmatmul.f32.gmra.mxu0 %v2583
  %v2695 = vpop.f32.mrf.mxu0
  %v2696 = vadd.f32 0.0, %v2695
  %2697 = vmatmul.f32.gmra.mxu0 %v2586
  %v2698 = vpop.f32.mrf.mxu0
  %v2699 = vadd.f32 0.0, %v2698
  %2700 = vmatmul.f32.gmra.mxu0 %v2589
  %v2701 = vpop.f32.mrf.mxu0
  %v2702 = vadd.f32 0.0, %v2701
  %2703 = vmatmul.f32.gmra.mxu0 %v2592
  %v2704 = vpop.f32.mrf.mxu0
  %v2705 = vadd.f32 0.0, %v2704
  %2706 = vmatmul.f32.gmra.mxu0 %v2595
  %v2707 = vpop.f32.mrf.mxu0
  %v2708 = vadd.f32 0.0, %v2707
  %2709 = vmatmul.f32.gmra.mxu0 %v2598
  %v2710 = vpop.f32.mrf.mxu0
  %v2711 = vadd.f32 0.0, %v2710
  %2712 = vmatmul.f32.gmra.mxu0 %v2601
  %v2713 = vpop.f32.mrf.mxu0
  %v2714 = vadd.f32 0.0, %v2713
  %2715 = vmatmul.f32.gmra.mxu0 %v2604
  %v2716 = vpop.f32.mrf.mxu0
  %v2717 = vadd.f32 0.0, %v2716
  %2718 = vmatmul.f32.gmra.mxu0 %v2607
  %v2719 = vpop.f32.mrf.mxu0
  %v2720 = vadd.f32 0.0, %v2719
  %2721 = vmatmul.f32.gmra.mxu0 %v2610
  %v2722 = vpop.f32.mrf.mxu0
  %v2723 = vadd.f32 0.0, %v2722
  %2724 = vmatmul.f32.gmra.mxu0 %v2613
  %v2725 = vpop.f32.mrf.mxu0
  %v2726 = vadd.f32 0.0, %v2725
  %2727 = vmatmul.f32.gmra.mxu0 %v2616
  %v2728 = vpop.f32.mrf.mxu0
  %v2729 = vadd.f32 0.0, %v2728
  %2730 = vmatmul.f32.gmra.mxu0 %v2619
  %v2731 = vpop.f32.mrf.mxu0
  %v2732 = vadd.f32 0.0, %v2731
  %2733 = vmatmul.f32.gmra.mxu0 %v2622
  %v2734 = vpop.f32.mrf.mxu0
  %v2735 = vadd.f32 0.0, %v2734
  %2736 = vmatmul.f32.gmra.mxu0 %v2625
  %v2737 = vpop.f32.mrf.mxu0
  %v2738 = vadd.f32 0.0, %v2737
  %2739 = vmatmul.f32.gmra.mxu0 %v2628
  %v2740 = vpop.f32.mrf.mxu0
  %v2741 = vadd.f32 0.0, %v2740
  %2742 = vmatmul.f32.gmra.mxu0 %v2631
  %v2743 = vpop.f32.mrf.mxu0
  %v2744 = vadd.f32 0.0, %v2743
  %2745 = vmatmul.f32.gmra.mxu0 %v2634
  %v2746 = vpop.f32.mrf.mxu0
  %v2747 = vadd.f32 0.0, %v2746
  %2748 = vmatmul.f32.gmra.mxu0 %v2637
  %v2749 = vpop.f32.mrf.mxu0
  %v2750 = vadd.f32 0.0, %v2749
  %2751 = vmatmul.f32.gmra.mxu0 %v2640
  %v2752 = vpop.f32.mrf.mxu0
  %v2753 = vadd.f32 0.0, %v2752
  %2754 = vmatmul.f32.gmra.mxu0 %v2643
  %v2755 = vpop.f32.mrf.mxu0
  %v2756 = vadd.f32 0.0, %v2755
  %2757 = vdwg.mxu0
  %v2759 = vsel %vm92, %v2485, 0
  %v2762 = vsel %vm92, %v2486, 0
  %v2765 = vsel %vm92, %v2487, 0
  %v2768 = vsel %vm92, %v2488, 0
  %v2771 = vsel %vm92, %v2489, 0
  %v2774 = vsel %vm92, %v2490, 0
  %v2777 = vsel %vm92, %v2491, 0
  %v2780 = vsel %vm92, %v2492, 0
  %v2783 = vsel %vm92, %v2493, 0
  %v2786 = vsel %vm92, %v2494, 0
  %v2789 = vsel %vm92, %v2495, 0
  %v2792 = vsel %vm92, %v2496, 0
  %v2795 = vsel %vm92, %v2497, 0
  %v2798 = vsel %vm92, %v2498, 0
  %v2801 = vsel %vm92, %v2499, 0
  %v2804 = vsel %vm92, %v2500, 0
  %v2807 = vsel %vm92, %v2501, 0
  %v2810 = vsel %vm92, %v2502, 0
  %v2813 = vsel %vm92, %v2503, 0
  %v2816 = vsel %vm92, %v2504, 0
  %v2819 = vsel %vm92, %v2505, 0
  %v2822 = vsel %vm92, %v2506, 0
  %v2825 = vsel %vm92, %v2507, 0
  %v2828 = vsel %vm92, %v2508, 0
  %v2831 = vsel %vm92, %v2509, 0
  %v2834 = vsel %vm92, %v2510, 0
  %v2837 = vsel %vm92, %v2511, 0
  %v2840 = vsel %vm92, %v2512, 0
  %v2843 = vsel %vm92, %v2513, 0
  %v2846 = vsel %vm92, %v2514, 0
  %v2849 = vsel %vm92, %v2515, 0
  %v2852 = vsel %vm92, %v2516, 0
  %2854 = vmatpush.msra.mxu0 0.0
  %2855 = vmatpush.msra.mxu0 0.0
  %2856 = vmatpush.msra.mxu0 0.0
  %2857 = vmatpush.msra.mxu0 0.0
  %2858 = vmatpush.msra.mxu0 0.0
  %2859 = vmatpush.msra.mxu0 0.0
  %2860 = vmatpush.msra.mxu0 0.0
  %2861 = vmatpush.msra.mxu0 0.0
  %2862 = vmatpush.msra.mxu0 0.0
  %2863 = vmatpush.msra.mxu0 0.0
  %2864 = vmatpush.msra.mxu0 0.0
  %2865 = vmatpush.msra.mxu0 0.0
  %2866 = vmatpush.msra.mxu0 0.0
  %2867 = vmatpush.msra.mxu0 0.0
  %2868 = vmatpush.msra.mxu0 0.0
  %2869 = vmatpush.msra.mxu0 %v403
  %2870 = vmatmul.f32.gmra.mxu0 %v2759
  %v2871 = vpop.f32.mrf.mxu0
  %v2872 = vadd.f32 %v2663, %v2871
  %2873 = vmatmul.f32.gmra.mxu0 %v2762
  %v2874 = vpop.f32.mrf.mxu0
  %v2875 = vadd.f32 %v2666, %v2874
  %2876 = vmatmul.f32.gmra.mxu0 %v2765
  %v2877 = vpop.f32.mrf.mxu0
  %v2878 = vadd.f32 %v2669, %v2877
  %2879 = vmatmul.f32.gmra.mxu0 %v2768
  %v2880 = vpop.f32.mrf.mxu0
  %v2881 = vadd.f32 %v2672, %v2880
  %2882 = vmatmul.f32.gmra.mxu0 %v2771
  %v2883 = vpop.f32.mrf.mxu0
  %v2884 = vadd.f32 %v2675, %v2883
  %2885 = vmatmul.f32.gmra.mxu0 %v2774
  %v2886 = vpop.f32.mrf.mxu0
  %v2887 = vadd.f32 %v2678, %v2886
  %2888 = vmatmul.f32.gmra.mxu0 %v2777
  %v2889 = vpop.f32.mrf.mxu0
  %v2890 = vadd.f32 %v2681, %v2889
  %2891 = vmatmul.f32.gmra.mxu0 %v2780
  %v2892 = vpop.f32.mrf.mxu0
  %v2893 = vadd.f32 %v2684, %v2892
  %2894 = vmatmul.f32.gmra.mxu0 %v2783
  %v2895 = vpop.f32.mrf.mxu0
  %v2896 = vadd.f32 %v2687, %v2895
  %2897 = vmatmul.f32.gmra.mxu0 %v2786
  %v2898 = vpop.f32.mrf.mxu0
  %v2899 = vadd.f32 %v2690, %v2898
  %2900 = vmatmul.f32.gmra.mxu0 %v2789
  %v2901 = vpop.f32.mrf.mxu0
  %v2902 = vadd.f32 %v2693, %v2901
  %2903 = vmatmul.f32.gmra.mxu0 %v2792
  %v2904 = vpop.f32.mrf.mxu0
  %v2905 = vadd.f32 %v2696, %v2904
  %2906 = vmatmul.f32.gmra.mxu0 %v2795
  %v2907 = vpop.f32.mrf.mxu0
  %v2908 = vadd.f32 %v2699, %v2907
  %2909 = vmatmul.f32.gmra.mxu0 %v2798
  %v2910 = vpop.f32.mrf.mxu0
  %v2911 = vadd.f32 %v2702, %v2910
  %2912 = vmatmul.f32.gmra.mxu0 %v2801
  %v2913 = vpop.f32.mrf.mxu0
  %v2914 = vadd.f32 %v2705, %v2913
  %2915 = vmatmul.f32.gmra.mxu0 %v2804
  %v2916 = vpop.f32.mrf.mxu0
  %v2917 = vadd.f32 %v2708, %v2916
  %2918 = vmatmul.f32.gmra.mxu0 %v2807
  %v2919 = vpop.f32.mrf.mxu0
  %v2920 = vadd.f32 %v2711, %v2919
  %2921 = vmatmul.f32.gmra.mxu0 %v2810
  %v2922 = vpop.f32.mrf.mxu0
  %v2923 = vadd.f32 %v2714, %v2922
  %2924 = vmatmul.f32.gmra.mxu0 %v2813
  %v2925 = vpop.f32.mrf.mxu0
  %v2926 = vadd.f32 %v2717, %v2925
  %2927 = vmatmul.f32.gmra.mxu0 %v2816
  %v2928 = vpop.f32.mrf.mxu0
  %v2929 = vadd.f32 %v2720, %v2928
  %2930 = vmatmul.f32.gmra.mxu0 %v2819
  %v2931 = vpop.f32.mrf.mxu0
  %v2932 = vadd.f32 %v2723, %v2931
  %2933 = vmatmul.f32.gmra.mxu0 %v2822
  %v2934 = vpop.f32.mrf.mxu0
  %v2935 = vadd.f32 %v2726, %v2934
  %2936 = vmatmul.f32.gmra.mxu0 %v2825
  %v2937 = vpop.f32.mrf.mxu0
  %v2938 = vadd.f32 %v2729, %v2937
  %2939 = vmatmul.f32.gmra.mxu0 %v2828
  %v2940 = vpop.f32.mrf.mxu0
  %v2941 = vadd.f32 %v2732, %v2940
  %2942 = vmatmul.f32.gmra.mxu0 %v2831
  %v2943 = vpop.f32.mrf.mxu0
  %v2944 = vadd.f32 %v2735, %v2943
  %2945 = vmatmul.f32.gmra.mxu0 %v2834
  %v2946 = vpop.f32.mrf.mxu0
  %v2947 = vadd.f32 %v2738, %v2946
  %2948 = vmatmul.f32.gmra.mxu0 %v2837
  %v2949 = vpop.f32.mrf.mxu0
  %v2950 = vadd.f32 %v2741, %v2949
  %2951 = vmatmul.f32.gmra.mxu0 %v2840
  %v2952 = vpop.f32.mrf.mxu0
  %v2953 = vadd.f32 %v2744, %v2952
  %2954 = vmatmul.f32.gmra.mxu0 %v2843
  %v2955 = vpop.f32.mrf.mxu0
  %v2956 = vadd.f32 %v2747, %v2955
  %2957 = vmatmul.f32.gmra.mxu0 %v2846
  %v2958 = vpop.f32.mrf.mxu0
  %v2959 = vadd.f32 %v2750, %v2958
  %2960 = vmatmul.f32.gmra.mxu0 %v2849
  %v2961 = vpop.f32.mrf.mxu0
  %v2962 = vadd.f32 %v2753, %v2961
  %2963 = vmatmul.f32.gmra.mxu0 %v2852
  %v2964 = vpop.f32.mrf.mxu0
  %v2965 = vadd.f32 %v2756, %v2964
  %2966 = vdwg.mxu0
  %v2967 = vld [vmem:[%s2484 + $0x2] sm:$0xff]
  %v2968 = vld [vmem:[%s2484 + $0xa] sm:$0xff]
  %v2969 = vld [vmem:[%s2484 + $0x1a] sm:$0xff]
  %v2970 = vld [vmem:[%s2484 + $0x22] sm:$0xff]
  %v2971 = vld [vmem:[%s2484 + $0x32] sm:$0xff]
  %v2972 = vld [vmem:[%s2484 + $0x3a] sm:$0xff]
  %v2973 = vld [vmem:[%s2484 + $0x4a] sm:$0xff]
  %v2974 = vld [vmem:[%s2484 + $0x52] sm:$0xff]
  %v2975 = vld [vmem:[%s2484 + $0x62] sm:$0xff]
  %v2976 = vld [vmem:[%s2484 + $0x6a] sm:$0xff]
  %v2977 = vld [vmem:[%s2484 + $0x7a] sm:$0xff]
  %v2978 = vld [vmem:[%s2484 + $0x82] sm:$0xff]
  %v2979 = vld [vmem:[%s2484 + $0x92] sm:$0xff]
  %v2980 = vld [vmem:[%s2484 + $0x9a] sm:$0xff]
  %v2981 = vld [vmem:[%s2484 + $0xaa] sm:$0xff]
  %v2982 = vld [vmem:[%s2484 + $0xb2] sm:$0xff]
  %v2983 = vld [vmem:[%s2484 + $0xc2] sm:$0xff]
  %v2984 = vld [vmem:[%s2484 + $0xca] sm:$0xff]
  %v2985 = vld [vmem:[%s2484 + $0xda] sm:$0xff]
  %v2986 = vld [vmem:[%s2484 + $0xe2] sm:$0xff]
  %v2987 = vld [vmem:[%s2484 + $0xf2] sm:$0xff]
  %v2988 = vld [vmem:[%s2484 + $0xfa] sm:$0xff]
  %v2989 = vld [vmem:[%s2484 + $0x10a] sm:$0xff]
  %v2990 = vld [vmem:[%s2484 + $0x112] sm:$0xff]
  %v2991 = vld [vmem:[%s2484 + $0x122] sm:$0xff]
  %v2992 = vld [vmem:[%s2484 + $0x12a] sm:$0xff]
  %v2993 = vld [vmem:[%s2484 + $0x13a] sm:$0xff]
  %v2994 = vld [vmem:[%s2484 + $0x142] sm:$0xff]
  %v2995 = vld [vmem:[%s2484 + $0x152] sm:$0xff]
  %v2996 = vld [vmem:[%s2484 + $0x15a] sm:$0xff]
  %v2997 = vld [vmem:[%s2484 + $0x16a] sm:$0xff]
  %v2998 = vld [vmem:[%s2484 + $0x172] sm:$0xff]
  %v3000 = vsel %vm92, %v2967, 0
  %v3003 = vsel %vm92, %v2968, 0
  %v3006 = vsel %vm92, %v2969, 0
  %v3009 = vsel %vm92, %v2970, 0
  %v3012 = vsel %vm92, %v2971, 0
  %v3015 = vsel %vm92, %v2972, 0
  %v3018 = vsel %vm92, %v2973, 0
  %v3021 = vsel %vm92, %v2974, 0
  %v3024 = vsel %vm92, %v2975, 0
  %v3027 = vsel %vm92, %v2976, 0
  %v3030 = vsel %vm92, %v2977, 0
  %v3033 = vsel %vm92, %v2978, 0
  %v3036 = vsel %vm92, %v2979, 0
  %v3039 = vsel %vm92, %v2980, 0
  %v3042 = vsel %vm92, %v2981, 0
  %v3045 = vsel %vm92, %v2982, 0
  %v3048 = vsel %vm92, %v2983, 0
  %v3051 = vsel %vm92, %v2984, 0
  %v3054 = vsel %vm92, %v2985, 0
  %v3057 = vsel %vm92, %v2986, 0
  %v3060 = vsel %vm92, %v2987, 0
  %v3063 = vsel %vm92, %v2988, 0
  %v3066 = vsel %vm92, %v2989, 0
  %v3069 = vsel %vm92, %v2990, 0
  %v3072 = vsel %vm92, %v2991, 0
  %v3075 = vsel %vm92, %v2992, 0
  %v3078 = vsel %vm92, %v2993, 0
  %v3081 = vsel %vm92, %v2994, 0
  %v3084 = vsel %vm92, %v2995, 0
  %v3087 = vsel %vm92, %v2996, 0
  %v3090 = vsel %vm92, %v2997, 0
  %v3093 = vsel %vm92, %v2998, 0
  %3095 = vmatpush.msra.mxu0 0.0
  %3096 = vmatpush.msra.mxu0 0.0
  %3097 = vmatpush.msra.mxu0 0.0
  %3098 = vmatpush.msra.mxu0 0.0
  %3099 = vmatpush.msra.mxu0 0.0
  %3100 = vmatpush.msra.mxu0 0.0
  %3101 = vmatpush.msra.mxu0 0.0
  %3102 = vmatpush.msra.mxu0 0.0
  %3103 = vmatpush.msra.mxu0 0.0
  %3104 = vmatpush.msra.mxu0 0.0
  %3105 = vmatpush.msra.mxu0 0.0
  %3106 = vmatpush.msra.mxu0 0.0
  %3107 = vmatpush.msra.mxu0 0.0
  %3108 = vmatpush.msra.mxu0 0.0
  %3109 = vmatpush.msra.mxu0 0.0
  %3110 = vmatpush.msra.mxu0 %v647
  %3111 = vmatmul.f32.gmra.mxu0 %v3000
  %v3112 = vpop.f32.mrf.mxu0
  %v3113 = vadd.f32 0.0, %v3112
  %3114 = vmatmul.f32.gmra.mxu0 %v3003
  %v3115 = vpop.f32.mrf.mxu0
  %v3116 = vadd.f32 0.0, %v3115
  %3117 = vmatmul.f32.gmra.mxu0 %v3006
  %v3118 = vpop.f32.mrf.mxu0
  %v3119 = vadd.f32 0.0, %v3118
  %3120 = vmatmul.f32.gmra.mxu0 %v3009
  %v3121 = vpop.f32.mrf.mxu0
  %v3122 = vadd.f32 0.0, %v3121
  %3123 = vmatmul.f32.gmra.mxu0 %v3012
  %v3124 = vpop.f32.mrf.mxu0
  %v3125 = vadd.f32 0.0, %v3124
  %3126 = vmatmul.f32.gmra.mxu0 %v3015
  %v3127 = vpop.f32.mrf.mxu0
  %v3128 = vadd.f32 0.0, %v3127
  %3129 = vmatmul.f32.gmra.mxu0 %v3018
  %v3130 = vpop.f32.mrf.mxu0
  %v3131 = vadd.f32 0.0, %v3130
  %3132 = vmatmul.f32.gmra.mxu0 %v3021
  %v3133 = vpop.f32.mrf.mxu0
  %v3134 = vadd.f32 0.0, %v3133
  %3135 = vmatmul.f32.gmra.mxu0 %v3024
  %v3136 = vpop.f32.mrf.mxu0
  %v3137 = vadd.f32 0.0, %v3136
  %3138 = vmatmul.f32.gmra.mxu0 %v3027
  %v3139 = vpop.f32.mrf.mxu0
  %v3140 = vadd.f32 0.0, %v3139
  %3141 = vmatmul.f32.gmra.mxu0 %v3030
  %v3142 = vpop.f32.mrf.mxu0
  %v3143 = vadd.f32 0.0, %v3142
  %3144 = vmatmul.f32.gmra.mxu0 %v3033
  %v3145 = vpop.f32.mrf.mxu0
  %v3146 = vadd.f32 0.0, %v3145
  %3147 = vmatmul.f32.gmra.mxu0 %v3036
  %v3148 = vpop.f32.mrf.mxu0
  %v3149 = vadd.f32 0.0, %v3148
  %3150 = vmatmul.f32.gmra.mxu0 %v3039
  %v3151 = vpop.f32.mrf.mxu0
  %v3152 = vadd.f32 0.0, %v3151
  %3153 = vmatmul.f32.gmra.mxu0 %v3042
  %v3154 = vpop.f32.mrf.mxu0
  %v3155 = vadd.f32 0.0, %v3154
  %3156 = vmatmul.f32.gmra.mxu0 %v3045
  %v3157 = vpop.f32.mrf.mxu0
  %v3158 = vadd.f32 0.0, %v3157
  %3159 = vmatmul.f32.gmra.mxu0 %v3048
  %v3160 = vpop.f32.mrf.mxu0
  %v3161 = vadd.f32 0.0, %v3160
  %3162 = vmatmul.f32.gmra.mxu0 %v3051
  %v3163 = vpop.f32.mrf.mxu0
  %v3164 = vadd.f32 0.0, %v3163
  %3165 = vmatmul.f32.gmra.mxu0 %v3054
  %v3166 = vpop.f32.mrf.mxu0
  %v3167 = vadd.f32 0.0, %v3166
  %3168 = vmatmul.f32.gmra.mxu0 %v3057
  %v3169 = vpop.f32.mrf.mxu0
  %v3170 = vadd.f32 0.0, %v3169
  %3171 = vmatmul.f32.gmra.mxu0 %v3060
  %v3172 = vpop.f32.mrf.mxu0
  %v3173 = vadd.f32 0.0, %v3172
  %3174 = vmatmul.f32.gmra.mxu0 %v3063
  %v3175 = vpop.f32.mrf.mxu0
  %v3176 = vadd.f32 0.0, %v3175
  %3177 = vmatmul.f32.gmra.mxu0 %v3066
  %v3178 = vpop.f32.mrf.mxu0
  %v3179 = vadd.f32 0.0, %v3178
  %3180 = vmatmul.f32.gmra.mxu0 %v3069
  %v3181 = vpop.f32.mrf.mxu0
  %v3182 = vadd.f32 0.0, %v3181
  %3183 = vmatmul.f32.gmra.mxu0 %v3072
  %v3184 = vpop.f32.mrf.mxu0
  %v3185 = vadd.f32 0.0, %v3184
  %3186 = vmatmul.f32.gmra.mxu0 %v3075
  %v3187 = vpop.f32.mrf.mxu0
  %v3188 = vadd.f32 0.0, %v3187
  %3189 = vmatmul.f32.gmra.mxu0 %v3078
  %v3190 = vpop.f32.mrf.mxu0
  %v3191 = vadd.f32 0.0, %v3190
  %3192 = vmatmul.f32.gmra.mxu0 %v3081
  %v3193 = vpop.f32.mrf.mxu0
  %v3194 = vadd.f32 0.0, %v3193
  %3195 = vmatmul.f32.gmra.mxu0 %v3084
  %v3196 = vpop.f32.mrf.mxu0
  %v3197 = vadd.f32 0.0, %v3196
  %3198 = vmatmul.f32.gmra.mxu0 %v3087
  %v3199 = vpop.f32.mrf.mxu0
  %v3200 = vadd.f32 0.0, %v3199
  %3201 = vmatmul.f32.gmra.mxu0 %v3090
  %v3202 = vpop.f32.mrf.mxu0
  %v3203 = vadd.f32 0.0, %v3202
  %3204 = vmatmul.f32.gmra.mxu0 %v3093
  %v3205 = vpop.f32.mrf.mxu0
  %v3206 = vadd.f32 0.0, %v3205
  %3207 = vdwg.mxu0
  %v3208 = vadd.f32 %v2872, %v3113
  %v3209 = vadd.f32 %v2875, %v3116
  %v3210 = vadd.f32 %v2878, %v3119
  %v3211 = vadd.f32 %v2881, %v3122
  %v3212 = vadd.f32 %v2884, %v3125
  %v3213 = vadd.f32 %v2887, %v3128
  %v3214 = vadd.f32 %v2890, %v3131
  %v3215 = vadd.f32 %v2893, %v3134
  %v3216 = vadd.f32 %v2896, %v3137
  %v3217 = vadd.f32 %v2899, %v3140
  %v3218 = vadd.f32 %v2902, %v3143
  %v3219 = vadd.f32 %v2905, %v3146
  %v3220 = vadd.f32 %v2908, %v3149
  %v3221 = vadd.f32 %v2911, %v3152
  %v3222 = vadd.f32 %v2914, %v3155
  %v3223 = vadd.f32 %v2917, %v3158
  %v3224 = vadd.f32 %v2920, %v3161
  %v3225 = vadd.f32 %v2923, %v3164
  %v3226 = vadd.f32 %v2926, %v3167
  %v3227 = vadd.f32 %v2929, %v3170
  %v3228 = vadd.f32 %v2932, %v3173
  %v3229 = vadd.f32 %v2935, %v3176
  %v3230 = vadd.f32 %v2938, %v3179
  %v3231 = vadd.f32 %v2941, %v3182
  %v3232 = vadd.f32 %v2944, %v3185
  %v3233 = vadd.f32 %v2947, %v3188
  %v3234 = vadd.f32 %v2950, %v3191
  %v3235 = vadd.f32 %v2953, %v3194
  %v3236 = vadd.f32 %v2956, %v3197
  %v3237 = vadd.f32 %v2959, %v3200
  %v3238 = vadd.f32 %v2962, %v3203
  %v3239 = vadd.f32 %v2965, %v3206
  %s3240 = scalar_lea.vmem %s0, 456
  %v3241 = vld [vmem:[%s3240] sm:$0xff]
  %v3242 = vld [vmem:[%s3240 + $0x8] sm:$0xff]
  %v3243 = vld [vmem:[%s3240 + $0x18] sm:$0xff]
  %v3244 = vld [vmem:[%s3240 + $0x20] sm:$0xff]
  %v3245 = vld [vmem:[%s3240 + $0x30] sm:$0xff]
  %v3246 = vld [vmem:[%s3240 + $0x38] sm:$0xff]
  %v3247 = vld [vmem:[%s3240 + $0x48] sm:$0xff]
  %v3248 = vld [vmem:[%s3240 + $0x50] sm:$0xff]
  %v3249 = vld [vmem:[%s3240 + $0x60] sm:$0xff]
  %v3250 = vld [vmem:[%s3240 + $0x68] sm:$0xff]
  %v3251 = vld [vmem:[%s3240 + $0x78] sm:$0xff]
  %v3252 = vld [vmem:[%s3240 + $0x80] sm:$0xff]
  %v3253 = vld [vmem:[%s3240 + $0x90] sm:$0xff]
  %v3254 = vld [vmem:[%s3240 + $0x98] sm:$0xff]
  %v3255 = vld [vmem:[%s3240 + $0xa8] sm:$0xff]
  %v3256 = vld [vmem:[%s3240 + $0xb0] sm:$0xff]
  %v3257 = vld [vmem:[%s3240 + $0xc0] sm:$0xff]
  %v3258 = vld [vmem:[%s3240 + $0xc8] sm:$0xff]
  %v3259 = vld [vmem:[%s3240 + $0xd8] sm:$0xff]
  %v3260 = vld [vmem:[%s3240 + $0xe0] sm:$0xff]
  %v3261 = vld [vmem:[%s3240 + $0xf0] sm:$0xff]
  %v3262 = vld [vmem:[%s3240 + $0xf8] sm:$0xff]
  %v3263 = vld [vmem:[%s3240 + $0x108] sm:$0xff]
  %v3264 = vld [vmem:[%s3240 + $0x110] sm:$0xff]
  %v3265 = vld [vmem:[%s3240 + $0x120] sm:$0xff]
  %v3266 = vld [vmem:[%s3240 + $0x128] sm:$0xff]
  %v3267 = vld [vmem:[%s3240 + $0x138] sm:$0xff]
  %v3268 = vld [vmem:[%s3240 + $0x140] sm:$0xff]
  %v3269 = vld [vmem:[%s3240 + $0x150] sm:$0xff]
  %v3270 = vld [vmem:[%s3240 + $0x158] sm:$0xff]
  %v3271 = vld [vmem:[%s3240 + $0x168] sm:$0xff]
  %v3272 = vld [vmem:[%s3240 + $0x170] sm:$0xff]
  %v3274 = vsel %vm92, %v3241, 0
  %v3277 = vsel %vm92, %v3242, 0
  %v3280 = vsel %vm92, %v3243, 0
  %v3283 = vsel %vm92, %v3244, 0
  %v3286 = vsel %vm92, %v3245, 0
  %v3289 = vsel %vm92, %v3246, 0
  %v3292 = vsel %vm92, %v3247, 0
  %v3295 = vsel %vm92, %v3248, 0
  %v3298 = vsel %vm92, %v3249, 0
  %v3301 = vsel %vm92, %v3250, 0
  %v3304 = vsel %vm92, %v3251, 0
  %v3307 = vsel %vm92, %v3252, 0
  %v3310 = vsel %vm92, %v3253, 0
  %v3313 = vsel %vm92, %v3254, 0
  %v3316 = vsel %vm92, %v3255, 0
  %v3319 = vsel %vm92, %v3256, 0
  %v3322 = vsel %vm92, %v3257, 0
  %v3325 = vsel %vm92, %v3258, 0
  %v3328 = vsel %vm92, %v3259, 0
  %v3331 = vsel %vm92, %v3260, 0
  %v3334 = vsel %vm92, %v3261, 0
  %v3337 = vsel %vm92, %v3262, 0
  %v3340 = vsel %vm92, %v3263, 0
  %v3343 = vsel %vm92, %v3264, 0
  %v3346 = vsel %vm92, %v3265, 0
  %v3349 = vsel %vm92, %v3266, 0
  %v3352 = vsel %vm92, %v3267, 0
  %v3355 = vsel %vm92, %v3268, 0
  %v3358 = vsel %vm92, %v3269, 0
  %v3361 = vsel %vm92, %v3270, 0
  %v3364 = vsel %vm92, %v3271, 0
  %v3367 = vsel %vm92, %v3272, 0
  %3369 = vmatpush.msra.mxu0 0.0
  %3370 = vmatpush.msra.mxu0 0.0
  %3371 = vmatpush.msra.mxu0 0.0
  %3372 = vmatpush.msra.mxu0 0.0
  %3373 = vmatpush.msra.mxu0 0.0
  %3374 = vmatpush.msra.mxu0 0.0
  %3375 = vmatpush.msra.mxu0 0.0
  %3376 = vmatpush.msra.mxu0 0.0
  %3377 = vmatpush.msra.mxu0 0.0
  %3378 = vmatpush.msra.mxu0 0.0
  %3379 = vmatpush.msra.mxu0 0.0
  %3380 = vmatpush.msra.mxu0 0.0
  %3381 = vmatpush.msra.mxu0 0.0
  %3382 = vmatpush.msra.mxu0 0.0
  %3383 = vmatpush.msra.mxu0 0.0
  %3384 = vmatpush.msra.mxu0 %v924
  %3385 = vmatmul.f32.gmra.mxu0 %v3274
  %v3386 = vpop.f32.mrf.mxu0
  %v3387 = vadd.f32 0.0, %v3386
  %3388 = vmatmul.f32.gmra.mxu0 %v3277
  %v3389 = vpop.f32.mrf.mxu0
  %v3390 = vadd.f32 0.0, %v3389
  %3391 = vmatmul.f32.gmra.mxu0 %v3280
  %v3392 = vpop.f32.mrf.mxu0
  %v3393 = vadd.f32 0.0, %v3392
  %3394 = vmatmul.f32.gmra.mxu0 %v3283
  %v3395 = vpop.f32.mrf.mxu0
  %v3396 = vadd.f32 0.0, %v3395
  %3397 = vmatmul.f32.gmra.mxu0 %v3286
  %v3398 = vpop.f32.mrf.mxu0
  %v3399 = vadd.f32 0.0, %v3398
  %3400 = vmatmul.f32.gmra.mxu0 %v3289
  %v3401 = vpop.f32.mrf.mxu0
  %v3402 = vadd.f32 0.0, %v3401
  %3403 = vmatmul.f32.gmra.mxu0 %v3292
  %v3404 = vpop.f32.mrf.mxu0
  %v3405 = vadd.f32 0.0, %v3404
  %3406 = vmatmul.f32.gmra.mxu0 %v3295
  %v3407 = vpop.f32.mrf.mxu0
  %v3408 = vadd.f32 0.0, %v3407
  %3409 = vmatmul.f32.gmra.mxu0 %v3298
  %v3410 = vpop.f32.mrf.mxu0
  %v3411 = vadd.f32 0.0, %v3410
  %3412 = vmatmul.f32.gmra.mxu0 %v3301
  %v3413 = vpop.f32.mrf.mxu0
  %v3414 = vadd.f32 0.0, %v3413
  %3415 = vmatmul.f32.gmra.mxu0 %v3304
  %v3416 = vpop.f32.mrf.mxu0
  %v3417 = vadd.f32 0.0, %v3416
  %3418 = vmatmul.f32.gmra.mxu0 %v3307
  %v3419 = vpop.f32.mrf.mxu0
  %v3420 = vadd.f32 0.0, %v3419
  %3421 = vmatmul.f32.gmra.mxu0 %v3310
  %v3422 = vpop.f32.mrf.mxu0
  %v3423 = vadd.f32 0.0, %v3422
  %3424 = vmatmul.f32.gmra.mxu0 %v3313
  %v3425 = vpop.f32.mrf.mxu0
  %v3426 = vadd.f32 0.0, %v3425
  %3427 = vmatmul.f32.gmra.mxu0 %v3316
  %v3428 = vpop.f32.mrf.mxu0
  %v3429 = vadd.f32 0.0, %v3428
  %3430 = vmatmul.f32.gmra.mxu0 %v3319
  %v3431 = vpop.f32.mrf.mxu0
  %v3432 = vadd.f32 0.0, %v3431
  %3433 = vmatmul.f32.gmra.mxu0 %v3322
  %v3434 = vpop.f32.mrf.mxu0
  %v3435 = vadd.f32 0.0, %v3434
  %3436 = vmatmul.f32.gmra.mxu0 %v3325
  %v3437 = vpop.f32.mrf.mxu0
  %v3438 = vadd.f32 0.0, %v3437
  %3439 = vmatmul.f32.gmra.mxu0 %v3328
  %v3440 = vpop.f32.mrf.mxu0
  %v3441 = vadd.f32 0.0, %v3440
  %3442 = vmatmul.f32.gmra.mxu0 %v3331
  %v3443 = vpop.f32.mrf.mxu0
  %v3444 = vadd.f32 0.0, %v3443
  %3445 = vmatmul.f32.gmra.mxu0 %v3334
  %v3446 = vpop.f32.mrf.mxu0
  %v3447 = vadd.f32 0.0, %v3446
  %3448 = vmatmul.f32.gmra.mxu0 %v3337
  %v3449 = vpop.f32.mrf.mxu0
  %v3450 = vadd.f32 0.0, %v3449
  %3451 = vmatmul.f32.gmra.mxu0 %v3340
  %v3452 = vpop.f32.mrf.mxu0
  %v3453 = vadd.f32 0.0, %v3452
  %3454 = vmatmul.f32.gmra.mxu0 %v3343
  %v3455 = vpop.f32.mrf.mxu0
  %v3456 = vadd.f32 0.0, %v3455
  %3457 = vmatmul.f32.gmra.mxu0 %v3346
  %v3458 = vpop.f32.mrf.mxu0
  %v3459 = vadd.f32 0.0, %v3458
  %3460 = vmatmul.f32.gmra.mxu0 %v3349
  %v3461 = vpop.f32.mrf.mxu0
  %v3462 = vadd.f32 0.0, %v3461
  %3463 = vmatmul.f32.gmra.mxu0 %v3352
  %v3464 = vpop.f32.mrf.mxu0
  %v3465 = vadd.f32 0.0, %v3464
  %3466 = vmatmul.f32.gmra.mxu0 %v3355
  %v3467 = vpop.f32.mrf.mxu0
  %v3468 = vadd.f32 0.0, %v3467
  %3469 = vmatmul.f32.gmra.mxu0 %v3358
  %v3470 = vpop.f32.mrf.mxu0
  %v3471 = vadd.f32 0.0, %v3470
  %3472 = vmatmul.f32.gmra.mxu0 %v3361
  %v3473 = vpop.f32.mrf.mxu0
  %v3474 = vadd.f32 0.0, %v3473
  %3475 = vmatmul.f32.gmra.mxu0 %v3364
  %v3476 = vpop.f32.mrf.mxu0
  %v3477 = vadd.f32 0.0, %v3476
  %3478 = vmatmul.f32.gmra.mxu0 %v3367
  %v3479 = vpop.f32.mrf.mxu0
  %v3480 = vadd.f32 0.0, %v3479
  %3481 = vdwg.mxu0
  %v3482 = vadd.f32 %v3208, %v3387
  %v3483 = vadd.f32 %v3209, %v3390
  %v3484 = vadd.f32 %v3210, %v3393
  %v3485 = vadd.f32 %v3211, %v3396
  %v3486 = vadd.f32 %v3212, %v3399
  %v3487 = vadd.f32 %v3213, %v3402
  %v3488 = vadd.f32 %v3214, %v3405
  %v3489 = vadd.f32 %v3215, %v3408
  %v3490 = vadd.f32 %v3216, %v3411
  %v3491 = vadd.f32 %v3217, %v3414
  %v3492 = vadd.f32 %v3218, %v3417
  %v3493 = vadd.f32 %v3219, %v3420
  %v3494 = vadd.f32 %v3220, %v3423
  %v3495 = vadd.f32 %v3221, %v3426
  %v3496 = vadd.f32 %v3222, %v3429
  %v3497 = vadd.f32 %v3223, %v3432
  %v3498 = vadd.f32 %v3224, %v3435
  %v3499 = vadd.f32 %v3225, %v3438
  %v3500 = vadd.f32 %v3226, %v3441
  %v3501 = vadd.f32 %v3227, %v3444
  %v3502 = vadd.f32 %v3228, %v3447
  %v3503 = vadd.f32 %v3229, %v3450
  %v3504 = vadd.f32 %v3230, %v3453
  %v3505 = vadd.f32 %v3231, %v3456
  %v3506 = vadd.f32 %v3232, %v3459
  %v3507 = vadd.f32 %v3233, %v3462
  %v3508 = vadd.f32 %v3234, %v3465
  %v3509 = vadd.f32 %v3235, %v3468
  %v3510 = vadd.f32 %v3236, %v3471
  %v3511 = vadd.f32 %v3237, %v3474
  %v3512 = vadd.f32 %v3238, %v3477
  %v3513 = vadd.f32 %v3239, %v3480
  %v3514 = vld [vmem:[%s3240 + $0x1] sm:$0xff]
  %v3515 = vld [vmem:[%s3240 + $0x9] sm:$0xff]
  %v3516 = vld [vmem:[%s3240 + $0x19] sm:$0xff]
  %v3517 = vld [vmem:[%s3240 + $0x21] sm:$0xff]
  %v3518 = vld [vmem:[%s3240 + $0x31] sm:$0xff]
  %v3519 = vld [vmem:[%s3240 + $0x39] sm:$0xff]
  %v3520 = vld [vmem:[%s3240 + $0x49] sm:$0xff]
  %v3521 = vld [vmem:[%s3240 + $0x51] sm:$0xff]
  %v3522 = vld [vmem:[%s3240 + $0x61] sm:$0xff]
  %v3523 = vld [vmem:[%s3240 + $0x69] sm:$0xff]
  %v3524 = vld [vmem:[%s3240 + $0x79] sm:$0xff]
  %v3525 = vld [vmem:[%s3240 + $0x81] sm:$0xff]
  %v3526 = vld [vmem:[%s3240 + $0x91] sm:$0xff]
  %v3527 = vld [vmem:[%s3240 + $0x99] sm:$0xff]
  %v3528 = vld [vmem:[%s3240 + $0xa9] sm:$0xff]
  %v3529 = vld [vmem:[%s3240 + $0xb1] sm:$0xff]
  %v3530 = vld [vmem:[%s3240 + $0xc1] sm:$0xff]
  %v3531 = vld [vmem:[%s3240 + $0xc9] sm:$0xff]
  %v3532 = vld [vmem:[%s3240 + $0xd9] sm:$0xff]
  %v3533 = vld [vmem:[%s3240 + $0xe1] sm:$0xff]
  %v3534 = vld [vmem:[%s3240 + $0xf1] sm:$0xff]
  %v3535 = vld [vmem:[%s3240 + $0xf9] sm:$0xff]
  %v3536 = vld [vmem:[%s3240 + $0x109] sm:$0xff]
  %v3537 = vld [vmem:[%s3240 + $0x111] sm:$0xff]
  %v3538 = vld [vmem:[%s3240 + $0x121] sm:$0xff]
  %v3539 = vld [vmem:[%s3240 + $0x129] sm:$0xff]
  %v3540 = vld [vmem:[%s3240 + $0x139] sm:$0xff]
  %v3541 = vld [vmem:[%s3240 + $0x141] sm:$0xff]
  %v3542 = vld [vmem:[%s3240 + $0x151] sm:$0xff]
  %v3543 = vld [vmem:[%s3240 + $0x159] sm:$0xff]
  %v3544 = vld [vmem:[%s3240 + $0x169] sm:$0xff]
  %v3545 = vld [vmem:[%s3240 + $0x171] sm:$0xff]
  %v3547 = vsel %vm92, %v3514, 0
  %v3550 = vsel %vm92, %v3515, 0
  %v3553 = vsel %vm92, %v3516, 0
  %v3556 = vsel %vm92, %v3517, 0
  %v3559 = vsel %vm92, %v3518, 0
  %v3562 = vsel %vm92, %v3519, 0
  %v3565 = vsel %vm92, %v3520, 0
  %v3568 = vsel %vm92, %v3521, 0
  %v3571 = vsel %vm92, %v3522, 0
  %v3574 = vsel %vm92, %v3523, 0
  %v3577 = vsel %vm92, %v3524, 0
  %v3580 = vsel %vm92, %v3525, 0
  %v3583 = vsel %vm92, %v3526, 0
  %v3586 = vsel %vm92, %v3527, 0
  %v3589 = vsel %vm92, %v3528, 0
  %v3592 = vsel %vm92, %v3529, 0
  %v3595 = vsel %vm92, %v3530, 0
  %v3598 = vsel %vm92, %v3531, 0
  %v3601 = vsel %vm92, %v3532, 0
  %v3604 = vsel %vm92, %v3533, 0
  %v3607 = vsel %vm92, %v3534, 0
  %v3610 = vsel %vm92, %v3535, 0
  %v3613 = vsel %vm92, %v3536, 0
  %v3616 = vsel %vm92, %v3537, 0
  %v3619 = vsel %vm92, %v3538, 0
  %v3622 = vsel %vm92, %v3539, 0
  %v3625 = vsel %vm92, %v3540, 0
  %v3628 = vsel %vm92, %v3541, 0
  %v3631 = vsel %vm92, %v3542, 0
  %v3634 = vsel %vm92, %v3543, 0
  %v3637 = vsel %vm92, %v3544, 0
  %v3640 = vsel %vm92, %v3545, 0
  %3642 = vmatpush.msra.mxu0 0.0
  %3643 = vmatpush.msra.mxu0 0.0
  %3644 = vmatpush.msra.mxu0 0.0
  %3645 = vmatpush.msra.mxu0 0.0
  %3646 = vmatpush.msra.mxu0 0.0
  %3647 = vmatpush.msra.mxu0 0.0
  %3648 = vmatpush.msra.mxu0 0.0
  %3649 = vmatpush.msra.mxu0 0.0
  %3650 = vmatpush.msra.mxu0 0.0
  %3651 = vmatpush.msra.mxu0 0.0
  %3652 = vmatpush.msra.mxu0 0.0
  %3653 = vmatpush.msra.mxu0 0.0
  %3654 = vmatpush.msra.mxu0 0.0
  %3655 = vmatpush.msra.mxu0 0.0
  %3656 = vmatpush.msra.mxu0 0.0
  %3657 = vmatpush.msra.mxu0 %v1200
  %3658 = vmatmul.f32.gmra.mxu0 %v3547
  %v3659 = vpop.f32.mrf.mxu0
  %v3660 = vadd.f32 0.0, %v3659
  %3661 = vmatmul.f32.gmra.mxu0 %v3550
  %v3662 = vpop.f32.mrf.mxu0
  %v3663 = vadd.f32 0.0, %v3662
  %3664 = vmatmul.f32.gmra.mxu0 %v3553
  %v3665 = vpop.f32.mrf.mxu0
  %v3666 = vadd.f32 0.0, %v3665
  %3667 = vmatmul.f32.gmra.mxu0 %v3556
  %v3668 = vpop.f32.mrf.mxu0
  %v3669 = vadd.f32 0.0, %v3668
  %3670 = vmatmul.f32.gmra.mxu0 %v3559
  %v3671 = vpop.f32.mrf.mxu0
  %v3672 = vadd.f32 0.0, %v3671
  %3673 = vmatmul.f32.gmra.mxu0 %v3562
  %v3674 = vpop.f32.mrf.mxu0
  %v3675 = vadd.f32 0.0, %v3674
  %3676 = vmatmul.f32.gmra.mxu0 %v3565
  %v3677 = vpop.f32.mrf.mxu0
  %v3678 = vadd.f32 0.0, %v3677
  %3679 = vmatmul.f32.gmra.mxu0 %v3568
  %v3680 = vpop.f32.mrf.mxu0
  %v3681 = vadd.f32 0.0, %v3680
  %3682 = vmatmul.f32.gmra.mxu0 %v3571
  %v3683 = vpop.f32.mrf.mxu0
  %v3684 = vadd.f32 0.0, %v3683
  %3685 = vmatmul.f32.gmra.mxu0 %v3574
  %v3686 = vpop.f32.mrf.mxu0
  %v3687 = vadd.f32 0.0, %v3686
  %3688 = vmatmul.f32.gmra.mxu0 %v3577
  %v3689 = vpop.f32.mrf.mxu0
  %v3690 = vadd.f32 0.0, %v3689
  %3691 = vmatmul.f32.gmra.mxu0 %v3580
  %v3692 = vpop.f32.mrf.mxu0
  %v3693 = vadd.f32 0.0, %v3692
  %3694 = vmatmul.f32.gmra.mxu0 %v3583
  %v3695 = vpop.f32.mrf.mxu0
  %v3696 = vadd.f32 0.0, %v3695
  %3697 = vmatmul.f32.gmra.mxu0 %v3586
  %v3698 = vpop.f32.mrf.mxu0
  %v3699 = vadd.f32 0.0, %v3698
  %3700 = vmatmul.f32.gmra.mxu0 %v3589
  %v3701 = vpop.f32.mrf.mxu0
  %v3702 = vadd.f32 0.0, %v3701
  %3703 = vmatmul.f32.gmra.mxu0 %v3592
  %v3704 = vpop.f32.mrf.mxu0
  %v3705 = vadd.f32 0.0, %v3704
  %3706 = vmatmul.f32.gmra.mxu0 %v3595
  %v3707 = vpop.f32.mrf.mxu0
  %v3708 = vadd.f32 0.0, %v3707
  %3709 = vmatmul.f32.gmra.mxu0 %v3598
  %v3710 = vpop.f32.mrf.mxu0
  %v3711 = vadd.f32 0.0, %v3710
  %3712 = vmatmul.f32.gmra.mxu0 %v3601
  %v3713 = vpop.f32.mrf.mxu0
  %v3714 = vadd.f32 0.0, %v3713
  %3715 = vmatmul.f32.gmra.mxu0 %v3604
  %v3716 = vpop.f32.mrf.mxu0
  %v3717 = vadd.f32 0.0, %v3716
  %3718 = vmatmul.f32.gmra.mxu0 %v3607
  %v3719 = vpop.f32.mrf.mxu0
  %v3720 = vadd.f32 0.0, %v3719
  %3721 = vmatmul.f32.gmra.mxu0 %v3610
  %v3722 = vpop.f32.mrf.mxu0
  %v3723 = vadd.f32 0.0, %v3722
  %3724 = vmatmul.f32.gmra.mxu0 %v3613
  %v3725 = vpop.f32.mrf.mxu0
  %v3726 = vadd.f32 0.0, %v3725
  %3727 = vmatmul.f32.gmra.mxu0 %v3616
  %v3728 = vpop.f32.mrf.mxu0
  %v3729 = vadd.f32 0.0, %v3728
  %3730 = vmatmul.f32.gmra.mxu0 %v3619
  %v3731 = vpop.f32.mrf.mxu0
  %v3732 = vadd.f32 0.0, %v3731
  %3733 = vmatmul.f32.gmra.mxu0 %v3622
  %v3734 = vpop.f32.mrf.mxu0
  %v3735 = vadd.f32 0.0, %v3734
  %3736 = vmatmul.f32.gmra.mxu0 %v3625
  %v3737 = vpop.f32.mrf.mxu0
  %v3738 = vadd.f32 0.0, %v3737
  %3739 = vmatmul.f32.gmra.mxu0 %v3628
  %v3740 = vpop.f32.mrf.mxu0
  %v3741 = vadd.f32 0.0, %v3740
  %3742 = vmatmul.f32.gmra.mxu0 %v3631
  %v3743 = vpop.f32.mrf.mxu0
  %v3744 = vadd.f32 0.0, %v3743
  %3745 = vmatmul.f32.gmra.mxu0 %v3634
  %v3746 = vpop.f32.mrf.mxu0
  %v3747 = vadd.f32 0.0, %v3746
  %3748 = vmatmul.f32.gmra.mxu0 %v3637
  %v3749 = vpop.f32.mrf.mxu0
  %v3750 = vadd.f32 0.0, %v3749
  %3751 = vmatmul.f32.gmra.mxu0 %v3640
  %v3752 = vpop.f32.mrf.mxu0
  %v3753 = vadd.f32 0.0, %v3752
  %3754 = vdwg.mxu0
  %v3755 = vadd.f32 %v3482, %v3660
  %v3756 = vadd.f32 %v3483, %v3663
  %v3757 = vadd.f32 %v3484, %v3666
  %v3758 = vadd.f32 %v3485, %v3669
  %v3759 = vadd.f32 %v3486, %v3672
  %v3760 = vadd.f32 %v3487, %v3675
  %v3761 = vadd.f32 %v3488, %v3678
  %v3762 = vadd.f32 %v3489, %v3681
  %v3763 = vadd.f32 %v3490, %v3684
  %v3764 = vadd.f32 %v3491, %v3687
  %v3765 = vadd.f32 %v3492, %v3690
  %v3766 = vadd.f32 %v3493, %v3693
  %v3767 = vadd.f32 %v3494, %v3696
  %v3768 = vadd.f32 %v3495, %v3699
  %v3769 = vadd.f32 %v3496, %v3702
  %v3770 = vadd.f32 %v3497, %v3705
  %v3771 = vadd.f32 %v3498, %v3708
  %v3772 = vadd.f32 %v3499, %v3711
  %v3773 = vadd.f32 %v3500, %v3714
  %v3774 = vadd.f32 %v3501, %v3717
  %v3775 = vadd.f32 %v3502, %v3720
  %v3776 = vadd.f32 %v3503, %v3723
  %v3777 = vadd.f32 %v3504, %v3726
  %v3778 = vadd.f32 %v3505, %v3729
  %v3779 = vadd.f32 %v3506, %v3732
  %v3780 = vadd.f32 %v3507, %v3735
  %v3781 = vadd.f32 %v3508, %v3738
  %v3782 = vadd.f32 %v3509, %v3741
  %v3783 = vadd.f32 %v3510, %v3744
  %v3784 = vadd.f32 %v3511, %v3747
  %v3785 = vadd.f32 %v3512, %v3750
  %v3786 = vadd.f32 %v3513, %v3753
  %v3787 = vld [vmem:[%s3240 + $0x2] sm:$0xff]
  %v3788 = vld [vmem:[%s3240 + $0xa] sm:$0xff]
  %v3789 = vld [vmem:[%s3240 + $0x1a] sm:$0xff]
  %v3790 = vld [vmem:[%s3240 + $0x22] sm:$0xff]
  %v3791 = vld [vmem:[%s3240 + $0x32] sm:$0xff]
  %v3792 = vld [vmem:[%s3240 + $0x3a] sm:$0xff]
  %v3793 = vld [vmem:[%s3240 + $0x4a] sm:$0xff]
  %v3794 = vld [vmem:[%s3240 + $0x52] sm:$0xff]
  %v3795 = vld [vmem:[%s3240 + $0x62] sm:$0xff]
  %v3796 = vld [vmem:[%s3240 + $0x6a] sm:$0xff]
  %v3797 = vld [vmem:[%s3240 + $0x7a] sm:$0xff]
  %v3798 = vld [vmem:[%s3240 + $0x82] sm:$0xff]
  %v3799 = vld [vmem:[%s3240 + $0x92] sm:$0xff]
  %v3800 = vld [vmem:[%s3240 + $0x9a] sm:$0xff]
  %v3801 = vld [vmem:[%s3240 + $0xaa] sm:$0xff]
  %v3802 = vld [vmem:[%s3240 + $0xb2] sm:$0xff]
  %v3803 = vld [vmem:[%s3240 + $0xc2] sm:$0xff]
  %v3804 = vld [vmem:[%s3240 + $0xca] sm:$0xff]
  %v3805 = vld [vmem:[%s3240 + $0xda] sm:$0xff]
  %v3806 = vld [vmem:[%s3240 + $0xe2] sm:$0xff]
  %v3807 = vld [vmem:[%s3240 + $0xf2] sm:$0xff]
  %v3808 = vld [vmem:[%s3240 + $0xfa] sm:$0xff]
  %v3809 = vld [vmem:[%s3240 + $0x10a] sm:$0xff]
  %v3810 = vld [vmem:[%s3240 + $0x112] sm:$0xff]
  %v3811 = vld [vmem:[%s3240 + $0x122] sm:$0xff]
  %v3812 = vld [vmem:[%s3240 + $0x12a] sm:$0xff]
  %v3813 = vld [vmem:[%s3240 + $0x13a] sm:$0xff]
  %v3814 = vld [vmem:[%s3240 + $0x142] sm:$0xff]
  %v3815 = vld [vmem:[%s3240 + $0x152] sm:$0xff]
  %v3816 = vld [vmem:[%s3240 + $0x15a] sm:$0xff]
  %v3817 = vld [vmem:[%s3240 + $0x16a] sm:$0xff]
  %v3818 = vld [vmem:[%s3240 + $0x172] sm:$0xff]
  %v3820 = vsel %vm92, %v3787, 0
  %v3823 = vsel %vm92, %v3788, 0
  %v3826 = vsel %vm92, %v3789, 0
  %v3829 = vsel %vm92, %v3790, 0
  %v3832 = vsel %vm92, %v3791, 0
  %v3835 = vsel %vm92, %v3792, 0
  %v3838 = vsel %vm92, %v3793, 0
  %v3841 = vsel %vm92, %v3794, 0
  %v3844 = vsel %vm92, %v3795, 0
  %v3847 = vsel %vm92, %v3796, 0
  %v3850 = vsel %vm92, %v3797, 0
  %v3853 = vsel %vm92, %v3798, 0
  %v3856 = vsel %vm92, %v3799, 0
  %v3859 = vsel %vm92, %v3800, 0
  %v3862 = vsel %vm92, %v3801, 0
  %v3865 = vsel %vm92, %v3802, 0
  %v3868 = vsel %vm92, %v3803, 0
  %v3871 = vsel %vm92, %v3804, 0
  %v3874 = vsel %vm92, %v3805, 0
  %v3877 = vsel %vm92, %v3806, 0
  %v3880 = vsel %vm92, %v3807, 0
  %v3883 = vsel %vm92, %v3808, 0
  %v3886 = vsel %vm92, %v3809, 0
  %v3889 = vsel %vm92, %v3810, 0
  %v3892 = vsel %vm92, %v3811, 0
  %v3895 = vsel %vm92, %v3812, 0
  %v3898 = vsel %vm92, %v3813, 0
  %v3901 = vsel %vm92, %v3814, 0
  %v3904 = vsel %vm92, %v3815, 0
  %v3907 = vsel %vm92, %v3816, 0
  %v3910 = vsel %vm92, %v3817, 0
  %v3913 = vsel %vm92, %v3818, 0
  %3915 = vmatpush.msra.mxu0 0.0
  %3916 = vmatpush.msra.mxu0 0.0
  %3917 = vmatpush.msra.mxu0 0.0
  %3918 = vmatpush.msra.mxu0 0.0
  %3919 = vmatpush.msra.mxu0 0.0
  %3920 = vmatpush.msra.mxu0 0.0
  %3921 = vmatpush.msra.mxu0 0.0
  %3922 = vmatpush.msra.mxu0 0.0
  %3923 = vmatpush.msra.mxu0 0.0
  %3924 = vmatpush.msra.mxu0 0.0
  %3925 = vmatpush.msra.mxu0 0.0
  %3926 = vmatpush.msra.mxu0 0.0
  %3927 = vmatpush.msra.mxu0 0.0
  %3928 = vmatpush.msra.mxu0 0.0
  %3929 = vmatpush.msra.mxu0 0.0
  %3930 = vmatpush.msra.mxu0 %v1476
  %3931 = vmatmul.f32.gmra.mxu0 %v3820
  %v3932 = vpop.f32.mrf.mxu0
  %v3933 = vadd.f32 0.0, %v3932
  %3934 = vmatmul.f32.gmra.mxu0 %v3823
  %v3935 = vpop.f32.mrf.mxu0
  %v3936 = vadd.f32 0.0, %v3935
  %3937 = vmatmul.f32.gmra.mxu0 %v3826
  %v3938 = vpop.f32.mrf.mxu0
  %v3939 = vadd.f32 0.0, %v3938
  %3940 = vmatmul.f32.gmra.mxu0 %v3829
  %v3941 = vpop.f32.mrf.mxu0
  %v3942 = vadd.f32 0.0, %v3941
  %3943 = vmatmul.f32.gmra.mxu0 %v3832
  %v3944 = vpop.f32.mrf.mxu0
  %v3945 = vadd.f32 0.0, %v3944
  %3946 = vmatmul.f32.gmra.mxu0 %v3835
  %v3947 = vpop.f32.mrf.mxu0
  %v3948 = vadd.f32 0.0, %v3947
  %3949 = vmatmul.f32.gmra.mxu0 %v3838
  %v3950 = vpop.f32.mrf.mxu0
  %v3951 = vadd.f32 0.0, %v3950
  %3952 = vmatmul.f32.gmra.mxu0 %v3841
  %v3953 = vpop.f32.mrf.mxu0
  %v3954 = vadd.f32 0.0, %v3953
  %3955 = vmatmul.f32.gmra.mxu0 %v3844
  %v3956 = vpop.f32.mrf.mxu0
  %v3957 = vadd.f32 0.0, %v3956
  %3958 = vmatmul.f32.gmra.mxu0 %v3847
  %v3959 = vpop.f32.mrf.mxu0
  %v3960 = vadd.f32 0.0, %v3959
  %3961 = vmatmul.f32.gmra.mxu0 %v3850
  %v3962 = vpop.f32.mrf.mxu0
  %v3963 = vadd.f32 0.0, %v3962
  %3964 = vmatmul.f32.gmra.mxu0 %v3853
  %v3965 = vpop.f32.mrf.mxu0
  %v3966 = vadd.f32 0.0, %v3965
  %3967 = vmatmul.f32.gmra.mxu0 %v3856
  %v3968 = vpop.f32.mrf.mxu0
  %v3969 = vadd.f32 0.0, %v3968
  %3970 = vmatmul.f32.gmra.mxu0 %v3859
  %v3971 = vpop.f32.mrf.mxu0
  %v3972 = vadd.f32 0.0, %v3971
  %3973 = vmatmul.f32.gmra.mxu0 %v3862
  %v3974 = vpop.f32.mrf.mxu0
  %v3975 = vadd.f32 0.0, %v3974
  %3976 = vmatmul.f32.gmra.mxu0 %v3865
  %v3977 = vpop.f32.mrf.mxu0
  %v3978 = vadd.f32 0.0, %v3977
  %3979 = vmatmul.f32.gmra.mxu0 %v3868
  %v3980 = vpop.f32.mrf.mxu0
  %v3981 = vadd.f32 0.0, %v3980
  %3982 = vmatmul.f32.gmra.mxu0 %v3871
  %v3983 = vpop.f32.mrf.mxu0
  %v3984 = vadd.f32 0.0, %v3983
  %3985 = vmatmul.f32.gmra.mxu0 %v3874
  %v3986 = vpop.f32.mrf.mxu0
  %v3987 = vadd.f32 0.0, %v3986
  %3988 = vmatmul.f32.gmra.mxu0 %v3877
  %v3989 = vpop.f32.mrf.mxu0
  %v3990 = vadd.f32 0.0, %v3989
  %3991 = vmatmul.f32.gmra.mxu0 %v3880
  %v3992 = vpop.f32.mrf.mxu0
  %v3993 = vadd.f32 0.0, %v3992
  %3994 = vmatmul.f32.gmra.mxu0 %v3883
  %v3995 = vpop.f32.mrf.mxu0
  %v3996 = vadd.f32 0.0, %v3995
  %3997 = vmatmul.f32.gmra.mxu0 %v3886
  %v3998 = vpop.f32.mrf.mxu0
  %v3999 = vadd.f32 0.0, %v3998
  %4000 = vmatmul.f32.gmra.mxu0 %v3889
  %v4001 = vpop.f32.mrf.mxu0
  %v4002 = vadd.f32 0.0, %v4001
  %4003 = vmatmul.f32.gmra.mxu0 %v3892
  %v4004 = vpop.f32.mrf.mxu0
  %v4005 = vadd.f32 0.0, %v4004
  %4006 = vmatmul.f32.gmra.mxu0 %v3895
  %v4007 = vpop.f32.mrf.mxu0
  %v4008 = vadd.f32 0.0, %v4007
  %4009 = vmatmul.f32.gmra.mxu0 %v3898
  %v4010 = vpop.f32.mrf.mxu0
  %v4011 = vadd.f32 0.0, %v4010
  %4012 = vmatmul.f32.gmra.mxu0 %v3901
  %v4013 = vpop.f32.mrf.mxu0
  %v4014 = vadd.f32 0.0, %v4013
  %4015 = vmatmul.f32.gmra.mxu0 %v3904
  %v4016 = vpop.f32.mrf.mxu0
  %v4017 = vadd.f32 0.0, %v4016
  %4018 = vmatmul.f32.gmra.mxu0 %v3907
  %v4019 = vpop.f32.mrf.mxu0
  %v4020 = vadd.f32 0.0, %v4019
  %4021 = vmatmul.f32.gmra.mxu0 %v3910
  %v4022 = vpop.f32.mrf.mxu0
  %v4023 = vadd.f32 0.0, %v4022
  %4024 = vmatmul.f32.gmra.mxu0 %v3913
  %v4025 = vpop.f32.mrf.mxu0
  %v4026 = vadd.f32 0.0, %v4025
  %4027 = vdwg.mxu0
  %v4028 = vadd.f32 %v3755, %v3933
  %v4029 = vadd.f32 %v3756, %v3936
  %v4030 = vadd.f32 %v3757, %v3939
  %v4031 = vadd.f32 %v3758, %v3942
  %v4032 = vadd.f32 %v3759, %v3945
  %v4033 = vadd.f32 %v3760, %v3948
  %v4034 = vadd.f32 %v3761, %v3951
  %v4035 = vadd.f32 %v3762, %v3954
  %v4036 = vadd.f32 %v3763, %v3957
  %v4037 = vadd.f32 %v3764, %v3960
  %v4038 = vadd.f32 %v3765, %v3963
  %v4039 = vadd.f32 %v3766, %v3966
  %v4040 = vadd.f32 %v3767, %v3969
  %v4041 = vadd.f32 %v3768, %v3972
  %v4042 = vadd.f32 %v3769, %v3975
  %v4043 = vadd.f32 %v3770, %v3978
  %v4044 = vadd.f32 %v3771, %v3981
  %v4045 = vadd.f32 %v3772, %v3984
  %v4046 = vadd.f32 %v3773, %v3987
  %v4047 = vadd.f32 %v3774, %v3990
  %v4048 = vadd.f32 %v3775, %v3993
  %v4049 = vadd.f32 %v3776, %v3996
  %v4050 = vadd.f32 %v3777, %v3999
  %v4051 = vadd.f32 %v3778, %v4002
  %v4052 = vadd.f32 %v3779, %v4005
  %v4053 = vadd.f32 %v3780, %v4008
  %v4054 = vadd.f32 %v3781, %v4011
  %v4055 = vadd.f32 %v3782, %v4014
  %v4056 = vadd.f32 %v3783, %v4017
  %v4057 = vadd.f32 %v3784, %v4020
  %v4058 = vadd.f32 %v3785, %v4023
  %v4059 = vadd.f32 %v3786, %v4026
  %s4060 = scalar_lea.vmem %s0, 480
  %v4061 = vld [vmem:[%s4060] sm:$0xff]
  %v4062 = vld [vmem:[%s4060 + $0x8] sm:$0xff]
  %v4063 = vld [vmem:[%s4060 + $0x18] sm:$0xff]
  %v4064 = vld [vmem:[%s4060 + $0x20] sm:$0xff]
  %v4065 = vld [vmem:[%s4060 + $0x30] sm:$0xff]
  %v4066 = vld [vmem:[%s4060 + $0x38] sm:$0xff]
  %v4067 = vld [vmem:[%s4060 + $0x48] sm:$0xff]
  %v4068 = vld [vmem:[%s4060 + $0x50] sm:$0xff]
  %v4069 = vld [vmem:[%s4060 + $0x60] sm:$0xff]
  %v4070 = vld [vmem:[%s4060 + $0x68] sm:$0xff]
  %v4071 = vld [vmem:[%s4060 + $0x78] sm:$0xff]
  %v4072 = vld [vmem:[%s4060 + $0x80] sm:$0xff]
  %v4073 = vld [vmem:[%s4060 + $0x90] sm:$0xff]
  %v4074 = vld [vmem:[%s4060 + $0x98] sm:$0xff]
  %v4075 = vld [vmem:[%s4060 + $0xa8] sm:$0xff]
  %v4076 = vld [vmem:[%s4060 + $0xb0] sm:$0xff]
  %v4077 = vld [vmem:[%s4060 + $0xc0] sm:$0xff]
  %v4078 = vld [vmem:[%s4060 + $0xc8] sm:$0xff]
  %v4079 = vld [vmem:[%s4060 + $0xd8] sm:$0xff]
  %v4080 = vld [vmem:[%s4060 + $0xe0] sm:$0xff]
  %v4081 = vld [vmem:[%s4060 + $0xf0] sm:$0xff]
  %v4082 = vld [vmem:[%s4060 + $0xf8] sm:$0xff]
  %v4083 = vld [vmem:[%s4060 + $0x108] sm:$0xff]
  %v4084 = vld [vmem:[%s4060 + $0x110] sm:$0xff]
  %v4085 = vld [vmem:[%s4060 + $0x120] sm:$0xff]
  %v4086 = vld [vmem:[%s4060 + $0x128] sm:$0xff]
  %v4087 = vld [vmem:[%s4060 + $0x138] sm:$0xff]
  %v4088 = vld [vmem:[%s4060 + $0x140] sm:$0xff]
  %v4089 = vld [vmem:[%s4060 + $0x150] sm:$0xff]
  %v4090 = vld [vmem:[%s4060 + $0x158] sm:$0xff]
  %v4091 = vld [vmem:[%s4060 + $0x168] sm:$0xff]
  %v4092 = vld [vmem:[%s4060 + $0x170] sm:$0xff]
  %v4094 = vsel %vm92, %v4061, 0
  %v4097 = vsel %vm92, %v4062, 0
  %v4100 = vsel %vm92, %v4063, 0
  %v4103 = vsel %vm92, %v4064, 0
  %v4106 = vsel %vm92, %v4065, 0
  %v4109 = vsel %vm92, %v4066, 0
  %v4112 = vsel %vm92, %v4067, 0
  %v4115 = vsel %vm92, %v4068, 0
  %v4118 = vsel %vm92, %v4069, 0
  %v4121 = vsel %vm92, %v4070, 0
  %v4124 = vsel %vm92, %v4071, 0
  %v4127 = vsel %vm92, %v4072, 0
  %v4130 = vsel %vm92, %v4073, 0
  %v4133 = vsel %vm92, %v4074, 0
  %v4136 = vsel %vm92, %v4075, 0
  %v4139 = vsel %vm92, %v4076, 0
  %v4142 = vsel %vm92, %v4077, 0
  %v4145 = vsel %vm92, %v4078, 0
  %v4148 = vsel %vm92, %v4079, 0
  %v4151 = vsel %vm92, %v4080, 0
  %v4154 = vsel %vm92, %v4081, 0
  %v4157 = vsel %vm92, %v4082, 0
  %v4160 = vsel %vm92, %v4083, 0
  %v4163 = vsel %vm92, %v4084, 0
  %v4166 = vsel %vm92, %v4085, 0
  %v4169 = vsel %vm92, %v4086, 0
  %v4172 = vsel %vm92, %v4087, 0
  %v4175 = vsel %vm92, %v4088, 0
  %v4178 = vsel %vm92, %v4089, 0
  %v4181 = vsel %vm92, %v4090, 0
  %v4184 = vsel %vm92, %v4091, 0
  %v4187 = vsel %vm92, %v4092, 0
  %4189 = vmatpush.msra.mxu0 0.0
  %4190 = vmatpush.msra.mxu0 0.0
  %4191 = vmatpush.msra.mxu0 0.0
  %4192 = vmatpush.msra.mxu0 0.0
  %4193 = vmatpush.msra.mxu0 0.0
  %4194 = vmatpush.msra.mxu0 0.0
  %4195 = vmatpush.msra.mxu0 0.0
  %4196 = vmatpush.msra.mxu0 0.0
  %4197 = vmatpush.msra.mxu0 0.0
  %4198 = vmatpush.msra.mxu0 0.0
  %4199 = vmatpush.msra.mxu0 0.0
  %4200 = vmatpush.msra.mxu0 0.0
  %4201 = vmatpush.msra.mxu0 0.0
  %4202 = vmatpush.msra.mxu0 0.0
  %4203 = vmatpush.msra.mxu0 0.0
  %4204 = vmatpush.msra.mxu0 %v1753
  %4205 = vmatmul.f32.gmra.mxu0 %v4094
  %v4206 = vpop.f32.mrf.mxu0
  %v4207 = vadd.f32 0.0, %v4206
  %4208 = vmatmul.f32.gmra.mxu0 %v4097
  %v4209 = vpop.f32.mrf.mxu0
  %v4210 = vadd.f32 0.0, %v4209
  %4211 = vmatmul.f32.gmra.mxu0 %v4100
  %v4212 = vpop.f32.mrf.mxu0
  %v4213 = vadd.f32 0.0, %v4212
  %4214 = vmatmul.f32.gmra.mxu0 %v4103
  %v4215 = vpop.f32.mrf.mxu0
  %v4216 = vadd.f32 0.0, %v4215
  %4217 = vmatmul.f32.gmra.mxu0 %v4106
  %v4218 = vpop.f32.mrf.mxu0
  %v4219 = vadd.f32 0.0, %v4218
  %4220 = vmatmul.f32.gmra.mxu0 %v4109
  %v4221 = vpop.f32.mrf.mxu0
  %v4222 = vadd.f32 0.0, %v4221
  %4223 = vmatmul.f32.gmra.mxu0 %v4112
  %v4224 = vpop.f32.mrf.mxu0
  %v4225 = vadd.f32 0.0, %v4224
  %4226 = vmatmul.f32.gmra.mxu0 %v4115
  %v4227 = vpop.f32.mrf.mxu0
  %v4228 = vadd.f32 0.0, %v4227
  %4229 = vmatmul.f32.gmra.mxu0 %v4118
  %v4230 = vpop.f32.mrf.mxu0
  %v4231 = vadd.f32 0.0, %v4230
  %4232 = vmatmul.f32.gmra.mxu0 %v4121
  %v4233 = vpop.f32.mrf.mxu0
  %v4234 = vadd.f32 0.0, %v4233
  %4235 = vmatmul.f32.gmra.mxu0 %v4124
  %v4236 = vpop.f32.mrf.mxu0
  %v4237 = vadd.f32 0.0, %v4236
  %4238 = vmatmul.f32.gmra.mxu0 %v4127
  %v4239 = vpop.f32.mrf.mxu0
  %v4240 = vadd.f32 0.0, %v4239
  %4241 = vmatmul.f32.gmra.mxu0 %v4130
  %v4242 = vpop.f32.mrf.mxu0
  %v4243 = vadd.f32 0.0, %v4242
  %4244 = vmatmul.f32.gmra.mxu0 %v4133
  %v4245 = vpop.f32.mrf.mxu0
  %v4246 = vadd.f32 0.0, %v4245
  %4247 = vmatmul.f32.gmra.mxu0 %v4136
  %v4248 = vpop.f32.mrf.mxu0
  %v4249 = vadd.f32 0.0, %v4248
  %4250 = vmatmul.f32.gmra.mxu0 %v4139
  %v4251 = vpop.f32.mrf.mxu0
  %v4252 = vadd.f32 0.0, %v4251
  %4253 = vmatmul.f32.gmra.mxu0 %v4142
  %v4254 = vpop.f32.mrf.mxu0
  %v4255 = vadd.f32 0.0, %v4254
  %4256 = vmatmul.f32.gmra.mxu0 %v4145
  %v4257 = vpop.f32.mrf.mxu0
  %v4258 = vadd.f32 0.0, %v4257
  %4259 = vmatmul.f32.gmra.mxu0 %v4148
  %v4260 = vpop.f32.mrf.mxu0
  %v4261 = vadd.f32 0.0, %v4260
  %4262 = vmatmul.f32.gmra.mxu0 %v4151
  %v4263 = vpop.f32.mrf.mxu0
  %v4264 = vadd.f32 0.0, %v4263
  %4265 = vmatmul.f32.gmra.mxu0 %v4154
  %v4266 = vpop.f32.mrf.mxu0
  %v4267 = vadd.f32 0.0, %v4266
  %4268 = vmatmul.f32.gmra.mxu0 %v4157
  %v4269 = vpop.f32.mrf.mxu0
  %v4270 = vadd.f32 0.0, %v4269
  %4271 = vmatmul.f32.gmra.mxu0 %v4160
  %v4272 = vpop.f32.mrf.mxu0
  %v4273 = vadd.f32 0.0, %v4272
  %4274 = vmatmul.f32.gmra.mxu0 %v4163
  %v4275 = vpop.f32.mrf.mxu0
  %v4276 = vadd.f32 0.0, %v4275
  %4277 = vmatmul.f32.gmra.mxu0 %v4166
  %v4278 = vpop.f32.mrf.mxu0
  %v4279 = vadd.f32 0.0, %v4278
  %4280 = vmatmul.f32.gmra.mxu0 %v4169
  %v4281 = vpop.f32.mrf.mxu0
  %v4282 = vadd.f32 0.0, %v4281
  %4283 = vmatmul.f32.gmra.mxu0 %v4172
  %v4284 = vpop.f32.mrf.mxu0
  %v4285 = vadd.f32 0.0, %v4284
  %4286 = vmatmul.f32.gmra.mxu0 %v4175
  %v4287 = vpop.f32.mrf.mxu0
  %v4288 = vadd.f32 0.0, %v4287
  %4289 = vmatmul.f32.gmra.mxu0 %v4178
  %v4290 = vpop.f32.mrf.mxu0
  %v4291 = vadd.f32 0.0, %v4290
  %4292 = vmatmul.f32.gmra.mxu0 %v4181
  %v4293 = vpop.f32.mrf.mxu0
  %v4294 = vadd.f32 0.0, %v4293
  %4295 = vmatmul.f32.gmra.mxu0 %v4184
  %v4296 = vpop.f32.mrf.mxu0
  %v4297 = vadd.f32 0.0, %v4296
  %4298 = vmatmul.f32.gmra.mxu0 %v4187
  %v4299 = vpop.f32.mrf.mxu0
  %v4300 = vadd.f32 0.0, %v4299
  %4301 = vdwg.mxu0
  %v4302 = vadd.f32 %v4028, %v4207
  %v4303 = vadd.f32 %v4029, %v4210
  %v4304 = vadd.f32 %v4030, %v4213
  %v4305 = vadd.f32 %v4031, %v4216
  %v4306 = vadd.f32 %v4032, %v4219
  %v4307 = vadd.f32 %v4033, %v4222
  %v4308 = vadd.f32 %v4034, %v4225
  %v4309 = vadd.f32 %v4035, %v4228
  %v4310 = vadd.f32 %v4036, %v4231
  %v4311 = vadd.f32 %v4037, %v4234
  %v4312 = vadd.f32 %v4038, %v4237
  %v4313 = vadd.f32 %v4039, %v4240
  %v4314 = vadd.f32 %v4040, %v4243
  %v4315 = vadd.f32 %v4041, %v4246
  %v4316 = vadd.f32 %v4042, %v4249
  %v4317 = vadd.f32 %v4043, %v4252
  %v4318 = vadd.f32 %v4044, %v4255
  %v4319 = vadd.f32 %v4045, %v4258
  %v4320 = vadd.f32 %v4046, %v4261
  %v4321 = vadd.f32 %v4047, %v4264
  %v4322 = vadd.f32 %v4048, %v4267
  %v4323 = vadd.f32 %v4049, %v4270
  %v4324 = vadd.f32 %v4050, %v4273
  %v4325 = vadd.f32 %v4051, %v4276
  %v4326 = vadd.f32 %v4052, %v4279
  %v4327 = vadd.f32 %v4053, %v4282
  %v4328 = vadd.f32 %v4054, %v4285
  %v4329 = vadd.f32 %v4055, %v4288
  %v4330 = vadd.f32 %v4056, %v4291
  %v4331 = vadd.f32 %v4057, %v4294
  %v4332 = vadd.f32 %v4058, %v4297
  %v4333 = vadd.f32 %v4059, %v4300
  %v4334 = vld [vmem:[%s4060 + $0x1] sm:$0xff]
  %v4335 = vld [vmem:[%s4060 + $0x9] sm:$0xff]
  %v4336 = vld [vmem:[%s4060 + $0x19] sm:$0xff]
  %v4337 = vld [vmem:[%s4060 + $0x21] sm:$0xff]
  %v4338 = vld [vmem:[%s4060 + $0x31] sm:$0xff]
  %v4339 = vld [vmem:[%s4060 + $0x39] sm:$0xff]
  %v4340 = vld [vmem:[%s4060 + $0x49] sm:$0xff]
  %v4341 = vld [vmem:[%s4060 + $0x51] sm:$0xff]
  %v4342 = vld [vmem:[%s4060 + $0x61] sm:$0xff]
  %v4343 = vld [vmem:[%s4060 + $0x69] sm:$0xff]
  %v4344 = vld [vmem:[%s4060 + $0x79] sm:$0xff]
  %v4345 = vld [vmem:[%s4060 + $0x81] sm:$0xff]
  %v4346 = vld [vmem:[%s4060 + $0x91] sm:$0xff]
  %v4347 = vld [vmem:[%s4060 + $0x99] sm:$0xff]
  %v4348 = vld [vmem:[%s4060 + $0xa9] sm:$0xff]
  %v4349 = vld [vmem:[%s4060 + $0xb1] sm:$0xff]
  %v4350 = vld [vmem:[%s4060 + $0xc1] sm:$0xff]
  %v4351 = vld [vmem:[%s4060 + $0xc9] sm:$0xff]
  %v4352 = vld [vmem:[%s4060 + $0xd9] sm:$0xff]
  %v4353 = vld [vmem:[%s4060 + $0xe1] sm:$0xff]
  %v4354 = vld [vmem:[%s4060 + $0xf1] sm:$0xff]
  %v4355 = vld [vmem:[%s4060 + $0xf9] sm:$0xff]
  %v4356 = vld [vmem:[%s4060 + $0x109] sm:$0xff]
  %v4357 = vld [vmem:[%s4060 + $0x111] sm:$0xff]
  %v4358 = vld [vmem:[%s4060 + $0x121] sm:$0xff]
  %v4359 = vld [vmem:[%s4060 + $0x129] sm:$0xff]
  %v4360 = vld [vmem:[%s4060 + $0x139] sm:$0xff]
  %v4361 = vld [vmem:[%s4060 + $0x141] sm:$0xff]
  %v4362 = vld [vmem:[%s4060 + $0x151] sm:$0xff]
  %v4363 = vld [vmem:[%s4060 + $0x159] sm:$0xff]
  %v4364 = vld [vmem:[%s4060 + $0x169] sm:$0xff]
  %v4365 = vld [vmem:[%s4060 + $0x171] sm:$0xff]
  %v4367 = vsel %vm92, %v4334, 0
  %v4370 = vsel %vm92, %v4335, 0
  %v4373 = vsel %vm92, %v4336, 0
  %v4376 = vsel %vm92, %v4337, 0
  %v4379 = vsel %vm92, %v4338, 0
  %v4382 = vsel %vm92, %v4339, 0
  %v4385 = vsel %vm92, %v4340, 0
  %v4388 = vsel %vm92, %v4341, 0
  %v4391 = vsel %vm92, %v4342, 0
  %v4394 = vsel %vm92, %v4343, 0
  %v4397 = vsel %vm92, %v4344, 0
  %v4400 = vsel %vm92, %v4345, 0
  %v4403 = vsel %vm92, %v4346, 0
  %v4406 = vsel %vm92, %v4347, 0
  %v4409 = vsel %vm92, %v4348, 0
  %v4412 = vsel %vm92, %v4349, 0
  %v4415 = vsel %vm92, %v4350, 0
  %v4418 = vsel %vm92, %v4351, 0
  %v4421 = vsel %vm92, %v4352, 0
  %v4424 = vsel %vm92, %v4353, 0
  %v4427 = vsel %vm92, %v4354, 0
  %v4430 = vsel %vm92, %v4355, 0
  %v4433 = vsel %vm92, %v4356, 0
  %v4436 = vsel %vm92, %v4357, 0
  %v4439 = vsel %vm92, %v4358, 0
  %v4442 = vsel %vm92, %v4359, 0
  %v4445 = vsel %vm92, %v4360, 0
  %v4448 = vsel %vm92, %v4361, 0
  %v4451 = vsel %vm92, %v4362, 0
  %v4454 = vsel %vm92, %v4363, 0
  %v4457 = vsel %vm92, %v4364, 0
  %v4460 = vsel %vm92, %v4365, 0
  %4462 = vmatpush.msra.mxu0 0.0
  %4463 = vmatpush.msra.mxu0 0.0
  %4464 = vmatpush.msra.mxu0 0.0
  %4465 = vmatpush.msra.mxu0 0.0
  %4466 = vmatpush.msra.mxu0 0.0
  %4467 = vmatpush.msra.mxu0 0.0
  %4468 = vmatpush.msra.mxu0 0.0
  %4469 = vmatpush.msra.mxu0 0.0
  %4470 = vmatpush.msra.mxu0 0.0
  %4471 = vmatpush.msra.mxu0 0.0
  %4472 = vmatpush.msra.mxu0 0.0
  %4473 = vmatpush.msra.mxu0 0.0
  %4474 = vmatpush.msra.mxu0 0.0
  %4475 = vmatpush.msra.mxu0 0.0
  %4476 = vmatpush.msra.mxu0 0.0
  %4477 = vmatpush.msra.mxu0 %v2029
  %4478 = vmatmul.f32.gmra.mxu0 %v4367
  %v4479 = vpop.f32.mrf.mxu0
  %v4480 = vadd.f32 0.0, %v4479
  %4481 = vmatmul.f32.gmra.mxu0 %v4370
  %v4482 = vpop.f32.mrf.mxu0
  %v4483 = vadd.f32 0.0, %v4482
  %4484 = vmatmul.f32.gmra.mxu0 %v4373
  %v4485 = vpop.f32.mrf.mxu0
  %v4486 = vadd.f32 0.0, %v4485
  %4487 = vmatmul.f32.gmra.mxu0 %v4376
  %v4488 = vpop.f32.mrf.mxu0
  %v4489 = vadd.f32 0.0, %v4488
  %4490 = vmatmul.f32.gmra.mxu0 %v4379
  %v4491 = vpop.f32.mrf.mxu0
  %v4492 = vadd.f32 0.0, %v4491
  %4493 = vmatmul.f32.gmra.mxu0 %v4382
  %v4494 = vpop.f32.mrf.mxu0
  %v4495 = vadd.f32 0.0, %v4494
  %4496 = vmatmul.f32.gmra.mxu0 %v4385
  %v4497 = vpop.f32.mrf.mxu0
  %v4498 = vadd.f32 0.0, %v4497
  %4499 = vmatmul.f32.gmra.mxu0 %v4388
  %v4500 = vpop.f32.mrf.mxu0
  %v4501 = vadd.f32 0.0, %v4500
  %4502 = vmatmul.f32.gmra.mxu0 %v4391
  %v4503 = vpop.f32.mrf.mxu0
  %v4504 = vadd.f32 0.0, %v4503
  %4505 = vmatmul.f32.gmra.mxu0 %v4394
  %v4506 = vpop.f32.mrf.mxu0
  %v4507 = vadd.f32 0.0, %v4506
  %4508 = vmatmul.f32.gmra.mxu0 %v4397
  %v4509 = vpop.f32.mrf.mxu0
  %v4510 = vadd.f32 0.0, %v4509
  %4511 = vmatmul.f32.gmra.mxu0 %v4400
  %v4512 = vpop.f32.mrf.mxu0
  %v4513 = vadd.f32 0.0, %v4512
  %4514 = vmatmul.f32.gmra.mxu0 %v4403
  %v4515 = vpop.f32.mrf.mxu0
  %v4516 = vadd.f32 0.0, %v4515
  %4517 = vmatmul.f32.gmra.mxu0 %v4406
  %v4518 = vpop.f32.mrf.mxu0
  %v4519 = vadd.f32 0.0, %v4518
  %4520 = vmatmul.f32.gmra.mxu0 %v4409
  %v4521 = vpop.f32.mrf.mxu0
  %v4522 = vadd.f32 0.0, %v4521
  %4523 = vmatmul.f32.gmra.mxu0 %v4412
  %v4524 = vpop.f32.mrf.mxu0
  %v4525 = vadd.f32 0.0, %v4524
  %4526 = vmatmul.f32.gmra.mxu0 %v4415
  %v4527 = vpop.f32.mrf.mxu0
  %v4528 = vadd.f32 0.0, %v4527
  %4529 = vmatmul.f32.gmra.mxu0 %v4418
  %v4530 = vpop.f32.mrf.mxu0
  %v4531 = vadd.f32 0.0, %v4530
  %4532 = vmatmul.f32.gmra.mxu0 %v4421
  %v4533 = vpop.f32.mrf.mxu0
  %v4534 = vadd.f32 0.0, %v4533
  %4535 = vmatmul.f32.gmra.mxu0 %v4424
  %v4536 = vpop.f32.mrf.mxu0
  %v4537 = vadd.f32 0.0, %v4536
  %4538 = vmatmul.f32.gmra.mxu0 %v4427
  %v4539 = vpop.f32.mrf.mxu0
  %v4540 = vadd.f32 0.0, %v4539
  %4541 = vmatmul.f32.gmra.mxu0 %v4430
  %v4542 = vpop.f32.mrf.mxu0
  %v4543 = vadd.f32 0.0, %v4542
  %4544 = vmatmul.f32.gmra.mxu0 %v4433
  %v4545 = vpop.f32.mrf.mxu0
  %v4546 = vadd.f32 0.0, %v4545
  %4547 = vmatmul.f32.gmra.mxu0 %v4436
  %v4548 = vpop.f32.mrf.mxu0
  %v4549 = vadd.f32 0.0, %v4548
  %4550 = vmatmul.f32.gmra.mxu0 %v4439
  %v4551 = vpop.f32.mrf.mxu0
  %v4552 = vadd.f32 0.0, %v4551
  %4553 = vmatmul.f32.gmra.mxu0 %v4442
  %v4554 = vpop.f32.mrf.mxu0
  %v4555 = vadd.f32 0.0, %v4554
  %4556 = vmatmul.f32.gmra.mxu0 %v4445
  %v4557 = vpop.f32.mrf.mxu0
  %v4558 = vadd.f32 0.0, %v4557
  %4559 = vmatmul.f32.gmra.mxu0 %v4448
  %v4560 = vpop.f32.mrf.mxu0
  %v4561 = vadd.f32 0.0, %v4560
  %4562 = vmatmul.f32.gmra.mxu0 %v4451
  %v4563 = vpop.f32.mrf.mxu0
  %v4564 = vadd.f32 0.0, %v4563
  %4565 = vmatmul.f32.gmra.mxu0 %v4454
  %v4566 = vpop.f32.mrf.mxu0
  %v4567 = vadd.f32 0.0, %v4566
  %4568 = vmatmul.f32.gmra.mxu0 %v4457
  %v4569 = vpop.f32.mrf.mxu0
  %v4570 = vadd.f32 0.0, %v4569
  %4571 = vmatmul.f32.gmra.mxu0 %v4460
  %v4572 = vpop.f32.mrf.mxu0
  %v4573 = vadd.f32 0.0, %v4572
  %4574 = vdwg.mxu0
  %v4575 = vadd.f32 %v4302, %v4480
  %v4576 = vadd.f32 %v4303, %v4483
  %v4577 = vadd.f32 %v4304, %v4486
  %v4578 = vadd.f32 %v4305, %v4489
  %v4579 = vadd.f32 %v4306, %v4492
  %v4580 = vadd.f32 %v4307, %v4495
  %v4581 = vadd.f32 %v4308, %v4498
  %v4582 = vadd.f32 %v4309, %v4501
  %v4583 = vadd.f32 %v4310, %v4504
  %v4584 = vadd.f32 %v4311, %v4507
  %v4585 = vadd.f32 %v4312, %v4510
  %v4586 = vadd.f32 %v4313, %v4513
  %v4587 = vadd.f32 %v4314, %v4516
  %v4588 = vadd.f32 %v4315, %v4519
  %v4589 = vadd.f32 %v4316, %v4522
  %v4590 = vadd.f32 %v4317, %v4525
  %v4591 = vadd.f32 %v4318, %v4528
  %v4592 = vadd.f32 %v4319, %v4531
  %v4593 = vadd.f32 %v4320, %v4534
  %v4594 = vadd.f32 %v4321, %v4537
  %v4595 = vadd.f32 %v4322, %v4540
  %v4596 = vadd.f32 %v4323, %v4543
  %v4597 = vadd.f32 %v4324, %v4546
  %v4598 = vadd.f32 %v4325, %v4549
  %v4599 = vadd.f32 %v4326, %v4552
  %v4600 = vadd.f32 %v4327, %v4555
  %v4601 = vadd.f32 %v4328, %v4558
  %v4602 = vadd.f32 %v4329, %v4561
  %v4603 = vadd.f32 %v4330, %v4564
  %v4604 = vadd.f32 %v4331, %v4567
  %v4605 = vadd.f32 %v4332, %v4570
  %v4606 = vadd.f32 %v4333, %v4573
  %v4607 = vld [vmem:[%s4060 + $0x2] sm:$0xff]
  %v4608 = vld [vmem:[%s4060 + $0xa] sm:$0xff]
  %v4609 = vld [vmem:[%s4060 + $0x1a] sm:$0xff]
  %v4610 = vld [vmem:[%s4060 + $0x22] sm:$0xff]
  %v4611 = vld [vmem:[%s4060 + $0x32] sm:$0xff]
  %v4612 = vld [vmem:[%s4060 + $0x3a] sm:$0xff]
  %v4613 = vld [vmem:[%s4060 + $0x4a] sm:$0xff]
  %v4614 = vld [vmem:[%s4060 + $0x52] sm:$0xff]
  %v4615 = vld [vmem:[%s4060 + $0x62] sm:$0xff]
  %v4616 = vld [vmem:[%s4060 + $0x6a] sm:$0xff]
  %v4617 = vld [vmem:[%s4060 + $0x7a] sm:$0xff]
  %v4618 = vld [vmem:[%s4060 + $0x82] sm:$0xff]
  %v4619 = vld [vmem:[%s4060 + $0x92] sm:$0xff]
  %v4620 = vld [vmem:[%s4060 + $0x9a] sm:$0xff]
  %v4621 = vld [vmem:[%s4060 + $0xaa] sm:$0xff]
  %v4622 = vld [vmem:[%s4060 + $0xb2] sm:$0xff]
  %v4623 = vld [vmem:[%s4060 + $0xc2] sm:$0xff]
  %v4624 = vld [vmem:[%s4060 + $0xca] sm:$0xff]
  %v4625 = vld [vmem:[%s4060 + $0xda] sm:$0xff]
  %v4626 = vld [vmem:[%s4060 + $0xe2] sm:$0xff]
  %v4627 = vld [vmem:[%s4060 + $0xf2] sm:$0xff]
  %v4628 = vld [vmem:[%s4060 + $0xfa] sm:$0xff]
  %v4629 = vld [vmem:[%s4060 + $0x10a] sm:$0xff]
  %v4630 = vld [vmem:[%s4060 + $0x112] sm:$0xff]
  %v4631 = vld [vmem:[%s4060 + $0x122] sm:$0xff]
  %v4632 = vld [vmem:[%s4060 + $0x12a] sm:$0xff]
  %v4633 = vld [vmem:[%s4060 + $0x13a] sm:$0xff]
  %v4634 = vld [vmem:[%s4060 + $0x142] sm:$0xff]
  %v4635 = vld [vmem:[%s4060 + $0x152] sm:$0xff]
  %v4636 = vld [vmem:[%s4060 + $0x15a] sm:$0xff]
  %v4637 = vld [vmem:[%s4060 + $0x16a] sm:$0xff]
  %v4638 = vld [vmem:[%s4060 + $0x172] sm:$0xff]
  %v4640 = vsel %vm92, %v4607, 0
  %v4643 = vsel %vm92, %v4608, 0
  %v4646 = vsel %vm92, %v4609, 0
  %v4649 = vsel %vm92, %v4610, 0
  %v4652 = vsel %vm92, %v4611, 0
  %v4655 = vsel %vm92, %v4612, 0
  %v4658 = vsel %vm92, %v4613, 0
  %v4661 = vsel %vm92, %v4614, 0
  %v4664 = vsel %vm92, %v4615, 0
  %v4667 = vsel %vm92, %v4616, 0
  %v4670 = vsel %vm92, %v4617, 0
  %v4673 = vsel %vm92, %v4618, 0
  %v4676 = vsel %vm92, %v4619, 0
  %v4679 = vsel %vm92, %v4620, 0
  %v4682 = vsel %vm92, %v4621, 0
  %v4685 = vsel %vm92, %v4622, 0
  %v4688 = vsel %vm92, %v4623, 0
  %v4691 = vsel %vm92, %v4624, 0
  %v4694 = vsel %vm92, %v4625, 0
  %v4697 = vsel %vm92, %v4626, 0
  %v4700 = vsel %vm92, %v4627, 0
  %v4703 = vsel %vm92, %v4628, 0
  %v4706 = vsel %vm92, %v4629, 0
  %v4709 = vsel %vm92, %v4630, 0
  %v4712 = vsel %vm92, %v4631, 0
  %v4715 = vsel %vm92, %v4632, 0
  %v4718 = vsel %vm92, %v4633, 0
  %v4721 = vsel %vm92, %v4634, 0
  %v4724 = vsel %vm92, %v4635, 0
  %v4727 = vsel %vm92, %v4636, 0
  %v4730 = vsel %vm92, %v4637, 0
  %v4733 = vsel %vm92, %v4638, 0
  %4735 = vmatpush.msra.mxu0 0.0
  %4736 = vmatpush.msra.mxu0 0.0
  %4737 = vmatpush.msra.mxu0 0.0
  %4738 = vmatpush.msra.mxu0 0.0
  %4739 = vmatpush.msra.mxu0 0.0
  %4740 = vmatpush.msra.mxu0 0.0
  %4741 = vmatpush.msra.mxu0 0.0
  %4742 = vmatpush.msra.mxu0 0.0
  %4743 = vmatpush.msra.mxu0 0.0
  %4744 = vmatpush.msra.mxu0 0.0
  %4745 = vmatpush.msra.mxu0 0.0
  %4746 = vmatpush.msra.mxu0 0.0
  %4747 = vmatpush.msra.mxu0 0.0
  %4748 = vmatpush.msra.mxu0 0.0
  %4749 = vmatpush.msra.mxu0 0.0
  %4750 = vmatpush.msra.mxu0 %v2305
  %4751 = vmatmul.f32.gmra.mxu0 %v4640
  %v4752 = vpop.f32.mrf.mxu0
  %v4753 = vadd.f32 0.0, %v4752
  %4754 = vmatmul.f32.gmra.mxu0 %v4643
  %v4755 = vpop.f32.mrf.mxu0
  %v4756 = vadd.f32 0.0, %v4755
  %4757 = vmatmul.f32.gmra.mxu0 %v4646
  %v4758 = vpop.f32.mrf.mxu0
  %v4759 = vadd.f32 0.0, %v4758
  %4760 = vmatmul.f32.gmra.mxu0 %v4649
  %v4761 = vpop.f32.mrf.mxu0
  %v4762 = vadd.f32 0.0, %v4761
  %4763 = vmatmul.f32.gmra.mxu0 %v4652
  %v4764 = vpop.f32.mrf.mxu0
  %v4765 = vadd.f32 0.0, %v4764
  %4766 = vmatmul.f32.gmra.mxu0 %v4655
  %v4767 = vpop.f32.mrf.mxu0
  %v4768 = vadd.f32 0.0, %v4767
  %4769 = vmatmul.f32.gmra.mxu0 %v4658
  %v4770 = vpop.f32.mrf.mxu0
  %v4771 = vadd.f32 0.0, %v4770
  %4772 = vmatmul.f32.gmra.mxu0 %v4661
  %v4773 = vpop.f32.mrf.mxu0
  %v4774 = vadd.f32 0.0, %v4773
  %4775 = vmatmul.f32.gmra.mxu0 %v4664
  %v4776 = vpop.f32.mrf.mxu0
  %v4777 = vadd.f32 0.0, %v4776
  %4778 = vmatmul.f32.gmra.mxu0 %v4667
  %v4779 = vpop.f32.mrf.mxu0
  %v4780 = vadd.f32 0.0, %v4779
  %4781 = vmatmul.f32.gmra.mxu0 %v4670
  %v4782 = vpop.f32.mrf.mxu0
  %v4783 = vadd.f32 0.0, %v4782
  %4784 = vmatmul.f32.gmra.mxu0 %v4673
  %v4785 = vpop.f32.mrf.mxu0
  %v4786 = vadd.f32 0.0, %v4785
  %4787 = vmatmul.f32.gmra.mxu0 %v4676
  %v4788 = vpop.f32.mrf.mxu0
  %v4789 = vadd.f32 0.0, %v4788
  %4790 = vmatmul.f32.gmra.mxu0 %v4679
  %v4791 = vpop.f32.mrf.mxu0
  %v4792 = vadd.f32 0.0, %v4791
  %4793 = vmatmul.f32.gmra.mxu0 %v4682
  %v4794 = vpop.f32.mrf.mxu0
  %v4795 = vadd.f32 0.0, %v4794
  %4796 = vmatmul.f32.gmra.mxu0 %v4685
  %v4797 = vpop.f32.mrf.mxu0
  %v4798 = vadd.f32 0.0, %v4797
  %4799 = vmatmul.f32.gmra.mxu0 %v4688
  %v4800 = vpop.f32.mrf.mxu0
  %v4801 = vadd.f32 0.0, %v4800
  %4802 = vmatmul.f32.gmra.mxu0 %v4691
  %v4803 = vpop.f32.mrf.mxu0
  %v4804 = vadd.f32 0.0, %v4803
  %4805 = vmatmul.f32.gmra.mxu0 %v4694
  %v4806 = vpop.f32.mrf.mxu0
  %v4807 = vadd.f32 0.0, %v4806
  %4808 = vmatmul.f32.gmra.mxu0 %v4697
  %v4809 = vpop.f32.mrf.mxu0
  %v4810 = vadd.f32 0.0, %v4809
  %4811 = vmatmul.f32.gmra.mxu0 %v4700
  %v4812 = vpop.f32.mrf.mxu0
  %v4813 = vadd.f32 0.0, %v4812
  %4814 = vmatmul.f32.gmra.mxu0 %v4703
  %v4815 = vpop.f32.mrf.mxu0
  %v4816 = vadd.f32 0.0, %v4815
  %4817 = vmatmul.f32.gmra.mxu0 %v4706
  %v4818 = vpop.f32.mrf.mxu0
  %v4819 = vadd.f32 0.0, %v4818
  %4820 = vmatmul.f32.gmra.mxu0 %v4709
  %v4821 = vpop.f32.mrf.mxu0
  %v4822 = vadd.f32 0.0, %v4821
  %4823 = vmatmul.f32.gmra.mxu0 %v4712
  %v4824 = vpop.f32.mrf.mxu0
  %v4825 = vadd.f32 0.0, %v4824
  %4826 = vmatmul.f32.gmra.mxu0 %v4715
  %v4827 = vpop.f32.mrf.mxu0
  %v4828 = vadd.f32 0.0, %v4827
  %4829 = vmatmul.f32.gmra.mxu0 %v4718
  %v4830 = vpop.f32.mrf.mxu0
  %v4831 = vadd.f32 0.0, %v4830
  %4832 = vmatmul.f32.gmra.mxu0 %v4721
  %v4833 = vpop.f32.mrf.mxu0
  %v4834 = vadd.f32 0.0, %v4833
  %4835 = vmatmul.f32.gmra.mxu0 %v4724
  %v4836 = vpop.f32.mrf.mxu0
  %v4837 = vadd.f32 0.0, %v4836
  %4838 = vmatmul.f32.gmra.mxu0 %v4727
  %v4839 = vpop.f32.mrf.mxu0
  %v4840 = vadd.f32 0.0, %v4839
  %4841 = vmatmul.f32.gmra.mxu0 %v4730
  %v4842 = vpop.f32.mrf.mxu0
  %v4843 = vadd.f32 0.0, %v4842
  %4844 = vmatmul.f32.gmra.mxu0 %v4733
  %v4845 = vpop.f32.mrf.mxu0
  %v4846 = vadd.f32 0.0, %v4845
  %4847 = vdwg.mxu0
  %v4848 = vadd.f32 %v4575, %v4753
  %v4849 = vadd.f32 %v4576, %v4756
  %v4850 = vadd.f32 %v4577, %v4759
  %v4851 = vadd.f32 %v4578, %v4762
  %v4852 = vadd.f32 %v4579, %v4765
  %v4853 = vadd.f32 %v4580, %v4768
  %v4854 = vadd.f32 %v4581, %v4771
  %v4855 = vadd.f32 %v4582, %v4774
  %v4856 = vadd.f32 %v4583, %v4777
  %v4857 = vadd.f32 %v4584, %v4780
  %v4858 = vadd.f32 %v4585, %v4783
  %v4859 = vadd.f32 %v4586, %v4786
  %v4860 = vadd.f32 %v4587, %v4789
  %v4861 = vadd.f32 %v4588, %v4792
  %v4862 = vadd.f32 %v4589, %v4795
  %v4863 = vadd.f32 %v4590, %v4798
  %v4864 = vadd.f32 %v4591, %v4801
  %v4865 = vadd.f32 %v4592, %v4804
  %v4866 = vadd.f32 %v4593, %v4807
  %v4867 = vadd.f32 %v4594, %v4810
  %v4868 = vadd.f32 %v4595, %v4813
  %v4869 = vadd.f32 %v4596, %v4816
  %v4870 = vadd.f32 %v4597, %v4819
  %v4871 = vadd.f32 %v4598, %v4822
  %v4872 = vadd.f32 %v4599, %v4825
  %v4873 = vadd.f32 %v4600, %v4828
  %v4874 = vadd.f32 %v4601, %v4831
  %v4875 = vadd.f32 %v4602, %v4834
  %v4876 = vadd.f32 %v4603, %v4837
  %v4877 = vadd.f32 %v4604, %v4840
  %v4878 = vadd.f32 %v4605, %v4843
  %v4879 = vadd.f32 %v4606, %v4846
  %s4880 = scalar_lea.vmem %s2, 256
  %4881 = vst [vmem:[%s4880] sm:$0xff] %v4848
  %4882 = vst [vmem:[%s4880 + $0x8] sm:$0xff] %v4849
  %4883 = vst [vmem:[%s4880 + $0x10] sm:$0xff] %v4850
  %4884 = vst [vmem:[%s4880 + $0x18] sm:$0xff] %v4851
  %4885 = vst [vmem:[%s4880 + $0x20] sm:$0xff] %v4852
  %4886 = vst [vmem:[%s4880 + $0x28] sm:$0xff] %v4853
  %4887 = vst [vmem:[%s4880 + $0x30] sm:$0xff] %v4854
  %4888 = vst [vmem:[%s4880 + $0x38] sm:$0xff] %v4855
  %4889 = vst [vmem:[%s4880 + $0x40] sm:$0xff] %v4856
  %4890 = vst [vmem:[%s4880 + $0x48] sm:$0xff] %v4857
  %4891 = vst [vmem:[%s4880 + $0x50] sm:$0xff] %v4858
  %4892 = vst [vmem:[%s4880 + $0x58] sm:$0xff] %v4859
  %4893 = vst [vmem:[%s4880 + $0x60] sm:$0xff] %v4860
  %4894 = vst [vmem:[%s4880 + $0x68] sm:$0xff] %v4861
  %4895 = vst [vmem:[%s4880 + $0x70] sm:$0xff] %v4862
  %4896 = vst [vmem:[%s4880 + $0x78] sm:$0xff] %v4863
  %4897 = vst [vmem:[%s4880 + $0x80] sm:$0xff] %v4864
  %4898 = vst [vmem:[%s4880 + $0x88] sm:$0xff] %v4865
  %4899 = vst [vmem:[%s4880 + $0x90] sm:$0xff] %v4866
  %4900 = vst [vmem:[%s4880 + $0x98] sm:$0xff] %v4867
  %4901 = vst [vmem:[%s4880 + $0xa0] sm:$0xff] %v4868
  %4902 = vst [vmem:[%s4880 + $0xa8] sm:$0xff] %v4869
  %4903 = vst [vmem:[%s4880 + $0xb0] sm:$0xff] %v4870
  %4904 = vst [vmem:[%s4880 + $0xb8] sm:$0xff] %v4871
  %4905 = vst [vmem:[%s4880 + $0xc0] sm:$0xff] %v4872
  %4906 = vst [vmem:[%s4880 + $0xc8] sm:$0xff] %v4873
  %4907 = vst [vmem:[%s4880 + $0xd0] sm:$0xff] %v4874
  %4908 = vst [vmem:[%s4880 + $0xd8] sm:$0xff] %v4875
  %4909 = vst [vmem:[%s4880 + $0xe0] sm:$0xff] %v4876
  %4910 = vst [vmem:[%s4880 + $0xe8] sm:$0xff] %v4877
  %4911 = vst [vmem:[%s4880 + $0xf0] sm:$0xff] %v4878
  %4912 = vst [vmem:[%s4880 + $0xf8] sm:$0xff] %v4879
  // Predicated region
  $region10: #{layer_forward.1} parent=0 // pred_check
    _
  $region11: #{layer_forward.1} parent=0 // pred_check_branch
    %4914 = sbr.rel (0) target = $region13
  $region12: #{layer_forward.1} parent=0 // pred_region
    _
  $region13: #{layer_forward.1} parent=0 // pred_fallthru
    _
  // Predicated region
  $region14: #{layer_forward.1} parent=0 // pred_check
    _
  $region15: #{layer_forward.1} parent=0 // pred_check_branch
    %4916 = sbr.rel (0) target = $region17
  $region16: #{layer_forward.1} parent=0 // pred_region
    _
  $region17: #{layer_forward.1} parent=0 // pred_fallthru
    _

</llo_original>
